<compile_context>
chip_gen: v7x
topology: tpu7x:2x2x1
jax: 0.10.0
libtpu: 0.0.40
codegen_flags: <defaults>
</compile_context>

<pallas_src>
import jax
import jax.numpy as jnp
import numpy as np
from jax.experimental import pallas as pl
from jax.experimental.pallas import tpu as pltpu


def _round_up(n, m):
    return ((n + m - 1) // m) * m


# --------------------------------------------------------------------------
# Backbone stem kernel: conv3x3 (stride 1, pad 1, no bias) -> ReLU -> global
# average pool, one image per grid step.  Conv is done as 9 shifted-slab
# matmuls over the row-major flattened padded image (in-kernel im2col).
# --------------------------------------------------------------------------
def _make_stem_kernel(H, W, C, L, cout_pad):
    WP = W + 2
    inv_hw = 1.0 / float(H * W)

    def stem_kernel(x_ref, w_ref, mask_ref, emb_ref):
        # x_ref   : ((H+2)*(W+2), C)  f32  one padded image, row-major flattened
        # w_ref   : (9, C, cout_pad)  f32  conv taps ordered (dh, dw)
        # mask_ref: (L, 1)            f32  1.0 on valid spatial rows, 0.0 on wrap rows
        # emb_ref : (1, cout_pad)     f32  pooled embedding for this image
        acc = jnp.zeros((L, cout_pad), jnp.float32)
        for k in range(9):                       # 3x3 taps, statically unrolled
            dh, dw = divmod(k, 3)
            slab = x_ref[pl.ds(dh * WP + dw, L), :]          # contiguous row slice
            acc = acc + jnp.dot(slab, w_ref[k],
                                preferred_element_type=jnp.float32)
        feat = jnp.maximum(acc, 0.0) * mask_ref[...]          # ReLU + drop wrap rows
        emb_ref[...] = (jnp.sum(feat, axis=0, keepdims=True) * inv_hw
                        ).astype(emb_ref.dtype)

    return stem_kernel


# --------------------------------------------------------------------------
# Projection MLP kernel: Linear -> BatchNorm1d (train-mode batch stats) ->
# ReLU -> Linear.  All feature dims lane-padded to 128; whole (small) batch in
# one block so the batch statistics are exact.
# --------------------------------------------------------------------------
def _mlp_kernel(emb_ref, w1_ref, b1_ref, gamma_ref, beta_ref,
                w2_ref, b2_ref, out_ref):
    h = jnp.dot(emb_ref[...], w1_ref[...],
                preferred_element_type=jnp.float32) + b1_ref[...]
    mean = jnp.mean(h, axis=0, keepdims=True)
    var = jnp.mean((h - mean) ** 2, axis=0, keepdims=True)
    h = (h - mean) * jax.lax.rsqrt(var + 1e-5)
    h = h * gamma_ref[...] + beta_ref[...]
    h = jnp.maximum(h, 0.0)
    out = jnp.dot(h, w2_ref[...],
                  preferred_element_type=jnp.float32) + b2_ref[...]
    out_ref[...] = out.astype(out_ref.dtype)


# --------------------------------------------------------------------------
# Wrapper
# --------------------------------------------------------------------------
def proj_head_forward(x_nchw, params, return_embedding=False):
    B, C, H, W = x_nchw.shape
    assert C == 3, "ProjHeadModel forces conv1 = Conv2d(3, 64, 3, 1, 1)"
    conv_w, w1, b1, gamma, beta, w2, b2 = params
    cout = conv_w.shape[0]
    hidden = w1.shape[1]
    emb_dim = w2.shape[1]

    cout_pad = _round_up(cout, 128)
    hid_pad = _round_up(hidden, 128)
    out_pad = _round_up(emb_dim, 128)

    WP, HP = W + 2, H + 2
    npad = HP * WP
    # number of shifted rows needed: valid bases are h*(W+2)+w with h<H, w<W
    L = (H - 1) * WP + W

    # ---- glue (layout only): NCHW -> padded NHWC -> (B, (H+2)*(W+2), C) f32
    x_nhwc = jnp.transpose(x_nchw, (0, 2, 3, 1))
    xp = jnp.pad(x_nhwc, ((0, 0), (1, 1), (1, 1), (0, 0)))
    xflat = xp.reshape(B, npad, C).astype(jnp.float32)

    # conv weight OIHW -> (dh, dw, cin, cout) -> (9, cin, cout_pad)
    wk = jnp.transpose(conv_w, (2, 3, 1, 0)).reshape(9, C, cout)
    wk = jnp.pad(wk, ((0, 0), (0, 0), (0, cout_pad - cout))).astype(jnp.float32)

    # validity mask over the L shifted rows (zeros out per-row wrap-around rows)
    mask = ((jnp.arange(L) % WP) < W).astype(jnp.float32).reshape(L, 1)

    stem = _make_stem_kernel(H, W, C, L, cout_pad)
    flops = 2 * B * 9 * L * C * cout_pad
    bytes_accessed = (xflat.size * 4 + wk.size * 4 + mask.size * 4
                      + B * cout_pad * 4)

    emb3 = pl.pallas_call(
        stem,
        out_shape=jax.ShapeDtypeStruct((B, 1, cout_pad), jnp.float32),
        grid=(B,),
        in_specs=[
            pl.BlockSpec((None, npad, C), lambda b: (b, 0, 0)),
            pl.BlockSpec((9, C, cout_pad), lambda b: (0, 0, 0)),
            pl.BlockSpec((L, 1), lambda b: (0, 0)),
        ],
        out_specs=pl.BlockSpec((None, 1, cout_pad), lambda b: (b, 0, 0)),
        compiler_params=pltpu.CompilerParams(
            dimension_semantics=("parallel",),
            vmem_limit_bytes=32 * 1024 * 1024),
        cost_estimate=pl.CostEstimate(flops=flops, transcendentals=0,
                                      bytes_accessed=bytes_accessed),
    )(xflat, wk, mask)
    emb_padded = emb3.reshape(B, cout_pad)

    if return_embedding:
        return emb_padded[:, :cout]          # skip MLP entirely (no weight DMA)

    # ---- projection MLP (separate call; lane-padded params, f32 for BN fidelity)
    w1p = jnp.pad(w1, ((0, cout_pad - cout), (0, hid_pad - hidden)))
    b1p = jnp.pad(b1.reshape(1, hidden), ((0, 0), (0, hid_pad - hidden)))
    gp = jnp.pad(gamma.reshape(1, hidden), ((0, 0), (0, hid_pad - hidden)))
    bp = jnp.pad(beta.reshape(1, hidden), ((0, 0), (0, hid_pad - hidden)))
    w2p = jnp.pad(w2, ((0, hid_pad - hidden), (0, out_pad - emb_dim)))
    b2p = jnp.pad(b2.reshape(1, emb_dim), ((0, 0), (0, out_pad - emb_dim)))

    vmem = pl.BlockSpec(memory_space=pltpu.MemorySpace.VMEM)
    out_padded = pl.pallas_call(
        _mlp_kernel,
        out_shape=jax.ShapeDtypeStruct((B, out_pad), jnp.float32),
        in_specs=[vmem] * 7,
        out_specs=vmem,
        compiler_params=pltpu.CompilerParams(
            vmem_limit_bytes=32 * 1024 * 1024),
    )(emb_padded, w1p, b1p, gp, bp, w2p, b2p)
    return out_padded[:, :emb_dim]


# --------------------------------------------------------------------------
# Pure-JAX reference (f32) for validation
# --------------------------------------------------------------------------
def reference_forward(x_nchw, params, return_embedding=False):
    conv_w, w1, b1, gamma, beta, w2, b2 = params
    feat = jax.lax.conv_general_dilated(
        x_nchw, conv_w, window_strides=(1, 1), padding='SAME',
        dimension_numbers=('NCHW', 'OIHW', 'NCHW'))
    feat = jnp.maximum(feat, 0.0)
    emb = jnp.mean(feat, axis=(2, 3))
    if return_embedding:
        return emb
    h = emb @ w1 + b1
    mean = h.mean(0, keepdims=True)
    var = ((h - mean) ** 2).mean(0, keepdims=True)
    h = (h - mean) / jnp.sqrt(var + 1e-5) * gamma + beta
    h = jnp.maximum(h, 0.0)
    return h @ w2 + b2


if __name__ == "__main__":
    # small shapes: batch=2, 3-channel 16x16 images, conv->64ch, hidden=32, emb=16
    B, C, H, W = 2, 3, 16, 16
    COUT, HIDDEN, EMB = 64, 32, 16

    key = jax.random.PRNGKey(0)
    kx, kc, k1, kb1, k2, kb2 = jax.random.split(key, 6)

    x = jax.random.normal(kx, (B, C, H, W), dtype=jnp.float32)
    conv_w = 0.1 * jax.random.normal(kc, (COUT, C, 3, 3), dtype=jnp.float32)  # OIHW
    w1 = 0.1 * jax.random.normal(k1, (COUT, HIDDEN), dtype=jnp.float32)
    b1 = 0.1 * jax.random.normal(kb1, (HIDDEN,), dtype=jnp.float32)
    gamma = jnp.ones((HIDDEN,), dtype=jnp.float32)
    beta = jnp.zeros((HIDDEN,), dtype=jnp.float32)
    w2 = 0.1 * jax.random.normal(k2, (HIDDEN, EMB), dtype=jnp.float32)
    b2 = 0.1 * jax.random.normal(kb2, (EMB,), dtype=jnp.float32)
    params = (conv_w, w1, b1, gamma, beta, w2, b2)

    out = jax.block_until_ready(proj_head_forward(x, params))
    emb = jax.block_until_ready(proj_head_forward(x, params, return_embedding=True))

    ref_out = reference_forward(x, params)
    ref_emb = reference_forward(x, params, return_embedding=True)
    np.testing.assert_allclose(np.asarray(emb), np.asarray(ref_emb),
                               rtol=2e-2, atol=2e-2)
    np.testing.assert_allclose(np.asarray(out), np.asarray(ref_out),
                               rtol=2e-2, atol=2e-2)

    assert out.shape == (B, EMB) and emb.shape == (B, COUT)
    print("KERNEL_OK")
</pallas_src>

<mosaic_0001>
module attributes {stable_mosaic.version = 11 : i64} {
  func.func @stem_kernel(%arg0: i32, %arg1: memref<1x324x3xf32, #tpu.memory_space<vmem>>, %arg2: memref<9x3x128xf32, #tpu.memory_space<vmem>>, %arg3: memref<286x1xf32, #tpu.memory_space<vmem>>, %arg4: memref<1x1x128xf32, #tpu.memory_space<vmem>>) attributes {dimension_semantics = [#tpu.dimension_semantics<parallel>], iteration_bounds = array<i64: 2>, scalar_prefetch = 0 : i64, scratch_operands = 0 : i64, tpu.core_type = #tpu.core_type<tc>, window_params = [{transform_indices = @transform_0, window_bounds = array<i64: 1, 324, 3>}, {pipeline_mode = #tpu.pipeline_mode<synchronous>, transform_indices = @transform_1, window_bounds = array<i64: 9, 3, 128>}, {pipeline_mode = #tpu.pipeline_mode<synchronous>, transform_indices = @transform_2, window_bounds = array<i64: 286, 1>}, {transform_indices = @transform_3, window_bounds = array<i64: 1, 1, 128>}]} {
    %cst = arith.constant 0.000000e+00 : f32
    %0 = vector.broadcast %cst : f32 to vector<286x128xf32>
    %c0 = arith.constant 0 : index
    %c0_0 = arith.constant 0 : index
    %c0_1 = arith.constant 0 : index
    %1 = vector.load %arg1[%c0, %c0_0, %c0_1] : memref<1x324x3xf32, #tpu.memory_space<vmem>>, vector<1x286x3xf32>
    %2 = vector.shape_cast %1 : vector<1x286x3xf32> to vector<286x3xf32>
    %c0_2 = arith.constant 0 : index
    %c0_3 = arith.constant 0 : index
    %c0_4 = arith.constant 0 : index
    %3 = vector.load %arg2[%c0_2, %c0_3, %c0_4] : memref<9x3x128xf32, #tpu.memory_space<vmem>>, vector<1x3x128xf32>
    %4 = vector.shape_cast %3 : vector<1x3x128xf32> to vector<3x128xf32>
    %cst_5 = arith.constant dense<0.000000e+00> : vector<286x128xf32>
    %5 = tpu.matmul %2, %4, %cst_5 {dimension_numbers = #tpu.dot_dimension_numbers<[1], [0], [0], [1], [0, 0, 1, 1], [], []>} : vector<286x3xf32>, vector<3x128xf32>, vector<286x128xf32> -> vector<286x128xf32>
    %6 = arith.addf %0, %5 : vector<286x128xf32>
    %c0_6 = arith.constant 0 : index
    %c1 = arith.constant 1 : index
    %c0_7 = arith.constant 0 : index
    %7 = vector.load %arg1[%c0_6, %c1, %c0_7] : memref<1x324x3xf32, #tpu.memory_space<vmem>>, vector<1x286x3xf32>
    %8 = vector.shape_cast %7 : vector<1x286x3xf32> to vector<286x3xf32>
    %c1_8 = arith.constant 1 : index
    %c0_9 = arith.constant 0 : index
    %c0_10 = arith.constant 0 : index
    %9 = vector.load %arg2[%c1_8, %c0_9, %c0_10] : memref<9x3x128xf32, #tpu.memory_space<vmem>>, vector<1x3x128xf32>
    %10 = vector.shape_cast %9 : vector<1x3x128xf32> to vector<3x128xf32>
    %cst_11 = arith.constant dense<0.000000e+00> : vector<286x128xf32>
    %11 = tpu.matmul %8, %10, %cst_11 {dimension_numbers = #tpu.dot_dimension_numbers<[1], [0], [0], [1], [0, 0, 1, 1], [], []>} : vector<286x3xf32>, vector<3x128xf32>, vector<286x128xf32> -> vector<286x128xf32>
    %12 = arith.addf %6, %11 : vector<286x128xf32>
    %c0_12 = arith.constant 0 : index
    %c2 = arith.constant 2 : index
    %c0_13 = arith.constant 0 : index
    %13 = vector.load %arg1[%c0_12, %c2, %c0_13] : memref<1x324x3xf32, #tpu.memory_space<vmem>>, vector<1x286x3xf32>
    %14 = vector.shape_cast %13 : vector<1x286x3xf32> to vector<286x3xf32>
    %c2_14 = arith.constant 2 : index
    %c0_15 = arith.constant 0 : index
    %c0_16 = arith.constant 0 : index
    %15 = vector.load %arg2[%c2_14, %c0_15, %c0_16] : memref<9x3x128xf32, #tpu.memory_space<vmem>>, vector<1x3x128xf32>
    %16 = vector.shape_cast %15 : vector<1x3x128xf32> to vector<3x128xf32>
    %cst_17 = arith.constant dense<0.000000e+00> : vector<286x128xf32>
    %17 = tpu.matmul %14, %16, %cst_17 {dimension_numbers = #tpu.dot_dimension_numbers<[1], [0], [0], [1], [0, 0, 1, 1], [], []>} : vector<286x3xf32>, vector<3x128xf32>, vector<286x128xf32> -> vector<286x128xf32>
    %18 = arith.addf %12, %17 : vector<286x128xf32>
    %c0_18 = arith.constant 0 : index
    %c18 = arith.constant 18 : index
    %c0_19 = arith.constant 0 : index
    %19 = vector.load %arg1[%c0_18, %c18, %c0_19] : memref<1x324x3xf32, #tpu.memory_space<vmem>>, vector<1x286x3xf32>
    %20 = vector.shape_cast %19 : vector<1x286x3xf32> to vector<286x3xf32>
    %c3 = arith.constant 3 : index
    %c0_20 = arith.constant 0 : index
    %c0_21 = arith.constant 0 : index
    %21 = vector.load %arg2[%c3, %c0_20, %c0_21] : memref<9x3x128xf32, #tpu.memory_space<vmem>>, vector<1x3x128xf32>
    %22 = vector.shape_cast %21 : vector<1x3x128xf32> to vector<3x128xf32>
    %cst_22 = arith.constant dense<0.000000e+00> : vector<286x128xf32>
    %23 = tpu.matmul %20, %22, %cst_22 {dimension_numbers = #tpu.dot_dimension_numbers<[1], [0], [0], [1], [0, 0, 1, 1], [], []>} : vector<286x3xf32>, vector<3x128xf32>, vector<286x128xf32> -> vector<286x128xf32>
    %24 = arith.addf %18, %23 : vector<286x128xf32>
    %c0_23 = arith.constant 0 : index
    %c19 = arith.constant 19 : index
    %c0_24 = arith.constant 0 : index
    %25 = vector.load %arg1[%c0_23, %c19, %c0_24] : memref<1x324x3xf32, #tpu.memory_space<vmem>>, vector<1x286x3xf32>
    %26 = vector.shape_cast %25 : vector<1x286x3xf32> to vector<286x3xf32>
    %c4 = arith.constant 4 : index
    %c0_25 = arith.constant 0 : index
    %c0_26 = arith.constant 0 : index
    %27 = vector.load %arg2[%c4, %c0_25, %c0_26] : memref<9x3x128xf32, #tpu.memory_space<vmem>>, vector<1x3x128xf32>
    %28 = vector.shape_cast %27 : vector<1x3x128xf32> to vector<3x128xf32>
    %cst_27 = arith.constant dense<0.000000e+00> : vector<286x128xf32>
    %29 = tpu.matmul %26, %28, %cst_27 {dimension_numbers = #tpu.dot_dimension_numbers<[1], [0], [0], [1], [0, 0, 1, 1], [], []>} : vector<286x3xf32>, vector<3x128xf32>, vector<286x128xf32> -> vector<286x128xf32>
    %30 = arith.addf %24, %29 : vector<286x128xf32>
    %c0_28 = arith.constant 0 : index
    %c20 = arith.constant 20 : index
    %c0_29 = arith.constant 0 : index
    %31 = vector.load %arg1[%c0_28, %c20, %c0_29] : memref<1x324x3xf32, #tpu.memory_space<vmem>>, vector<1x286x3xf32>
    %32 = vector.shape_cast %31 : vector<1x286x3xf32> to vector<286x3xf32>
    %c5 = arith.constant 5 : index
    %c0_30 = arith.constant 0 : index
    %c0_31 = arith.constant 0 : index
    %33 = vector.load %arg2[%c5, %c0_30, %c0_31] : memref<9x3x128xf32, #tpu.memory_space<vmem>>, vector<1x3x128xf32>
    %34 = vector.shape_cast %33 : vector<1x3x128xf32> to vector<3x128xf32>
    %cst_32 = arith.constant dense<0.000000e+00> : vector<286x128xf32>
    %35 = tpu.matmul %32, %34, %cst_32 {dimension_numbers = #tpu.dot_dimension_numbers<[1], [0], [0], [1], [0, 0, 1, 1], [], []>} : vector<286x3xf32>, vector<3x128xf32>, vector<286x128xf32> -> vector<286x128xf32>
    %36 = arith.addf %30, %35 : vector<286x128xf32>
    %c0_33 = arith.constant 0 : index
    %c36 = arith.constant 36 : index
    %c0_34 = arith.constant 0 : index
    %37 = vector.load %arg1[%c0_33, %c36, %c0_34] : memref<1x324x3xf32, #tpu.memory_space<vmem>>, vector<1x286x3xf32>
    %38 = vector.shape_cast %37 : vector<1x286x3xf32> to vector<286x3xf32>
    %c6 = arith.constant 6 : index
    %c0_35 = arith.constant 0 : index
    %c0_36 = arith.constant 0 : index
    %39 = vector.load %arg2[%c6, %c0_35, %c0_36] : memref<9x3x128xf32, #tpu.memory_space<vmem>>, vector<1x3x128xf32>
    %40 = vector.shape_cast %39 : vector<1x3x128xf32> to vector<3x128xf32>
    %cst_37 = arith.constant dense<0.000000e+00> : vector<286x128xf32>
    %41 = tpu.matmul %38, %40, %cst_37 {dimension_numbers = #tpu.dot_dimension_numbers<[1], [0], [0], [1], [0, 0, 1, 1], [], []>} : vector<286x3xf32>, vector<3x128xf32>, vector<286x128xf32> -> vector<286x128xf32>
    %42 = arith.addf %36, %41 : vector<286x128xf32>
    %c0_38 = arith.constant 0 : index
    %c37 = arith.constant 37 : index
    %c0_39 = arith.constant 0 : index
    %43 = vector.load %arg1[%c0_38, %c37, %c0_39] : memref<1x324x3xf32, #tpu.memory_space<vmem>>, vector<1x286x3xf32>
    %44 = vector.shape_cast %43 : vector<1x286x3xf32> to vector<286x3xf32>
    %c7 = arith.constant 7 : index
    %c0_40 = arith.constant 0 : index
    %c0_41 = arith.constant 0 : index
    %45 = vector.load %arg2[%c7, %c0_40, %c0_41] : memref<9x3x128xf32, #tpu.memory_space<vmem>>, vector<1x3x128xf32>
    %46 = vector.shape_cast %45 : vector<1x3x128xf32> to vector<3x128xf32>
    %cst_42 = arith.constant dense<0.000000e+00> : vector<286x128xf32>
    %47 = tpu.matmul %44, %46, %cst_42 {dimension_numbers = #tpu.dot_dimension_numbers<[1], [0], [0], [1], [0, 0, 1, 1], [], []>} : vector<286x3xf32>, vector<3x128xf32>, vector<286x128xf32> -> vector<286x128xf32>
    %48 = arith.addf %42, %47 : vector<286x128xf32>
    %c0_43 = arith.constant 0 : index
    %c38 = arith.constant 38 : index
    %c0_44 = arith.constant 0 : index
    %49 = vector.load %arg1[%c0_43, %c38, %c0_44] : memref<1x324x3xf32, #tpu.memory_space<vmem>>, vector<1x286x3xf32>
    %50 = vector.shape_cast %49 : vector<1x286x3xf32> to vector<286x3xf32>
    %c8 = arith.constant 8 : index
    %c0_45 = arith.constant 0 : index
    %c0_46 = arith.constant 0 : index
    %51 = vector.load %arg2[%c8, %c0_45, %c0_46] : memref<9x3x128xf32, #tpu.memory_space<vmem>>, vector<1x3x128xf32>
    %52 = vector.shape_cast %51 : vector<1x3x128xf32> to vector<3x128xf32>
    %cst_47 = arith.constant dense<0.000000e+00> : vector<286x128xf32>
    %53 = tpu.matmul %50, %52, %cst_47 {dimension_numbers = #tpu.dot_dimension_numbers<[1], [0], [0], [1], [0, 0, 1, 1], [], []>} : vector<286x3xf32>, vector<3x128xf32>, vector<286x128xf32> -> vector<286x128xf32>
    %54 = arith.addf %48, %53 : vector<286x128xf32>
    %cst_48 = arith.constant 0.000000e+00 : f32
    %55 = vector.broadcast %cst_48 : f32 to vector<286x128xf32>
    %56 = arith.maximumf %54, %55 : vector<286x128xf32>
    %c0_49 = arith.constant 0 : index
    %c0_50 = arith.constant 0 : index
    %57 = vector.load %arg3[%c0_49, %c0_50] : memref<286x1xf32, #tpu.memory_space<vmem>>, vector<286x1xf32>
    %58 = vector.broadcast %57 : vector<286x1xf32> to vector<286x128xf32>
    %59 = arith.mulf %56, %58 : vector<286x128xf32>
    %cst_51 = arith.constant dense<0.000000e+00> : vector<128xf32>
    %60 = vector.multi_reduction <add>, %59, %cst_51 [0] : vector<286x128xf32> to vector<128xf32>
    %61 = vector.shape_cast %60 : vector<128xf32> to vector<1x128xf32>
    %cst_52 = arith.constant 3.906250e-03 : f32
    %62 = vector.broadcast %cst_52 : f32 to vector<1x128xf32>
    %63 = arith.mulf %61, %62 : vector<1x128xf32>
    %c0_53 = arith.constant 0 : index
    %c0_54 = arith.constant 0 : index
    %c0_55 = arith.constant 0 : index
    %64 = vector.load %arg4[%c0_53, %c0_54, %c0_55] : memref<1x1x128xf32, #tpu.memory_space<vmem>>, vector<1x1x128xf32>
    %65 = vector.shape_cast %64 : vector<1x1x128xf32> to vector<1x128xf32>
    %66 = vector.shape_cast %63 : vector<1x128xf32> to vector<1x1x128xf32>
    tpu.vector_store %arg4[%c0_53, %c0_54, %c0_55], %66 {strides = array<i32>} : memref<1x1x128xf32, #tpu.memory_space<vmem>>, vector<1x1x128xf32>,
    return
  }
  func.func @transform_0(%arg0: i32) -> (i32, i32, i32) {
    %c0_i32 = arith.constant 0 : i32
    %c0_i32_0 = arith.constant 0 : i32
    %c0_i32_1 = arith.constant 0 : i32
    return %arg0, %c0_i32, %c0_i32_0 : i32, i32, i32
  }
  func.func @transform_1(%arg0: i32) -> (i32, i32, i32) {
    %c0_i32 = arith.constant 0 : i32
    %c0_i32_0 = arith.constant 0 : i32
    %c0_i32_1 = arith.constant 0 : i32
    %c0_i32_2 = arith.constant 0 : i32
    return %c0_i32, %c0_i32_0, %c0_i32_1 : i32, i32, i32
  }
  func.func @transform_2(%arg0: i32) -> (i32, i32) {
    %c0_i32 = arith.constant 0 : i32
    %c0_i32_0 = arith.constant 0 : i32
    %c0_i32_1 = arith.constant 0 : i32
    return %c0_i32, %c0_i32_0 : i32, i32
  }
  func.func @transform_3(%arg0: i32) -> (i32, i32, i32) {
    %c0_i32 = arith.constant 0 : i32
    %c0_i32_0 = arith.constant 0 : i32
    %c0_i32_1 = arith.constant 0 : i32
    return %arg0, %c0_i32, %c0_i32_0 : i32, i32, i32
  }
}

</mosaic_0001>

<llo_original>
// kernel: tpu_custom_call.1
$region0: #{tpu_custom_call.1}
  #allocation0 [shape = 'u32[]', space=smem, size = 0x4, offset = 0x4, fixed_abs, tag = 'smem constant byte address 0x4 - core index']
  #allocation1 [shape = 'u32[144,128]{1,0:T(1,128)}', space=vmem, size = 0x12000, scoped, tag = 'internal scratch']
  %s0 = inlined_call_operand.vmem [shape: f32[2,324,3], index: 0, kind: input, shape index: {}]
  %s1 = inlined_call_operand.vmem [shape: f32[9,3,128], index: 1, kind: input, shape index: {}]
  %s2 = inlined_call_operand.vmem [shape: f32[286,1], index: 2, kind: input, shape index: {}]
  %s3 = inlined_call_operand.hbm [shape: f32[2,1,128], index: 3, kind: output, shape index: {}]
  %s4 = sld [smem:[#allocation0]]
  $region45: #{tpu_custom_call.1} parent=0
    _
  %s6 = ssub.s32 1, %s4
  %s7 = scalar_select 0, %s6, %s4
  $region1: #{tpu_custom_call.1} parent=0
    #allocation2 [shape = 'u8[1024]{0}', space=vmem, size = 0x400, scoped, tag = 'output window, operand 0']
    #allocation3 [shape = 's32[2]{0}', space=sflag, size = 0x8, scoped, tag = 'scoped memory for tpu_custom_call.1']
    %8 = vsyncpa [#allocation3], 0
    %s9 = scalar_lea.sflag [#allocation3], 1
    %10 = vsyncpa %s9, 0
    loop: start=0, step=1, limit=4
    $region2: #{tpu_custom_call.1} parent=1 // loop_pre_header
      _
    $region3: #{tpu_custom_call.1} parent=1 // loop_header
      %s12 = sphi 0, %s16
      %p13 = scmp.ge.s32.totalorder %s12, 4
      %s22 = sphi 0, %s24
      %s25 = sphi 0, %s22
      %s26 = sphi 0, %s25
      %s42 = sphi 0, %s26
      %s46 = sphi 0, %s46
      %s48 = sphi 0, %s46
      %s49 = sphi 0, %s48
      %s63 = sphi 0, %s49
      %s67 = sphi 0, %s67
      %s69 = sphi 0, %s67
      %s70 = sphi 0, %s69
      %s84 = sphi 0, %s70
      %s90 = sphi 0, %s92
      %s93 = sphi 0, %s90
      %s94 = sphi 0, %s93
      %s110 = sphi 0, %s94
    $region4: #{tpu_custom_call.1} parent=1 // loop_header_branch
      %15 = sbr.rel (%p13) target = $region8
    $region5: #{tpu_custom_call.1} parent=1 // loop_body
      %s17 = ssub.s32 %s12, 1
      %s18 = ssub.s32 %s12, 2
      %s19 = sadd.s32 %s12, 1
      %s20 = ssub.s32 %s12, %s19
      %p21 = scmp.eq.s32.totalorder %s20, 0
      %s23 = sadd.s32 %s22, 1
      %s24 = scalar_select %p21, %s22, %s23
      %p27 = pneg %p21
      %p28 = scmp.eq.s32.totalorder %s12, 1
      %p29 = por %p27, %p28
      %p30 = scmp.ne.s32.totalorder %s22, %s25
      %p31 = scmp.eq.s32.totalorder %s12, 0
      %p32 = por %p30, %p31
      %p33 = scmp.ne.s32.totalorder %s22, %s25
      %p34 = scmp.eq.s32.totalorder %s17, 1
      %p35 = por %p33, %p34
      %p36 = scmp.ne.s32.totalorder %s25, %s26
      %p37 = scmp.eq.s32.totalorder %s17, 0
      %p38 = por %p36, %p37
      %p39 = scmp.ne.s32.totalorder %s25, %s26
      %p40 = scmp.eq.s32.totalorder %s18, 1
      %p41 = por %p39, %p40
      %p43 = scmp.ne.s32.totalorder %s26, %s42
      %p44 = scmp.eq.s32.totalorder %s18, 0
      %p45 = por %p43, %p44
      %s47 = sadd.s32 %s46, 1
      %p50 = scmp.eq.s32.totalorder %s12, 1
      %p51 = scmp.ne.s32.totalorder %s46, %s48
      %p52 = scmp.eq.s32.totalorder %s12, 0
      %p53 = por %p51, %p52
      %p54 = scmp.ne.s32.totalorder %s46, %s48
      %p55 = scmp.eq.s32.totalorder %s17, 1
      %p56 = por %p54, %p55
      %p57 = scmp.ne.s32.totalorder %s48, %s49
      %p58 = scmp.eq.s32.totalorder %s17, 0
      %p59 = por %p57, %p58
      %p60 = scmp.ne.s32.totalorder %s48, %s49
      %p61 = scmp.eq.s32.totalorder %s18, 1
      %p62 = por %p60, %p61
      %p64 = scmp.ne.s32.totalorder %s49, %s63
      %p65 = scmp.eq.s32.totalorder %s18, 0
      %p66 = por %p64, %p65
      %s68 = sadd.s32 %s67, 1
      %p71 = scmp.eq.s32.totalorder %s12, 1
      %p72 = scmp.ne.s32.totalorder %s67, %s69
      %p73 = scmp.eq.s32.totalorder %s12, 0
      %p74 = por %p72, %p73
      %p75 = scmp.ne.s32.totalorder %s67, %s69
      %p76 = scmp.eq.s32.totalorder %s17, 1
      %p77 = por %p75, %p76
      %p78 = scmp.ne.s32.totalorder %s69, %s70
      %p79 = scmp.eq.s32.totalorder %s17, 0
      %p80 = por %p78, %p79
      %p81 = scmp.ne.s32.totalorder %s69, %s70
      %p82 = scmp.eq.s32.totalorder %s18, 1
      %p83 = por %p81, %p82
      %p85 = scmp.ne.s32.totalorder %s70, %s84
      %p86 = scmp.eq.s32.totalorder %s18, 0
      %p87 = por %p85, %p86
      %s88 = ssub.s32 %s12, %s19
      %p89 = scmp.eq.s32.totalorder %s88, 0
      %s91 = sadd.s32 %s90, 1
      %s92 = scalar_select %p89, %s90, %s91
      %p95 = pneg %p89
      %p96 = scmp.eq.s32.totalorder %s12, 1
      %p97 = por %p95, %p96
      %p98 = scmp.ne.s32.totalorder %s90, %s93
      %p99 = scmp.eq.s32.totalorder %s12, 0
      %p100 = por %p98, %p99
      %p101 = scmp.ne.s32.totalorder %s90, %s93
      %p102 = scmp.eq.s32.totalorder %s17, 1
      %p103 = por %p101, %p102
      %p104 = scmp.ne.s32.totalorder %s93, %s94
      %p105 = scmp.eq.s32.totalorder %s17, 0
      %p106 = por %p104, %p105
      %p107 = scmp.ne.s32.totalorder %s93, %s94
      %p108 = scmp.eq.s32.totalorder %s18, 1
      %p109 = por %p107, %p108
      %p111 = scmp.ne.s32.totalorder %s94, %s110
      %p112 = scmp.eq.s32.totalorder %s18, 0
      %p113 = por %p111, %p112
      %p114 = scmp.le.s32.totalorder 1, %s12
      %p115 = scmp.lt.s32.totalorder %s12, 3
      %p116 = pnand %p114, %p115
      %p117 = pneg %p116
      // Predicated region
      $region9: #{tpu_custom_call.1} parent=5 // pred_check
        _
      $region10: #{tpu_custom_call.1} parent=5 // pred_check_branch
        %119 = sbr.rel (%p116) target = $region12
      $region11: #{tpu_custom_call.1} parent=5 // pred_region
        %s120 = ssub.s32 %s12, 1
        // Predicated region
        $region13: #{tpu_custom_call.1} parent=11 // pred_check
          %p121 = pneg %p59
        $region14: #{tpu_custom_call.1} parent=11 // pred_check_branch
          %123 = sbr.rel (%p121) target = $region16
        $region15: #{tpu_custom_call.1} parent=11 // pred_region
          _
        $region16: #{tpu_custom_call.1} parent=11 // pred_fallthru
          _
        // Predicated region
        $region17: #{tpu_custom_call.1} parent=11 // pred_check
          %p124 = pneg %p80
        $region18: #{tpu_custom_call.1} parent=11 // pred_check_branch
          %126 = sbr.rel (%p124) target = $region20
        $region19: #{tpu_custom_call.1} parent=11 // pred_region
          _
        $region20: #{tpu_custom_call.1} parent=11 // pred_fallthru
          _
      $region12: #{tpu_custom_call.1} parent=5 // pred_fallthru
        _
      %p127 = scmp.lt.s32.totalorder %s12, 2
      // Predicated region
      $region21: #{tpu_custom_call.1} parent=5 // pred_check
        %p128 = pneg %p127
      $region22: #{tpu_custom_call.1} parent=5 // pred_check_branch
        %130 = sbr.rel (%p128) target = $region24
      $region23: #{tpu_custom_call.1} parent=5 // pred_region
        // Predicated region
        $region25: #{tpu_custom_call.1} parent=23 // pred_check
          %p131 = pneg %p32
        $region26: #{tpu_custom_call.1} parent=23 // pred_check_branch
          %133 = sbr.rel (%p131) target = $region28
        $region27: #{tpu_custom_call.1} parent=23 // pred_region
          %p134 = scmp.lt.s32.totalorder %s12, 1
          %s135 = scalar_select %p134, %s12, 1
          %s136 = smul.addr %s135, 41
          %s137 = smul.addr %s136, 8
          %s138 = scalar_lea.vmem %s0, %s137
        $region28: #{tpu_custom_call.1} parent=23 // pred_fallthru
          _
      $region24: #{tpu_custom_call.1} parent=5 // pred_fallthru
        _
      %p139 = scmp.le.s32.totalorder 1, %s12
      %p140 = scmp.lt.s32.totalorder %s12, 3
      %p141 = pnand %p139, %p140
      %p142 = pneg %p141
      // Predicated region
      $region29: #{tpu_custom_call.1} parent=5 // pred_check
        _
      $region30: #{tpu_custom_call.1} parent=5 // pred_check_branch
        %144 = sbr.rel (%p141) target = $region32
      $region31: #{tpu_custom_call.1} parent=5 // pred_region
        %s145 = ssub.s32 %s12, 1
        %p146 = scmp.lt.s32.totalorder %s17, 1
        %s147 = scalar_select %p146, %s17, 1
        %s148 = smul.addr %s147, 41
        %s149 = smul.addr %s148, 8
        %s150 = scalar_lea.vmem %s0, %s149
        %p151 = pneg %p38
        %p152 = pneg %p35
        %p153 = pneg %p59
        %p154 = pneg %p56
        %p155 = pneg %p80
        %p156 = pneg %p77
        %p157 = pneg %p106
        %p158 = pneg %p103
        %s159 = sand.u32 %s93, 1
        %s160 = scalar_lea.sflag [#allocation3], %s159
        %s161 = sand.u32 %s93, 1
        %s162 = scalar_lea.vmem [#allocation2], %s161
        %p163 = scmp.lt.s32.totalorder %s17, 1
        %s164 = scalar_select %p163, %s17, 1
        %s165 = smul.addr %s164, 41
        %s166 = smul.addr %s165, 8
        %s167 = scalar_lea.vmem %s0, %s166
        %v168 = vld [vmem:[%s167] sm:$0xff]
        %v169 = vld [vmem:[%s167 + $0x8] sm:$0xff]
        %v170 = vld [vmem:[%s167 + $0x10] sm:$0xff]
        %v171 = vld [vmem:[%s167 + $0x18] sm:$0xff]
        %v172 = vld [vmem:[%s167 + $0x20] sm:$0xff]
        %v173 = vld [vmem:[%s167 + $0x28] sm:$0xff]
        %v174 = vld [vmem:[%s167 + $0x30] sm:$0xff]
        %v175 = vld [vmem:[%s167 + $0x38] sm:$0xff]
        %v176 = vld [vmem:[%s167 + $0x40] sm:$0xff]
        %v177 = vld [vmem:[%s167 + $0x48] sm:$0xff]
        %v178 = vld [vmem:[%s167 + $0x50] sm:$0xff]
        %v179 = vld [vmem:[%s167 + $0x58] sm:$0xff]
        %v180 = vld [vmem:[%s167 + $0x60] sm:$0xff]
        %v181 = vld [vmem:[%s167 + $0x68] sm:$0xff]
        %v182 = vld [vmem:[%s167 + $0x70] sm:$0xff]
        %v183 = vld [vmem:[%s167 + $0x78] sm:$0xff]
        %v184 = vld [vmem:[%s167 + $0x80] sm:$0xff]
        %v185 = vld [vmem:[%s167 + $0x88] sm:$0xff]
        %v186 = vld [vmem:[%s167 + $0x90] sm:$0xff]
        %v187 = vld [vmem:[%s167 + $0x98] sm:$0xff]
        %v188 = vld [vmem:[%s167 + $0xa0] sm:$0xff]
        %v189 = vld [vmem:[%s167 + $0xa8] sm:$0xff]
        %v190 = vld [vmem:[%s167 + $0xb0] sm:$0xff]
        %v191 = vld [vmem:[%s167 + $0xb8] sm:$0xff]
        %v192 = vld [vmem:[%s167 + $0xc0] sm:$0xff]
        %v193 = vld [vmem:[%s167 + $0xc8] sm:$0xff]
        %v194 = vld [vmem:[%s167 + $0xd0] sm:$0xff]
        %v195 = vld [vmem:[%s167 + $0xd8] sm:$0xff]
        %v196 = vld [vmem:[%s167 + $0xe0] sm:$0xff]
        %v197 = vld [vmem:[%s167 + $0xe8] sm:$0xff]
        %v198 = vld [vmem:[%s167 + $0xf0] sm:$0xff]
        %v199 = vld [vmem:[%s167 + $0xf8] sm:$0xff]
        %v200 = vld [vmem:[%s167 + $0x100] sm:$0xff]
        %v201 = vld [vmem:[%s167 + $0x108] sm:$0xff]
        %v202 = vld [vmem:[%s167 + $0x110] sm:$0xff]
        %v203 = vld [vmem:[%s167 + $0x118] sm:$0x3f]
        %v204 = vld [vmem:[%s1] sm:$0x7]
        %v205 = vld [vmem:[%s167 + $0x1] sm:$0xff]
        %v206 = vld [vmem:[%s167 + $0x9] sm:$0xff]
        %v207 = vld [vmem:[%s167 + $0x11] sm:$0xff]
        %v208 = vld [vmem:[%s167 + $0x19] sm:$0xff]
        %v209 = vld [vmem:[%s167 + $0x21] sm:$0xff]
        %v210 = vld [vmem:[%s167 + $0x29] sm:$0xff]
        %v211 = vld [vmem:[%s167 + $0x31] sm:$0xff]
        %v212 = vld [vmem:[%s167 + $0x39] sm:$0xff]
        %v213 = vld [vmem:[%s167 + $0x41] sm:$0xff]
        %v214 = vld [vmem:[%s167 + $0x49] sm:$0xff]
        %v215 = vld [vmem:[%s167 + $0x51] sm:$0xff]
        %v216 = vld [vmem:[%s167 + $0x59] sm:$0xff]
        %v217 = vld [vmem:[%s167 + $0x61] sm:$0xff]
        %v218 = vld [vmem:[%s167 + $0x69] sm:$0xff]
        %v219 = vld [vmem:[%s167 + $0x71] sm:$0xff]
        %v220 = vld [vmem:[%s167 + $0x79] sm:$0xff]
        %v221 = vld [vmem:[%s167 + $0x81] sm:$0xff]
        %v222 = vld [vmem:[%s167 + $0x89] sm:$0xff]
        %v223 = vld [vmem:[%s167 + $0x91] sm:$0xff]
        %v224 = vld [vmem:[%s167 + $0x99] sm:$0xff]
        %v225 = vld [vmem:[%s167 + $0xa1] sm:$0xff]
        %v226 = vld [vmem:[%s167 + $0xa9] sm:$0xff]
        %v227 = vld [vmem:[%s167 + $0xb1] sm:$0xff]
        %v228 = vld [vmem:[%s167 + $0xb9] sm:$0xff]
        %v229 = vld [vmem:[%s167 + $0xc1] sm:$0xff]
        %v230 = vld [vmem:[%s167 + $0xc9] sm:$0xff]
        %v231 = vld [vmem:[%s167 + $0xd1] sm:$0xff]
        %v232 = vld [vmem:[%s167 + $0xd9] sm:$0xff]
        %v233 = vld [vmem:[%s167 + $0xe1] sm:$0xff]
        %v234 = vld [vmem:[%s167 + $0xe9] sm:$0xff]
        %v235 = vld [vmem:[%s167 + $0xf1] sm:$0xff]
        %v236 = vld [vmem:[%s167 + $0xf9] sm:$0xff]
        %v237 = vld [vmem:[%s167 + $0x101] sm:$0xff]
        %v238 = vld [vmem:[%s167 + $0x109] sm:$0xff]
        %v239 = vld [vmem:[%s167 + $0x111] sm:$0xff]
        %v240 = vld [vmem:[%s167 + $0x119] sm:$0x3f]
        %s241 = scalar_lea.vmem %s1, 4
        %v242 = vld [vmem:[%s241] sm:$0x7]
        %vm243 = vcmask 23552
        %v245 = vsel %vm243, %v205, 0
        %v248 = vsel %vm243, %v206, 0
        %v251 = vsel %vm243, %v207, 0
        %v254 = vsel %vm243, %v208, 0
        %v257 = vsel %vm243, %v209, 0
        %v260 = vsel %vm243, %v210, 0
        %v263 = vsel %vm243, %v211, 0
        %v266 = vsel %vm243, %v212, 0
        %v269 = vsel %vm243, %v213, 0
        %v272 = vsel %vm243, %v214, 0
        %v275 = vsel %vm243, %v215, 0
        %v278 = vsel %vm243, %v216, 0
        %v281 = vsel %vm243, %v217, 0
        %v284 = vsel %vm243, %v218, 0
        %v287 = vsel %vm243, %v219, 0
        %v290 = vsel %vm243, %v220, 0
        %v293 = vsel %vm243, %v221, 0
        %v296 = vsel %vm243, %v222, 0
        %v299 = vsel %vm243, %v223, 0
        %v302 = vsel %vm243, %v224, 0
        %v305 = vsel %vm243, %v225, 0
        %v308 = vsel %vm243, %v226, 0
        %v311 = vsel %vm243, %v227, 0
        %v314 = vsel %vm243, %v228, 0
        %v317 = vsel %vm243, %v229, 0
        %v320 = vsel %vm243, %v230, 0
        %v323 = vsel %vm243, %v231, 0
        %v326 = vsel %vm243, %v232, 0
        %v329 = vsel %vm243, %v233, 0
        %v332 = vsel %vm243, %v234, 0
        %v335 = vsel %vm243, %v235, 0
        %v338 = vsel %vm243, %v236, 0
        %v341 = vsel %vm243, %v237, 0
        %v344 = vsel %vm243, %v238, 0
        %v347 = vsel %vm243, %v239, 0
        %v350 = vsel %vm243, %v240, 0
        %vm352 = vcmask 1042432
        %v354 = vsel %vm352, %v242, 0
        %356 = vmatprep.subr.mxu0 0.0
        %357 = vmatpush1.msra.mxu0 %v354
        %358 = vmatprep.subr.mxu0 0.0
        %359 = vmatpush1.msra.mxu0 0.0
        %360 = vmatprep.subr.mxu0 0.0
        %361 = vmatpush1.msra.mxu0 0.0
        %362 = vmatprep.subr.mxu0 0.0
        %363 = vmatpush1.msra.mxu0 0.0
        %364 = vmatprep.subr.mxu0 0.0
        %365 = vmatpush1.msra.mxu0 0.0
        %366 = vmatprep.subr.mxu0 0.0
        %367 = vmatpush1.msra.mxu0 0.0
        %368 = vmatprep.subr.mxu0 0.0
        %369 = vmatpush1.msra.mxu0 0.0
        %370 = vmatprep.subr.mxu0 0.0
        %371 = vmatpush1.msra.mxu0 0.0
        %372 = vmatprep.subr.mxu0 0.0
        %373 = vmatpush1.msra.mxu0 0.0
        %374 = vmatprep.subr.mxu0 0.0
        %375 = vmatpush1.msra.mxu0 0.0
        %376 = vmatprep.subr.mxu0 0.0
        %377 = vmatpush1.msra.mxu0 0.0
        %378 = vmatprep.subr.mxu0 0.0
        %379 = vmatpush1.msra.mxu0 0.0
        %380 = vmatprep.subr.mxu0 0.0
        %381 = vmatpush1.msra.mxu0 0.0
        %382 = vmatprep.subr.mxu0 0.0
        %383 = vmatpush1.msra.mxu0 0.0
        %384 = vmatprep.subr.mxu0 0.0
        %385 = vmatpush1.msra.mxu0 0.0
        %386 = vmatprep.subr.mxu0 0.0
        %387 = vmatpush1.msra.mxu0 0.0
        %388 = vmatprep.subr.mxu0 0.0
        %389 = vmatpush1.msra.mxu0 0.0
        %390 = vmatprep.subr.mxu0 0.0
        %391 = vmatpush1.msra.mxu0 0.0
        %392 = vmatprep.subr.mxu0 0.0
        %393 = vmatpush1.msra.mxu0 0.0
        %394 = vmatprep.subr.mxu0 0.0
        %395 = vmatpush1.msra.mxu0 0.0
        %396 = vmatprep.subr.mxu0 0.0
        %397 = vmatpush1.msra.mxu0 0.0
        %398 = vmatprep.subr.mxu0 0.0
        %399 = vmatpush1.msra.mxu0 0.0
        %400 = vmatprep.subr.mxu0 0.0
        %401 = vmatpush1.msra.mxu0 0.0
        %402 = vmatprep.subr.mxu0 0.0
        %403 = vmatpush1.msra.mxu0 0.0
        %404 = vmatprep.subr.mxu0 0.0
        %405 = vmatpush1.msra.mxu0 0.0
        %406 = vmatprep.subr.mxu0 0.0
        %407 = vmatpush1.msra.mxu0 0.0
        %408 = vmatprep.subr.mxu0 0.0
        %409 = vmatpush1.msra.mxu0 0.0
        %410 = vmatprep.subr.mxu0 0.0
        %411 = vmatpush1.msra.mxu0 0.0
        %412 = vmatprep.subr.mxu0 0.0
        %413 = vmatpush1.msra.mxu0 0.0
        %414 = vmatprep.subr.mxu0 0.0
        %415 = vmatpush1.msra.mxu0 0.0
        %416 = vmatprep.subr.mxu0 0.0
        %417 = vmatpush1.msra.mxu0 0.0
        %418 = vmatprep.subr.mxu0 0.0
        %419 = vmatpush1.msra.mxu0 0.0
        %420 = vmatprep.mubr.f32.mxu0 0.0
        %421 = vmatmul.mubr.f32.gmra.mrb[0].mxu0 %v245
        %v422 = vpop.f32.mrb[0].mxu0
        %v423 = vadd.f32 0.0, %v422
        %v424 = vpop.f32.mrb[0].mxu0
        %425 = vmatprep.mubr.f32.mxu0 0.0
        %426 = vmatmul.mubr.f32.gmra.mrb[0].mxu0 %v248
        %v427 = vpop.f32.mrb[0].mxu0
        %v428 = vadd.f32 0.0, %v427
        %v429 = vpop.f32.mrb[0].mxu0
        %430 = vmatprep.mubr.f32.mxu0 0.0
        %431 = vmatmul.mubr.f32.gmra.mrb[0].mxu0 %v251
        %v432 = vpop.f32.mrb[0].mxu0
        %v433 = vadd.f32 0.0, %v432
        %v434 = vpop.f32.mrb[0].mxu0
        %435 = vmatprep.mubr.f32.mxu0 0.0
        %436 = vmatmul.mubr.f32.gmra.mrb[0].mxu0 %v254
        %v437 = vpop.f32.mrb[0].mxu0
        %v438 = vadd.f32 0.0, %v437
        %v439 = vpop.f32.mrb[0].mxu0
        %440 = vmatprep.mubr.f32.mxu0 0.0
        %441 = vmatmul.mubr.f32.gmra.mrb[0].mxu0 %v257
        %v442 = vpop.f32.mrb[0].mxu0
        %v443 = vadd.f32 0.0, %v442
        %v444 = vpop.f32.mrb[0].mxu0
        %445 = vmatprep.mubr.f32.mxu0 0.0
        %446 = vmatmul.mubr.f32.gmra.mrb[0].mxu0 %v260
        %v447 = vpop.f32.mrb[0].mxu0
        %v448 = vadd.f32 0.0, %v447
        %v449 = vpop.f32.mrb[0].mxu0
        %450 = vmatprep.mubr.f32.mxu0 0.0
        %451 = vmatmul.mubr.f32.gmra.mrb[0].mxu0 %v263
        %v452 = vpop.f32.mrb[0].mxu0
        %v453 = vadd.f32 0.0, %v452
        %v454 = vpop.f32.mrb[0].mxu0
        %455 = vmatprep.mubr.f32.mxu0 0.0
        %456 = vmatmul.mubr.f32.gmra.mrb[0].mxu0 %v266
        %v457 = vpop.f32.mrb[0].mxu0
        %v458 = vadd.f32 0.0, %v457
        %v459 = vpop.f32.mrb[0].mxu0
        %460 = vmatprep.mubr.f32.mxu0 0.0
        %461 = vmatmul.mubr.f32.gmra.mrb[0].mxu0 %v269
        %v462 = vpop.f32.mrb[0].mxu0
        %v463 = vadd.f32 0.0, %v462
        %v464 = vpop.f32.mrb[0].mxu0
        %465 = vmatprep.mubr.f32.mxu0 0.0
        %466 = vmatmul.mubr.f32.gmra.mrb[0].mxu0 %v272
        %v467 = vpop.f32.mrb[0].mxu0
        %v468 = vadd.f32 0.0, %v467
        %v469 = vpop.f32.mrb[0].mxu0
        %470 = vmatprep.mubr.f32.mxu0 0.0
        %471 = vmatmul.mubr.f32.gmra.mrb[0].mxu0 %v275
        %v472 = vpop.f32.mrb[0].mxu0
        %v473 = vadd.f32 0.0, %v472
        %v474 = vpop.f32.mrb[0].mxu0
        %475 = vmatprep.mubr.f32.mxu0 0.0
        %476 = vmatmul.mubr.f32.gmra.mrb[0].mxu0 %v278
        %v477 = vpop.f32.mrb[0].mxu0
        %v478 = vadd.f32 0.0, %v477
        %v479 = vpop.f32.mrb[0].mxu0
        %480 = vmatprep.mubr.f32.mxu0 0.0
        %481 = vmatmul.mubr.f32.gmra.mrb[0].mxu0 %v281
        %v482 = vpop.f32.mrb[0].mxu0
        %v483 = vadd.f32 0.0, %v482
        %v484 = vpop.f32.mrb[0].mxu0
        %485 = vmatprep.mubr.f32.mxu0 0.0
        %486 = vmatmul.mubr.f32.gmra.mrb[0].mxu0 %v284
        %v487 = vpop.f32.mrb[0].mxu0
        %v488 = vadd.f32 0.0, %v487
        %v489 = vpop.f32.mrb[0].mxu0
        %490 = vmatprep.mubr.f32.mxu0 0.0
        %491 = vmatmul.mubr.f32.gmra.mrb[0].mxu0 %v287
        %v492 = vpop.f32.mrb[0].mxu0
        %v493 = vadd.f32 0.0, %v492
        %v494 = vpop.f32.mrb[0].mxu0
        %495 = vmatprep.mubr.f32.mxu0 0.0
        %496 = vmatmul.mubr.f32.gmra.mrb[0].mxu0 %v290
        %v497 = vpop.f32.mrb[0].mxu0
        %v498 = vadd.f32 0.0, %v497
        %v499 = vpop.f32.mrb[0].mxu0
        %500 = vmatprep.mubr.f32.mxu0 0.0
        %501 = vmatmul.mubr.f32.gmra.mrb[0].mxu0 %v293
        %v502 = vpop.f32.mrb[0].mxu0
        %v503 = vadd.f32 0.0, %v502
        %v504 = vpop.f32.mrb[0].mxu0
        %505 = vmatprep.mubr.f32.mxu0 0.0
        %506 = vmatmul.mubr.f32.gmra.mrb[0].mxu0 %v296
        %v507 = vpop.f32.mrb[0].mxu0
        %v508 = vadd.f32 0.0, %v507
        %v509 = vpop.f32.mrb[0].mxu0
        %510 = vmatprep.mubr.f32.mxu0 0.0
        %511 = vmatmul.mubr.f32.gmra.mrb[0].mxu0 %v299
        %v512 = vpop.f32.mrb[0].mxu0
        %v513 = vadd.f32 0.0, %v512
        %v514 = vpop.f32.mrb[0].mxu0
        %515 = vmatprep.mubr.f32.mxu0 0.0
        %516 = vmatmul.mubr.f32.gmra.mrb[0].mxu0 %v302
        %v517 = vpop.f32.mrb[0].mxu0
        %v518 = vadd.f32 0.0, %v517
        %v519 = vpop.f32.mrb[0].mxu0
        %520 = vmatprep.mubr.f32.mxu0 0.0
        %521 = vmatmul.mubr.f32.gmra.mrb[0].mxu0 %v305
        %v522 = vpop.f32.mrb[0].mxu0
        %v523 = vadd.f32 0.0, %v522
        %v524 = vpop.f32.mrb[0].mxu0
        %525 = vmatprep.mubr.f32.mxu0 0.0
        %526 = vmatmul.mubr.f32.gmra.mrb[0].mxu0 %v308
        %v527 = vpop.f32.mrb[0].mxu0
        %v528 = vadd.f32 0.0, %v527
        %v529 = vpop.f32.mrb[0].mxu0
        %530 = vmatprep.mubr.f32.mxu0 0.0
        %531 = vmatmul.mubr.f32.gmra.mrb[0].mxu0 %v311
        %v532 = vpop.f32.mrb[0].mxu0
        %v533 = vadd.f32 0.0, %v532
        %v534 = vpop.f32.mrb[0].mxu0
        %535 = vmatprep.mubr.f32.mxu0 0.0
        %536 = vmatmul.mubr.f32.gmra.mrb[0].mxu0 %v314
        %v537 = vpop.f32.mrb[0].mxu0
        %v538 = vadd.f32 0.0, %v537
        %v539 = vpop.f32.mrb[0].mxu0
        %540 = vmatprep.mubr.f32.mxu0 0.0
        %541 = vmatmul.mubr.f32.gmra.mrb[0].mxu0 %v317
        %v542 = vpop.f32.mrb[0].mxu0
        %v543 = vadd.f32 0.0, %v542
        %v544 = vpop.f32.mrb[0].mxu0
        %545 = vmatprep.mubr.f32.mxu0 0.0
        %546 = vmatmul.mubr.f32.gmra.mrb[0].mxu0 %v320
        %v547 = vpop.f32.mrb[0].mxu0
        %v548 = vadd.f32 0.0, %v547
        %v549 = vpop.f32.mrb[0].mxu0
        %550 = vmatprep.mubr.f32.mxu0 0.0
        %551 = vmatmul.mubr.f32.gmra.mrb[0].mxu0 %v323
        %v552 = vpop.f32.mrb[0].mxu0
        %v553 = vadd.f32 0.0, %v552
        %v554 = vpop.f32.mrb[0].mxu0
        %555 = vmatprep.mubr.f32.mxu0 0.0
        %556 = vmatmul.mubr.f32.gmra.mrb[0].mxu0 %v326
        %v557 = vpop.f32.mrb[0].mxu0
        %v558 = vadd.f32 0.0, %v557
        %v559 = vpop.f32.mrb[0].mxu0
        %560 = vmatprep.mubr.f32.mxu0 0.0
        %561 = vmatmul.mubr.f32.gmra.mrb[0].mxu0 %v329
        %v562 = vpop.f32.mrb[0].mxu0
        %v563 = vadd.f32 0.0, %v562
        %v564 = vpop.f32.mrb[0].mxu0
        %565 = vmatprep.mubr.f32.mxu0 0.0
        %566 = vmatmul.mubr.f32.gmra.mrb[0].mxu0 %v332
        %v567 = vpop.f32.mrb[0].mxu0
        %v568 = vadd.f32 0.0, %v567
        %v569 = vpop.f32.mrb[0].mxu0
        %570 = vmatprep.mubr.f32.mxu0 0.0
        %571 = vmatmul.mubr.f32.gmra.mrb[0].mxu0 %v335
        %v572 = vpop.f32.mrb[0].mxu0
        %v573 = vadd.f32 0.0, %v572
        %v574 = vpop.f32.mrb[0].mxu0
        %575 = vmatprep.mubr.f32.mxu0 0.0
        %576 = vmatmul.mubr.f32.gmra.mrb[0].mxu0 %v338
        %v577 = vpop.f32.mrb[0].mxu0
        %v578 = vadd.f32 0.0, %v577
        %v579 = vpop.f32.mrb[0].mxu0
        %580 = vmatprep.mubr.f32.mxu0 0.0
        %581 = vmatmul.mubr.f32.gmra.mrb[0].mxu0 %v341
        %v582 = vpop.f32.mrb[0].mxu0
        %v583 = vadd.f32 0.0, %v582
        %v584 = vpop.f32.mrb[0].mxu0
        %585 = vmatprep.mubr.f32.mxu0 0.0
        %586 = vmatmul.mubr.f32.gmra.mrb[0].mxu0 %v344
        %v587 = vpop.f32.mrb[0].mxu0
        %v588 = vadd.f32 0.0, %v587
        %v589 = vpop.f32.mrb[0].mxu0
        %590 = vmatprep.mubr.f32.mxu0 0.0
        %591 = vmatmul.mubr.f32.gmra.mrb[0].mxu0 %v347
        %v592 = vpop.f32.mrb[0].mxu0
        %v593 = vadd.f32 0.0, %v592
        %v594 = vpop.f32.mrb[0].mxu0
        %595 = vmatprep.mubr.f32.mxu0 0.0
        %596 = vmatmul.mubr.f32.gmra.mrb[0].mxu0 %v350
        %v597 = vpop.f32.mrb[0].mxu0
        %v598 = vadd.f32 0.0, %v597
        %v599 = vpop.f32.mrb[0].mxu0
        %600 = vdwg.mxu0
        %v602 = vsel %vm243, %v168, 0
        %v605 = vsel %vm243, %v169, 0
        %v608 = vsel %vm243, %v170, 0
        %v611 = vsel %vm243, %v171, 0
        %v614 = vsel %vm243, %v172, 0
        %v617 = vsel %vm243, %v173, 0
        %v620 = vsel %vm243, %v174, 0
        %v623 = vsel %vm243, %v175, 0
        %v626 = vsel %vm243, %v176, 0
        %v629 = vsel %vm243, %v177, 0
        %v632 = vsel %vm243, %v178, 0
        %v635 = vsel %vm243, %v179, 0
        %v638 = vsel %vm243, %v180, 0
        %v641 = vsel %vm243, %v181, 0
        %v644 = vsel %vm243, %v182, 0
        %v647 = vsel %vm243, %v183, 0
        %v650 = vsel %vm243, %v184, 0
        %v653 = vsel %vm243, %v185, 0
        %v656 = vsel %vm243, %v186, 0
        %v659 = vsel %vm243, %v187, 0
        %v662 = vsel %vm243, %v188, 0
        %v665 = vsel %vm243, %v189, 0
        %v668 = vsel %vm243, %v190, 0
        %v671 = vsel %vm243, %v191, 0
        %v674 = vsel %vm243, %v192, 0
        %v677 = vsel %vm243, %v193, 0
        %v680 = vsel %vm243, %v194, 0
        %v683 = vsel %vm243, %v195, 0
        %v686 = vsel %vm243, %v196, 0
        %v689 = vsel %vm243, %v197, 0
        %v692 = vsel %vm243, %v198, 0
        %v695 = vsel %vm243, %v199, 0
        %v698 = vsel %vm243, %v200, 0
        %v701 = vsel %vm243, %v201, 0
        %v704 = vsel %vm243, %v202, 0
        %v707 = vsel %vm243, %v203, 0
        %v710 = vsel %vm352, %v204, 0
        %712 = vmatprep.subr.mxu0 0.0
        %713 = vmatpush1.msra.mxu0 %v710
        %714 = vmatprep.subr.mxu0 0.0
        %715 = vmatpush1.msra.mxu0 0.0
        %716 = vmatprep.subr.mxu0 0.0
        %717 = vmatpush1.msra.mxu0 0.0
        %718 = vmatprep.subr.mxu0 0.0
        %719 = vmatpush1.msra.mxu0 0.0
        %720 = vmatprep.subr.mxu0 0.0
        %721 = vmatpush1.msra.mxu0 0.0
        %722 = vmatprep.subr.mxu0 0.0
        %723 = vmatpush1.msra.mxu0 0.0
        %724 = vmatprep.subr.mxu0 0.0
        %725 = vmatpush1.msra.mxu0 0.0
        %726 = vmatprep.subr.mxu0 0.0
        %727 = vmatpush1.msra.mxu0 0.0
        %728 = vmatprep.subr.mxu0 0.0
        %729 = vmatpush1.msra.mxu0 0.0
        %730 = vmatprep.subr.mxu0 0.0
        %731 = vmatpush1.msra.mxu0 0.0
        %732 = vmatprep.subr.mxu0 0.0
        %733 = vmatpush1.msra.mxu0 0.0
        %734 = vmatprep.subr.mxu0 0.0
        %735 = vmatpush1.msra.mxu0 0.0
        %736 = vmatprep.subr.mxu0 0.0
        %737 = vmatpush1.msra.mxu0 0.0
        %738 = vmatprep.subr.mxu0 0.0
        %739 = vmatpush1.msra.mxu0 0.0
        %740 = vmatprep.subr.mxu0 0.0
        %741 = vmatpush1.msra.mxu0 0.0
        %742 = vmatprep.subr.mxu0 0.0
        %743 = vmatpush1.msra.mxu0 0.0
        %744 = vmatprep.subr.mxu0 0.0
        %745 = vmatpush1.msra.mxu0 0.0
        %746 = vmatprep.subr.mxu0 0.0
        %747 = vmatpush1.msra.mxu0 0.0
        %748 = vmatprep.subr.mxu0 0.0
        %749 = vmatpush1.msra.mxu0 0.0
        %750 = vmatprep.subr.mxu0 0.0
        %751 = vmatpush1.msra.mxu0 0.0
        %752 = vmatprep.subr.mxu0 0.0
        %753 = vmatpush1.msra.mxu0 0.0
        %754 = vmatprep.subr.mxu0 0.0
        %755 = vmatpush1.msra.mxu0 0.0
        %756 = vmatprep.subr.mxu0 0.0
        %757 = vmatpush1.msra.mxu0 0.0
        %758 = vmatprep.subr.mxu0 0.0
        %759 = vmatpush1.msra.mxu0 0.0
        %760 = vmatprep.subr.mxu0 0.0
        %761 = vmatpush1.msra.mxu0 0.0
        %762 = vmatprep.subr.mxu0 0.0
        %763 = vmatpush1.msra.mxu0 0.0
        %764 = vmatprep.subr.mxu0 0.0
        %765 = vmatpush1.msra.mxu0 0.0
        %766 = vmatprep.subr.mxu0 0.0
        %767 = vmatpush1.msra.mxu0 0.0
        %768 = vmatprep.subr.mxu0 0.0
        %769 = vmatpush1.msra.mxu0 0.0
        %770 = vmatprep.subr.mxu0 0.0
        %771 = vmatpush1.msra.mxu0 0.0
        %772 = vmatprep.subr.mxu0 0.0
        %773 = vmatpush1.msra.mxu0 0.0
        %774 = vmatprep.subr.mxu0 0.0
        %775 = vmatpush1.msra.mxu0 0.0
        %776 = vmatprep.mubr.f32.mxu0 0.0
        %777 = vmatmul.mubr.f32.gmra.mrb[0].mxu0 %v602
        %v778 = vpop.f32.mrb[0].mxu0
        %v779 = vadd.f32 %v423, %v778
        %v780 = vpop.f32.mrb[0].mxu0
        %781 = vmatprep.mubr.f32.mxu0 0.0
        %782 = vmatmul.mubr.f32.gmra.mrb[0].mxu0 %v605
        %v783 = vpop.f32.mrb[0].mxu0
        %v784 = vadd.f32 %v428, %v783
        %v785 = vpop.f32.mrb[0].mxu0
        %786 = vmatprep.mubr.f32.mxu0 0.0
        %787 = vmatmul.mubr.f32.gmra.mrb[0].mxu0 %v608
        %v788 = vpop.f32.mrb[0].mxu0
        %v789 = vadd.f32 %v433, %v788
        %v790 = vpop.f32.mrb[0].mxu0
        %791 = vmatprep.mubr.f32.mxu0 0.0
        %792 = vmatmul.mubr.f32.gmra.mrb[0].mxu0 %v611
        %v793 = vpop.f32.mrb[0].mxu0
        %v794 = vadd.f32 %v438, %v793
        %v795 = vpop.f32.mrb[0].mxu0
        %796 = vmatprep.mubr.f32.mxu0 0.0
        %797 = vmatmul.mubr.f32.gmra.mrb[0].mxu0 %v614
        %v798 = vpop.f32.mrb[0].mxu0
        %v799 = vadd.f32 %v443, %v798
        %v800 = vpop.f32.mrb[0].mxu0
        %801 = vmatprep.mubr.f32.mxu0 0.0
        %802 = vmatmul.mubr.f32.gmra.mrb[0].mxu0 %v617
        %v803 = vpop.f32.mrb[0].mxu0
        %v804 = vadd.f32 %v448, %v803
        %v805 = vpop.f32.mrb[0].mxu0
        %806 = vmatprep.mubr.f32.mxu0 0.0
        %807 = vmatmul.mubr.f32.gmra.mrb[0].mxu0 %v620
        %v808 = vpop.f32.mrb[0].mxu0
        %v809 = vadd.f32 %v453, %v808
        %v810 = vpop.f32.mrb[0].mxu0
        %811 = vmatprep.mubr.f32.mxu0 0.0
        %812 = vmatmul.mubr.f32.gmra.mrb[0].mxu0 %v623
        %v813 = vpop.f32.mrb[0].mxu0
        %v814 = vadd.f32 %v458, %v813
        %v815 = vpop.f32.mrb[0].mxu0
        %816 = vmatprep.mubr.f32.mxu0 0.0
        %817 = vmatmul.mubr.f32.gmra.mrb[0].mxu0 %v626
        %v818 = vpop.f32.mrb[0].mxu0
        %v819 = vadd.f32 %v463, %v818
        %v820 = vpop.f32.mrb[0].mxu0
        %821 = vmatprep.mubr.f32.mxu0 0.0
        %822 = vmatmul.mubr.f32.gmra.mrb[0].mxu0 %v629
        %v823 = vpop.f32.mrb[0].mxu0
        %v824 = vadd.f32 %v468, %v823
        %v825 = vpop.f32.mrb[0].mxu0
        %826 = vmatprep.mubr.f32.mxu0 0.0
        %827 = vmatmul.mubr.f32.gmra.mrb[0].mxu0 %v632
        %v828 = vpop.f32.mrb[0].mxu0
        %v829 = vadd.f32 %v473, %v828
        %v830 = vpop.f32.mrb[0].mxu0
        %831 = vmatprep.mubr.f32.mxu0 0.0
        %832 = vmatmul.mubr.f32.gmra.mrb[0].mxu0 %v635
        %v833 = vpop.f32.mrb[0].mxu0
        %v834 = vadd.f32 %v478, %v833
        %v835 = vpop.f32.mrb[0].mxu0
        %836 = vmatprep.mubr.f32.mxu0 0.0
        %837 = vmatmul.mubr.f32.gmra.mrb[0].mxu0 %v638
        %v838 = vpop.f32.mrb[0].mxu0
        %v839 = vadd.f32 %v483, %v838
        %v840 = vpop.f32.mrb[0].mxu0
        %841 = vmatprep.mubr.f32.mxu0 0.0
        %842 = vmatmul.mubr.f32.gmra.mrb[0].mxu0 %v641
        %v843 = vpop.f32.mrb[0].mxu0
        %v844 = vadd.f32 %v488, %v843
        %v845 = vpop.f32.mrb[0].mxu0
        %846 = vmatprep.mubr.f32.mxu0 0.0
        %847 = vmatmul.mubr.f32.gmra.mrb[0].mxu0 %v644
        %v848 = vpop.f32.mrb[0].mxu0
        %v849 = vadd.f32 %v493, %v848
        %v850 = vpop.f32.mrb[0].mxu0
        %851 = vmatprep.mubr.f32.mxu0 0.0
        %852 = vmatmul.mubr.f32.gmra.mrb[0].mxu0 %v647
        %v853 = vpop.f32.mrb[0].mxu0
        %v854 = vadd.f32 %v498, %v853
        %v855 = vpop.f32.mrb[0].mxu0
        %856 = vmatprep.mubr.f32.mxu0 0.0
        %857 = vmatmul.mubr.f32.gmra.mrb[0].mxu0 %v650
        %v858 = vpop.f32.mrb[0].mxu0
        %v859 = vadd.f32 %v503, %v858
        %v860 = vpop.f32.mrb[0].mxu0
        %861 = vmatprep.mubr.f32.mxu0 0.0
        %862 = vmatmul.mubr.f32.gmra.mrb[0].mxu0 %v653
        %v863 = vpop.f32.mrb[0].mxu0
        %v864 = vadd.f32 %v508, %v863
        %v865 = vpop.f32.mrb[0].mxu0
        %866 = vmatprep.mubr.f32.mxu0 0.0
        %867 = vmatmul.mubr.f32.gmra.mrb[0].mxu0 %v656
        %v868 = vpop.f32.mrb[0].mxu0
        %v869 = vadd.f32 %v513, %v868
        %v870 = vpop.f32.mrb[0].mxu0
        %871 = vmatprep.mubr.f32.mxu0 0.0
        %872 = vmatmul.mubr.f32.gmra.mrb[0].mxu0 %v659
        %v873 = vpop.f32.mrb[0].mxu0
        %v874 = vadd.f32 %v518, %v873
        %v875 = vpop.f32.mrb[0].mxu0
        %876 = vmatprep.mubr.f32.mxu0 0.0
        %877 = vmatmul.mubr.f32.gmra.mrb[0].mxu0 %v662
        %v878 = vpop.f32.mrb[0].mxu0
        %v879 = vadd.f32 %v523, %v878
        %v880 = vpop.f32.mrb[0].mxu0
        %881 = vmatprep.mubr.f32.mxu0 0.0
        %882 = vmatmul.mubr.f32.gmra.mrb[0].mxu0 %v665
        %v883 = vpop.f32.mrb[0].mxu0
        %v884 = vadd.f32 %v528, %v883
        %v885 = vpop.f32.mrb[0].mxu0
        %886 = vmatprep.mubr.f32.mxu0 0.0
        %887 = vmatmul.mubr.f32.gmra.mrb[0].mxu0 %v668
        %v888 = vpop.f32.mrb[0].mxu0
        %v889 = vadd.f32 %v533, %v888
        %v890 = vpop.f32.mrb[0].mxu0
        %891 = vmatprep.mubr.f32.mxu0 0.0
        %892 = vmatmul.mubr.f32.gmra.mrb[0].mxu0 %v671
        %v893 = vpop.f32.mrb[0].mxu0
        %v894 = vadd.f32 %v538, %v893
        %v895 = vpop.f32.mrb[0].mxu0
        %896 = vmatprep.mubr.f32.mxu0 0.0
        %897 = vmatmul.mubr.f32.gmra.mrb[0].mxu0 %v674
        %v898 = vpop.f32.mrb[0].mxu0
        %v899 = vadd.f32 %v543, %v898
        %v900 = vpop.f32.mrb[0].mxu0
        %901 = vmatprep.mubr.f32.mxu0 0.0
        %902 = vmatmul.mubr.f32.gmra.mrb[0].mxu0 %v677
        %v903 = vpop.f32.mrb[0].mxu0
        %v904 = vadd.f32 %v548, %v903
        %v905 = vpop.f32.mrb[0].mxu0
        %906 = vmatprep.mubr.f32.mxu0 0.0
        %907 = vmatmul.mubr.f32.gmra.mrb[0].mxu0 %v680
        %v908 = vpop.f32.mrb[0].mxu0
        %v909 = vadd.f32 %v553, %v908
        %v910 = vpop.f32.mrb[0].mxu0
        %911 = vmatprep.mubr.f32.mxu0 0.0
        %912 = vmatmul.mubr.f32.gmra.mrb[0].mxu0 %v683
        %v913 = vpop.f32.mrb[0].mxu0
        %v914 = vadd.f32 %v558, %v913
        %v915 = vpop.f32.mrb[0].mxu0
        %916 = vmatprep.mubr.f32.mxu0 0.0
        %917 = vmatmul.mubr.f32.gmra.mrb[0].mxu0 %v686
        %v918 = vpop.f32.mrb[0].mxu0
        %v919 = vadd.f32 %v563, %v918
        %v920 = vpop.f32.mrb[0].mxu0
        %921 = vmatprep.mubr.f32.mxu0 0.0
        %922 = vmatmul.mubr.f32.gmra.mrb[0].mxu0 %v689
        %v923 = vpop.f32.mrb[0].mxu0
        %v924 = vadd.f32 %v568, %v923
        %v925 = vpop.f32.mrb[0].mxu0
        %926 = vmatprep.mubr.f32.mxu0 0.0
        %927 = vmatmul.mubr.f32.gmra.mrb[0].mxu0 %v692
        %v928 = vpop.f32.mrb[0].mxu0
        %v929 = vadd.f32 %v573, %v928
        %v930 = vpop.f32.mrb[0].mxu0
        %931 = vmatprep.mubr.f32.mxu0 0.0
        %932 = vmatmul.mubr.f32.gmra.mrb[0].mxu0 %v695
        %v933 = vpop.f32.mrb[0].mxu0
        %v934 = vadd.f32 %v578, %v933
        %v935 = vpop.f32.mrb[0].mxu0
        %936 = vmatprep.mubr.f32.mxu0 0.0
        %937 = vmatmul.mubr.f32.gmra.mrb[0].mxu0 %v698
        %v938 = vpop.f32.mrb[0].mxu0
        %v939 = vadd.f32 %v583, %v938
        %v940 = vpop.f32.mrb[0].mxu0
        %941 = vmatprep.mubr.f32.mxu0 0.0
        %942 = vmatmul.mubr.f32.gmra.mrb[0].mxu0 %v701
        %v943 = vpop.f32.mrb[0].mxu0
        %v944 = vadd.f32 %v588, %v943
        %v945 = vpop.f32.mrb[0].mxu0
        %946 = vmatprep.mubr.f32.mxu0 0.0
        %947 = vmatmul.mubr.f32.gmra.mrb[0].mxu0 %v704
        %v948 = vpop.f32.mrb[0].mxu0
        %v949 = vadd.f32 %v593, %v948
        %v950 = vpop.f32.mrb[0].mxu0
        %951 = vmatprep.mubr.f32.mxu0 0.0
        %952 = vmatmul.mubr.f32.gmra.mrb[0].mxu0 %v707
        %v953 = vpop.f32.mrb[0].mxu0
        %v954 = vadd.f32 %v598, %v953
        %v955 = vpop.f32.mrb[0].mxu0
        %956 = vdwg.mxu0
        %v957 = vld [vmem:[%s167 + $0x2] sm:$0xff]
        %v958 = vld [vmem:[%s167 + $0xa] sm:$0xff]
        %v959 = vld [vmem:[%s167 + $0x12] sm:$0xff]
        %v960 = vld [vmem:[%s167 + $0x1a] sm:$0xff]
        %v961 = vld [vmem:[%s167 + $0x22] sm:$0xff]
        %v962 = vld [vmem:[%s167 + $0x2a] sm:$0xff]
        %v963 = vld [vmem:[%s167 + $0x32] sm:$0xff]
        %v964 = vld [vmem:[%s167 + $0x3a] sm:$0xff]
        %v965 = vld [vmem:[%s167 + $0x42] sm:$0xff]
        %v966 = vld [vmem:[%s167 + $0x4a] sm:$0xff]
        %v967 = vld [vmem:[%s167 + $0x52] sm:$0xff]
        %v968 = vld [vmem:[%s167 + $0x5a] sm:$0xff]
        %v969 = vld [vmem:[%s167 + $0x62] sm:$0xff]
        %v970 = vld [vmem:[%s167 + $0x6a] sm:$0xff]
        %v971 = vld [vmem:[%s167 + $0x72] sm:$0xff]
        %v972 = vld [vmem:[%s167 + $0x7a] sm:$0xff]
        %v973 = vld [vmem:[%s167 + $0x82] sm:$0xff]
        %v974 = vld [vmem:[%s167 + $0x8a] sm:$0xff]
        %v975 = vld [vmem:[%s167 + $0x92] sm:$0xff]
        %v976 = vld [vmem:[%s167 + $0x9a] sm:$0xff]
        %v977 = vld [vmem:[%s167 + $0xa2] sm:$0xff]
        %v978 = vld [vmem:[%s167 + $0xaa] sm:$0xff]
        %v979 = vld [vmem:[%s167 + $0xb2] sm:$0xff]
        %v980 = vld [vmem:[%s167 + $0xba] sm:$0xff]
        %v981 = vld [vmem:[%s167 + $0xc2] sm:$0xff]
        %v982 = vld [vmem:[%s167 + $0xca] sm:$0xff]
        %v983 = vld [vmem:[%s167 + $0xd2] sm:$0xff]
        %v984 = vld [vmem:[%s167 + $0xda] sm:$0xff]
        %v985 = vld [vmem:[%s167 + $0xe2] sm:$0xff]
        %v986 = vld [vmem:[%s167 + $0xea] sm:$0xff]
        %v987 = vld [vmem:[%s167 + $0xf2] sm:$0xff]
        %v988 = vld [vmem:[%s167 + $0xfa] sm:$0xff]
        %v989 = vld [vmem:[%s167 + $0x102] sm:$0xff]
        %v990 = vld [vmem:[%s167 + $0x10a] sm:$0xff]
        %v991 = vld [vmem:[%s167 + $0x112] sm:$0xff]
        %v992 = vld [vmem:[%s167 + $0x11a] sm:$0x3f]
        %s993 = scalar_lea.vmem %s1, 8
        %v994 = vld [vmem:[%s993] sm:$0x7]
        %v996 = vsel %vm243, %v957, 0
        %v999 = vsel %vm243, %v958, 0
        %v1002 = vsel %vm243, %v959, 0
        %v1005 = vsel %vm243, %v960, 0
        %v1008 = vsel %vm243, %v961, 0
        %v1011 = vsel %vm243, %v962, 0
        %v1014 = vsel %vm243, %v963, 0
        %v1017 = vsel %vm243, %v964, 0
        %v1020 = vsel %vm243, %v965, 0
        %v1023 = vsel %vm243, %v966, 0
        %v1026 = vsel %vm243, %v967, 0
        %v1029 = vsel %vm243, %v968, 0
        %v1032 = vsel %vm243, %v969, 0
        %v1035 = vsel %vm243, %v970, 0
        %v1038 = vsel %vm243, %v971, 0
        %v1041 = vsel %vm243, %v972, 0
        %v1044 = vsel %vm243, %v973, 0
        %v1047 = vsel %vm243, %v974, 0
        %v1050 = vsel %vm243, %v975, 0
        %v1053 = vsel %vm243, %v976, 0
        %v1056 = vsel %vm243, %v977, 0
        %v1059 = vsel %vm243, %v978, 0
        %v1062 = vsel %vm243, %v979, 0
        %v1065 = vsel %vm243, %v980, 0
        %v1068 = vsel %vm243, %v981, 0
        %v1071 = vsel %vm243, %v982, 0
        %v1074 = vsel %vm243, %v983, 0
        %v1077 = vsel %vm243, %v984, 0
        %v1080 = vsel %vm243, %v985, 0
        %v1083 = vsel %vm243, %v986, 0
        %v1086 = vsel %vm243, %v987, 0
        %v1089 = vsel %vm243, %v988, 0
        %v1092 = vsel %vm243, %v989, 0
        %v1095 = vsel %vm243, %v990, 0
        %v1098 = vsel %vm243, %v991, 0
        %v1101 = vsel %vm243, %v992, 0
        %v1104 = vsel %vm352, %v994, 0
        %1106 = vmatprep.subr.mxu0 0.0
        %1107 = vmatpush1.msra.mxu0 %v1104
        %1108 = vmatprep.subr.mxu0 0.0
        %1109 = vmatpush1.msra.mxu0 0.0
        %1110 = vmatprep.subr.mxu0 0.0
        %1111 = vmatpush1.msra.mxu0 0.0
        %1112 = vmatprep.subr.mxu0 0.0
        %1113 = vmatpush1.msra.mxu0 0.0
        %1114 = vmatprep.subr.mxu0 0.0
        %1115 = vmatpush1.msra.mxu0 0.0
        %1116 = vmatprep.subr.mxu0 0.0
        %1117 = vmatpush1.msra.mxu0 0.0
        %1118 = vmatprep.subr.mxu0 0.0
        %1119 = vmatpush1.msra.mxu0 0.0
        %1120 = vmatprep.subr.mxu0 0.0
        %1121 = vmatpush1.msra.mxu0 0.0
        %1122 = vmatprep.subr.mxu0 0.0
        %1123 = vmatpush1.msra.mxu0 0.0
        %1124 = vmatprep.subr.mxu0 0.0
        %1125 = vmatpush1.msra.mxu0 0.0
        %1126 = vmatprep.subr.mxu0 0.0
        %1127 = vmatpush1.msra.mxu0 0.0
        %1128 = vmatprep.subr.mxu0 0.0
        %1129 = vmatpush1.msra.mxu0 0.0
        %1130 = vmatprep.subr.mxu0 0.0
        %1131 = vmatpush1.msra.mxu0 0.0
        %1132 = vmatprep.subr.mxu0 0.0
        %1133 = vmatpush1.msra.mxu0 0.0
        %1134 = vmatprep.subr.mxu0 0.0
        %1135 = vmatpush1.msra.mxu0 0.0
        %1136 = vmatprep.subr.mxu0 0.0
        %1137 = vmatpush1.msra.mxu0 0.0
        %1138 = vmatprep.subr.mxu0 0.0
        %1139 = vmatpush1.msra.mxu0 0.0
        %1140 = vmatprep.subr.mxu0 0.0
        %1141 = vmatpush1.msra.mxu0 0.0
        %1142 = vmatprep.subr.mxu0 0.0
        %1143 = vmatpush1.msra.mxu0 0.0
        %1144 = vmatprep.subr.mxu0 0.0
        %1145 = vmatpush1.msra.mxu0 0.0
        %1146 = vmatprep.subr.mxu0 0.0
        %1147 = vmatpush1.msra.mxu0 0.0
        %1148 = vmatprep.subr.mxu0 0.0
        %1149 = vmatpush1.msra.mxu0 0.0
        %1150 = vmatprep.subr.mxu0 0.0
        %1151 = vmatpush1.msra.mxu0 0.0
        %1152 = vmatprep.subr.mxu0 0.0
        %1153 = vmatpush1.msra.mxu0 0.0
        %1154 = vmatprep.subr.mxu0 0.0
        %1155 = vmatpush1.msra.mxu0 0.0
        %1156 = vmatprep.subr.mxu0 0.0
        %1157 = vmatpush1.msra.mxu0 0.0
        %1158 = vmatprep.subr.mxu0 0.0
        %1159 = vmatpush1.msra.mxu0 0.0
        %1160 = vmatprep.subr.mxu0 0.0
        %1161 = vmatpush1.msra.mxu0 0.0
        %1162 = vmatprep.subr.mxu0 0.0
        %1163 = vmatpush1.msra.mxu0 0.0
        %1164 = vmatprep.subr.mxu0 0.0
        %1165 = vmatpush1.msra.mxu0 0.0
        %1166 = vmatprep.subr.mxu0 0.0
        %1167 = vmatpush1.msra.mxu0 0.0
        %1168 = vmatprep.subr.mxu0 0.0
        %1169 = vmatpush1.msra.mxu0 0.0
        %1170 = vmatprep.mubr.f32.mxu0 0.0
        %1171 = vmatmul.mubr.f32.gmra.mrb[0].mxu0 %v996
        %v1172 = vpop.f32.mrb[0].mxu0
        %v1173 = vadd.f32 0.0, %v1172
        %v1174 = vpop.f32.mrb[0].mxu0
        %1175 = vmatprep.mubr.f32.mxu0 0.0
        %1176 = vmatmul.mubr.f32.gmra.mrb[0].mxu0 %v999
        %v1177 = vpop.f32.mrb[0].mxu0
        %v1178 = vadd.f32 0.0, %v1177
        %v1179 = vpop.f32.mrb[0].mxu0
        %1180 = vmatprep.mubr.f32.mxu0 0.0
        %1181 = vmatmul.mubr.f32.gmra.mrb[0].mxu0 %v1002
        %v1182 = vpop.f32.mrb[0].mxu0
        %v1183 = vadd.f32 0.0, %v1182
        %v1184 = vpop.f32.mrb[0].mxu0
        %1185 = vmatprep.mubr.f32.mxu0 0.0
        %1186 = vmatmul.mubr.f32.gmra.mrb[0].mxu0 %v1005
        %v1187 = vpop.f32.mrb[0].mxu0
        %v1188 = vadd.f32 0.0, %v1187
        %v1189 = vpop.f32.mrb[0].mxu0
        %1190 = vmatprep.mubr.f32.mxu0 0.0
        %1191 = vmatmul.mubr.f32.gmra.mrb[0].mxu0 %v1008
        %v1192 = vpop.f32.mrb[0].mxu0
        %v1193 = vadd.f32 0.0, %v1192
        %v1194 = vpop.f32.mrb[0].mxu0
        %1195 = vmatprep.mubr.f32.mxu0 0.0
        %1196 = vmatmul.mubr.f32.gmra.mrb[0].mxu0 %v1011
        %v1197 = vpop.f32.mrb[0].mxu0
        %v1198 = vadd.f32 0.0, %v1197
        %v1199 = vpop.f32.mrb[0].mxu0
        %1200 = vmatprep.mubr.f32.mxu0 0.0
        %1201 = vmatmul.mubr.f32.gmra.mrb[0].mxu0 %v1014
        %v1202 = vpop.f32.mrb[0].mxu0
        %v1203 = vadd.f32 0.0, %v1202
        %v1204 = vpop.f32.mrb[0].mxu0
        %1205 = vmatprep.mubr.f32.mxu0 0.0
        %1206 = vmatmul.mubr.f32.gmra.mrb[0].mxu0 %v1017
        %v1207 = vpop.f32.mrb[0].mxu0
        %v1208 = vadd.f32 0.0, %v1207
        %v1209 = vpop.f32.mrb[0].mxu0
        %1210 = vmatprep.mubr.f32.mxu0 0.0
        %1211 = vmatmul.mubr.f32.gmra.mrb[0].mxu0 %v1020
        %v1212 = vpop.f32.mrb[0].mxu0
        %v1213 = vadd.f32 0.0, %v1212
        %v1214 = vpop.f32.mrb[0].mxu0
        %1215 = vmatprep.mubr.f32.mxu0 0.0
        %1216 = vmatmul.mubr.f32.gmra.mrb[0].mxu0 %v1023
        %v1217 = vpop.f32.mrb[0].mxu0
        %v1218 = vadd.f32 0.0, %v1217
        %v1219 = vpop.f32.mrb[0].mxu0
        %1220 = vmatprep.mubr.f32.mxu0 0.0
        %1221 = vmatmul.mubr.f32.gmra.mrb[0].mxu0 %v1026
        %v1222 = vpop.f32.mrb[0].mxu0
        %v1223 = vadd.f32 0.0, %v1222
        %v1224 = vpop.f32.mrb[0].mxu0
        %1225 = vmatprep.mubr.f32.mxu0 0.0
        %1226 = vmatmul.mubr.f32.gmra.mrb[0].mxu0 %v1029
        %v1227 = vpop.f32.mrb[0].mxu0
        %v1228 = vadd.f32 0.0, %v1227
        %v1229 = vpop.f32.mrb[0].mxu0
        %1230 = vmatprep.mubr.f32.mxu0 0.0
        %1231 = vmatmul.mubr.f32.gmra.mrb[0].mxu0 %v1032
        %v1232 = vpop.f32.mrb[0].mxu0
        %v1233 = vadd.f32 0.0, %v1232
        %v1234 = vpop.f32.mrb[0].mxu0
        %1235 = vmatprep.mubr.f32.mxu0 0.0
        %1236 = vmatmul.mubr.f32.gmra.mrb[0].mxu0 %v1035
        %v1237 = vpop.f32.mrb[0].mxu0
        %v1238 = vadd.f32 0.0, %v1237
        %v1239 = vpop.f32.mrb[0].mxu0
        %1240 = vmatprep.mubr.f32.mxu0 0.0
        %1241 = vmatmul.mubr.f32.gmra.mrb[0].mxu0 %v1038
        %v1242 = vpop.f32.mrb[0].mxu0
        %v1243 = vadd.f32 0.0, %v1242
        %v1244 = vpop.f32.mrb[0].mxu0
        %1245 = vmatprep.mubr.f32.mxu0 0.0
        %1246 = vmatmul.mubr.f32.gmra.mrb[0].mxu0 %v1041
        %v1247 = vpop.f32.mrb[0].mxu0
        %v1248 = vadd.f32 0.0, %v1247
        %v1249 = vpop.f32.mrb[0].mxu0
        %1250 = vmatprep.mubr.f32.mxu0 0.0
        %1251 = vmatmul.mubr.f32.gmra.mrb[0].mxu0 %v1044
        %v1252 = vpop.f32.mrb[0].mxu0
        %v1253 = vadd.f32 0.0, %v1252
        %v1254 = vpop.f32.mrb[0].mxu0
        %1255 = vmatprep.mubr.f32.mxu0 0.0
        %1256 = vmatmul.mubr.f32.gmra.mrb[0].mxu0 %v1047
        %v1257 = vpop.f32.mrb[0].mxu0
        %v1258 = vadd.f32 0.0, %v1257
        %v1259 = vpop.f32.mrb[0].mxu0
        %1260 = vmatprep.mubr.f32.mxu0 0.0
        %1261 = vmatmul.mubr.f32.gmra.mrb[0].mxu0 %v1050
        %v1262 = vpop.f32.mrb[0].mxu0
        %v1263 = vadd.f32 0.0, %v1262
        %v1264 = vpop.f32.mrb[0].mxu0
        %1265 = vmatprep.mubr.f32.mxu0 0.0
        %1266 = vmatmul.mubr.f32.gmra.mrb[0].mxu0 %v1053
        %v1267 = vpop.f32.mrb[0].mxu0
        %v1268 = vadd.f32 0.0, %v1267
        %v1269 = vpop.f32.mrb[0].mxu0
        %1270 = vmatprep.mubr.f32.mxu0 0.0
        %1271 = vmatmul.mubr.f32.gmra.mrb[0].mxu0 %v1056
        %v1272 = vpop.f32.mrb[0].mxu0
        %v1273 = vadd.f32 0.0, %v1272
        %v1274 = vpop.f32.mrb[0].mxu0
        %1275 = vmatprep.mubr.f32.mxu0 0.0
        %1276 = vmatmul.mubr.f32.gmra.mrb[0].mxu0 %v1059
        %v1277 = vpop.f32.mrb[0].mxu0
        %v1278 = vadd.f32 0.0, %v1277
        %v1279 = vpop.f32.mrb[0].mxu0
        %1280 = vmatprep.mubr.f32.mxu0 0.0
        %1281 = vmatmul.mubr.f32.gmra.mrb[0].mxu0 %v1062
        %v1282 = vpop.f32.mrb[0].mxu0
        %v1283 = vadd.f32 0.0, %v1282
        %v1284 = vpop.f32.mrb[0].mxu0
        %1285 = vmatprep.mubr.f32.mxu0 0.0
        %1286 = vmatmul.mubr.f32.gmra.mrb[0].mxu0 %v1065
        %v1287 = vpop.f32.mrb[0].mxu0
        %v1288 = vadd.f32 0.0, %v1287
        %v1289 = vpop.f32.mrb[0].mxu0
        %1290 = vmatprep.mubr.f32.mxu0 0.0
        %1291 = vmatmul.mubr.f32.gmra.mrb[0].mxu0 %v1068
        %v1292 = vpop.f32.mrb[0].mxu0
        %v1293 = vadd.f32 0.0, %v1292
        %v1294 = vpop.f32.mrb[0].mxu0
        %1295 = vmatprep.mubr.f32.mxu0 0.0
        %1296 = vmatmul.mubr.f32.gmra.mrb[0].mxu0 %v1071
        %v1297 = vpop.f32.mrb[0].mxu0
        %v1298 = vadd.f32 0.0, %v1297
        %v1299 = vpop.f32.mrb[0].mxu0
        %1300 = vmatprep.mubr.f32.mxu0 0.0
        %1301 = vmatmul.mubr.f32.gmra.mrb[0].mxu0 %v1074
        %v1302 = vpop.f32.mrb[0].mxu0
        %v1303 = vadd.f32 0.0, %v1302
        %v1304 = vpop.f32.mrb[0].mxu0
        %1305 = vmatprep.mubr.f32.mxu0 0.0
        %1306 = vmatmul.mubr.f32.gmra.mrb[0].mxu0 %v1077
        %v1307 = vpop.f32.mrb[0].mxu0
        %v1308 = vadd.f32 0.0, %v1307
        %v1309 = vpop.f32.mrb[0].mxu0
        %1310 = vmatprep.mubr.f32.mxu0 0.0
        %1311 = vmatmul.mubr.f32.gmra.mrb[0].mxu0 %v1080
        %v1312 = vpop.f32.mrb[0].mxu0
        %v1313 = vadd.f32 0.0, %v1312
        %v1314 = vpop.f32.mrb[0].mxu0
        %1315 = vmatprep.mubr.f32.mxu0 0.0
        %1316 = vmatmul.mubr.f32.gmra.mrb[0].mxu0 %v1083
        %v1317 = vpop.f32.mrb[0].mxu0
        %v1318 = vadd.f32 0.0, %v1317
        %v1319 = vpop.f32.mrb[0].mxu0
        %1320 = vmatprep.mubr.f32.mxu0 0.0
        %1321 = vmatmul.mubr.f32.gmra.mrb[0].mxu0 %v1086
        %v1322 = vpop.f32.mrb[0].mxu0
        %v1323 = vadd.f32 0.0, %v1322
        %v1324 = vpop.f32.mrb[0].mxu0
        %1325 = vmatprep.mubr.f32.mxu0 0.0
        %1326 = vmatmul.mubr.f32.gmra.mrb[0].mxu0 %v1089
        %v1327 = vpop.f32.mrb[0].mxu0
        %v1328 = vadd.f32 0.0, %v1327
        %v1329 = vpop.f32.mrb[0].mxu0
        %1330 = vmatprep.mubr.f32.mxu0 0.0
        %1331 = vmatmul.mubr.f32.gmra.mrb[0].mxu0 %v1092
        %v1332 = vpop.f32.mrb[0].mxu0
        %v1333 = vadd.f32 0.0, %v1332
        %v1334 = vpop.f32.mrb[0].mxu0
        %1335 = vmatprep.mubr.f32.mxu0 0.0
        %1336 = vmatmul.mubr.f32.gmra.mrb[0].mxu0 %v1095
        %v1337 = vpop.f32.mrb[0].mxu0
        %v1338 = vadd.f32 0.0, %v1337
        %v1339 = vpop.f32.mrb[0].mxu0
        %1340 = vmatprep.mubr.f32.mxu0 0.0
        %1341 = vmatmul.mubr.f32.gmra.mrb[0].mxu0 %v1098
        %v1342 = vpop.f32.mrb[0].mxu0
        %v1343 = vadd.f32 0.0, %v1342
        %v1344 = vpop.f32.mrb[0].mxu0
        %1345 = vmatprep.mubr.f32.mxu0 0.0
        %1346 = vmatmul.mubr.f32.gmra.mrb[0].mxu0 %v1101
        %v1347 = vpop.f32.mrb[0].mxu0
        %v1348 = vadd.f32 0.0, %v1347
        %v1349 = vpop.f32.mrb[0].mxu0
        %1350 = vdwg.mxu0
        %v1351 = vadd.f32 %v779, %v1173
        %v1352 = vadd.f32 %v784, %v1178
        %v1353 = vadd.f32 %v789, %v1183
        %v1354 = vadd.f32 %v794, %v1188
        %v1355 = vadd.f32 %v799, %v1193
        %v1356 = vadd.f32 %v804, %v1198
        %v1357 = vadd.f32 %v809, %v1203
        %v1358 = vadd.f32 %v814, %v1208
        %v1359 = vadd.f32 %v819, %v1213
        %v1360 = vadd.f32 %v824, %v1218
        %v1361 = vadd.f32 %v829, %v1223
        %v1362 = vadd.f32 %v834, %v1228
        %v1363 = vadd.f32 %v839, %v1233
        %v1364 = vadd.f32 %v844, %v1238
        %v1365 = vadd.f32 %v849, %v1243
        %v1366 = vadd.f32 %v854, %v1248
        %v1367 = vadd.f32 %v859, %v1253
        %v1368 = vadd.f32 %v864, %v1258
        %v1369 = vadd.f32 %v869, %v1263
        %v1370 = vadd.f32 %v874, %v1268
        %v1371 = vadd.f32 %v879, %v1273
        %v1372 = vadd.f32 %v884, %v1278
        %v1373 = vadd.f32 %v889, %v1283
        %v1374 = vadd.f32 %v894, %v1288
        %v1375 = vadd.f32 %v899, %v1293
        %v1376 = vadd.f32 %v904, %v1298
        %v1377 = vadd.f32 %v909, %v1303
        %v1378 = vadd.f32 %v914, %v1308
        %v1379 = vadd.f32 %v919, %v1313
        %v1380 = vadd.f32 %v924, %v1318
        %v1381 = vadd.f32 %v929, %v1323
        %v1382 = vadd.f32 %v934, %v1328
        %v1383 = vadd.f32 %v939, %v1333
        %v1384 = vadd.f32 %v944, %v1338
        %v1385 = vadd.f32 %v949, %v1343
        %v1386 = vadd.f32 %v954, %v1348
        %v1387 = vld [vmem:[%s167 + $0x12] sm:$0xff]
        %v1388 = vld [vmem:[%s167 + $0x1a] sm:$0xff]
        %v1389 = vld [vmem:[%s167 + $0x22] sm:$0xff]
        %v1390 = vld [vmem:[%s167 + $0x2a] sm:$0xff]
        %v1391 = vld [vmem:[%s167 + $0x32] sm:$0xff]
        %v1392 = vld [vmem:[%s167 + $0x3a] sm:$0xff]
        %v1393 = vld [vmem:[%s167 + $0x42] sm:$0xff]
        %v1394 = vld [vmem:[%s167 + $0x4a] sm:$0xff]
        %v1395 = vld [vmem:[%s167 + $0x52] sm:$0xff]
        %v1396 = vld [vmem:[%s167 + $0x5a] sm:$0xff]
        %v1397 = vld [vmem:[%s167 + $0x62] sm:$0xff]
        %v1398 = vld [vmem:[%s167 + $0x6a] sm:$0xff]
        %v1399 = vld [vmem:[%s167 + $0x72] sm:$0xff]
        %v1400 = vld [vmem:[%s167 + $0x7a] sm:$0xff]
        %v1401 = vld [vmem:[%s167 + $0x82] sm:$0xff]
        %v1402 = vld [vmem:[%s167 + $0x8a] sm:$0xff]
        %v1403 = vld [vmem:[%s167 + $0x92] sm:$0xff]
        %v1404 = vld [vmem:[%s167 + $0x9a] sm:$0xff]
        %v1405 = vld [vmem:[%s167 + $0xa2] sm:$0xff]
        %v1406 = vld [vmem:[%s167 + $0xaa] sm:$0xff]
        %v1407 = vld [vmem:[%s167 + $0xb2] sm:$0xff]
        %v1408 = vld [vmem:[%s167 + $0xba] sm:$0xff]
        %v1409 = vld [vmem:[%s167 + $0xc2] sm:$0xff]
        %v1410 = vld [vmem:[%s167 + $0xca] sm:$0xff]
        %v1411 = vld [vmem:[%s167 + $0xd2] sm:$0xff]
        %v1412 = vld [vmem:[%s167 + $0xda] sm:$0xff]
        %v1413 = vld [vmem:[%s167 + $0xe2] sm:$0xff]
        %v1414 = vld [vmem:[%s167 + $0xea] sm:$0xff]
        %v1415 = vld [vmem:[%s167 + $0xf2] sm:$0xff]
        %v1416 = vld [vmem:[%s167 + $0xfa] sm:$0xff]
        %v1417 = vld [vmem:[%s167 + $0x102] sm:$0xff]
        %v1418 = vld [vmem:[%s167 + $0x10a] sm:$0xff]
        %v1419 = vld [vmem:[%s167 + $0x112] sm:$0xff]
        %v1420 = vld [vmem:[%s167 + $0x11a] sm:$0xff]
        %v1421 = vld [vmem:[%s167 + $0x122] sm:$0xff]
        %v1422 = vld [vmem:[%s167 + $0x12a] sm:$0x3f]
        %s1423 = scalar_lea.vmem %s1, 12
        %v1424 = vld [vmem:[%s1423] sm:$0x7]
        %v1426 = vsel %vm243, %v1387, 0
        %v1429 = vsel %vm243, %v1388, 0
        %v1432 = vsel %vm243, %v1389, 0
        %v1435 = vsel %vm243, %v1390, 0
        %v1438 = vsel %vm243, %v1391, 0
        %v1441 = vsel %vm243, %v1392, 0
        %v1444 = vsel %vm243, %v1393, 0
        %v1447 = vsel %vm243, %v1394, 0
        %v1450 = vsel %vm243, %v1395, 0
        %v1453 = vsel %vm243, %v1396, 0
        %v1456 = vsel %vm243, %v1397, 0
        %v1459 = vsel %vm243, %v1398, 0
        %v1462 = vsel %vm243, %v1399, 0
        %v1465 = vsel %vm243, %v1400, 0
        %v1468 = vsel %vm243, %v1401, 0
        %v1471 = vsel %vm243, %v1402, 0
        %v1474 = vsel %vm243, %v1403, 0
        %v1477 = vsel %vm243, %v1404, 0
        %v1480 = vsel %vm243, %v1405, 0
        %v1483 = vsel %vm243, %v1406, 0
        %v1486 = vsel %vm243, %v1407, 0
        %v1489 = vsel %vm243, %v1408, 0
        %v1492 = vsel %vm243, %v1409, 0
        %v1495 = vsel %vm243, %v1410, 0
        %v1498 = vsel %vm243, %v1411, 0
        %v1501 = vsel %vm243, %v1412, 0
        %v1504 = vsel %vm243, %v1413, 0
        %v1507 = vsel %vm243, %v1414, 0
        %v1510 = vsel %vm243, %v1415, 0
        %v1513 = vsel %vm243, %v1416, 0
        %v1516 = vsel %vm243, %v1417, 0
        %v1519 = vsel %vm243, %v1418, 0
        %v1522 = vsel %vm243, %v1419, 0
        %v1525 = vsel %vm243, %v1420, 0
        %v1528 = vsel %vm243, %v1421, 0
        %v1531 = vsel %vm243, %v1422, 0
        %v1534 = vsel %vm352, %v1424, 0
        %1536 = vmatprep.subr.mxu0 0.0
        %1537 = vmatpush1.msra.mxu0 %v1534
        %1538 = vmatprep.subr.mxu0 0.0
        %1539 = vmatpush1.msra.mxu0 0.0
        %1540 = vmatprep.subr.mxu0 0.0
        %1541 = vmatpush1.msra.mxu0 0.0
        %1542 = vmatprep.subr.mxu0 0.0
        %1543 = vmatpush1.msra.mxu0 0.0
        %1544 = vmatprep.subr.mxu0 0.0
        %1545 = vmatpush1.msra.mxu0 0.0
        %1546 = vmatprep.subr.mxu0 0.0
        %1547 = vmatpush1.msra.mxu0 0.0
        %1548 = vmatprep.subr.mxu0 0.0
        %1549 = vmatpush1.msra.mxu0 0.0
        %1550 = vmatprep.subr.mxu0 0.0
        %1551 = vmatpush1.msra.mxu0 0.0
        %1552 = vmatprep.subr.mxu0 0.0
        %1553 = vmatpush1.msra.mxu0 0.0
        %1554 = vmatprep.subr.mxu0 0.0
        %1555 = vmatpush1.msra.mxu0 0.0
        %1556 = vmatprep.subr.mxu0 0.0
        %1557 = vmatpush1.msra.mxu0 0.0
        %1558 = vmatprep.subr.mxu0 0.0
        %1559 = vmatpush1.msra.mxu0 0.0
        %1560 = vmatprep.subr.mxu0 0.0
        %1561 = vmatpush1.msra.mxu0 0.0
        %1562 = vmatprep.subr.mxu0 0.0
        %1563 = vmatpush1.msra.mxu0 0.0
        %1564 = vmatprep.subr.mxu0 0.0
        %1565 = vmatpush1.msra.mxu0 0.0
        %1566 = vmatprep.subr.mxu0 0.0
        %1567 = vmatpush1.msra.mxu0 0.0
        %1568 = vmatprep.subr.mxu0 0.0
        %1569 = vmatpush1.msra.mxu0 0.0
        %1570 = vmatprep.subr.mxu0 0.0
        %1571 = vmatpush1.msra.mxu0 0.0
        %1572 = vmatprep.subr.mxu0 0.0
        %1573 = vmatpush1.msra.mxu0 0.0
        %1574 = vmatprep.subr.mxu0 0.0
        %1575 = vmatpush1.msra.mxu0 0.0
        %1576 = vmatprep.subr.mxu0 0.0
        %1577 = vmatpush1.msra.mxu0 0.0
        %1578 = vmatprep.subr.mxu0 0.0
        %1579 = vmatpush1.msra.mxu0 0.0
        %1580 = vmatprep.subr.mxu0 0.0
        %1581 = vmatpush1.msra.mxu0 0.0
        %1582 = vmatprep.subr.mxu0 0.0
        %1583 = vmatpush1.msra.mxu0 0.0
        %1584 = vmatprep.subr.mxu0 0.0
        %1585 = vmatpush1.msra.mxu0 0.0
        %1586 = vmatprep.subr.mxu0 0.0
        %1587 = vmatpush1.msra.mxu0 0.0
        %1588 = vmatprep.subr.mxu0 0.0
        %1589 = vmatpush1.msra.mxu0 0.0
        %1590 = vmatprep.subr.mxu0 0.0
        %1591 = vmatpush1.msra.mxu0 0.0
        %1592 = vmatprep.subr.mxu0 0.0
        %1593 = vmatpush1.msra.mxu0 0.0
        %1594 = vmatprep.subr.mxu0 0.0
        %1595 = vmatpush1.msra.mxu0 0.0
        %1596 = vmatprep.subr.mxu0 0.0
        %1597 = vmatpush1.msra.mxu0 0.0
        %1598 = vmatprep.subr.mxu0 0.0
        %1599 = vmatpush1.msra.mxu0 0.0
        %1600 = vmatprep.mubr.f32.mxu0 0.0
        %1601 = vmatmul.mubr.f32.gmra.mrb[0].mxu0 %v1426
        %v1602 = vpop.f32.mrb[0].mxu0
        %v1603 = vadd.f32 0.0, %v1602
        %v1604 = vpop.f32.mrb[0].mxu0
        %1605 = vmatprep.mubr.f32.mxu0 0.0
        %1606 = vmatmul.mubr.f32.gmra.mrb[0].mxu0 %v1429
        %v1607 = vpop.f32.mrb[0].mxu0
        %v1608 = vadd.f32 0.0, %v1607
        %v1609 = vpop.f32.mrb[0].mxu0
        %1610 = vmatprep.mubr.f32.mxu0 0.0
        %1611 = vmatmul.mubr.f32.gmra.mrb[0].mxu0 %v1432
        %v1612 = vpop.f32.mrb[0].mxu0
        %v1613 = vadd.f32 0.0, %v1612
        %v1614 = vpop.f32.mrb[0].mxu0
        %1615 = vmatprep.mubr.f32.mxu0 0.0
        %1616 = vmatmul.mubr.f32.gmra.mrb[0].mxu0 %v1435
        %v1617 = vpop.f32.mrb[0].mxu0
        %v1618 = vadd.f32 0.0, %v1617
        %v1619 = vpop.f32.mrb[0].mxu0
        %1620 = vmatprep.mubr.f32.mxu0 0.0
        %1621 = vmatmul.mubr.f32.gmra.mrb[0].mxu0 %v1438
        %v1622 = vpop.f32.mrb[0].mxu0
        %v1623 = vadd.f32 0.0, %v1622
        %v1624 = vpop.f32.mrb[0].mxu0
        %1625 = vmatprep.mubr.f32.mxu0 0.0
        %1626 = vmatmul.mubr.f32.gmra.mrb[0].mxu0 %v1441
        %v1627 = vpop.f32.mrb[0].mxu0
        %v1628 = vadd.f32 0.0, %v1627
        %v1629 = vpop.f32.mrb[0].mxu0
        %1630 = vmatprep.mubr.f32.mxu0 0.0
        %1631 = vmatmul.mubr.f32.gmra.mrb[0].mxu0 %v1444
        %v1632 = vpop.f32.mrb[0].mxu0
        %v1633 = vadd.f32 0.0, %v1632
        %v1634 = vpop.f32.mrb[0].mxu0
        %1635 = vmatprep.mubr.f32.mxu0 0.0
        %1636 = vmatmul.mubr.f32.gmra.mrb[0].mxu0 %v1447
        %v1637 = vpop.f32.mrb[0].mxu0
        %v1638 = vadd.f32 0.0, %v1637
        %v1639 = vpop.f32.mrb[0].mxu0
        %1640 = vmatprep.mubr.f32.mxu0 0.0
        %1641 = vmatmul.mubr.f32.gmra.mrb[0].mxu0 %v1450
        %v1642 = vpop.f32.mrb[0].mxu0
        %v1643 = vadd.f32 0.0, %v1642
        %v1644 = vpop.f32.mrb[0].mxu0
        %1645 = vmatprep.mubr.f32.mxu0 0.0
        %1646 = vmatmul.mubr.f32.gmra.mrb[0].mxu0 %v1453
        %v1647 = vpop.f32.mrb[0].mxu0
        %v1648 = vadd.f32 0.0, %v1647
        %v1649 = vpop.f32.mrb[0].mxu0
        %1650 = vmatprep.mubr.f32.mxu0 0.0
        %1651 = vmatmul.mubr.f32.gmra.mrb[0].mxu0 %v1456
        %v1652 = vpop.f32.mrb[0].mxu0
        %v1653 = vadd.f32 0.0, %v1652
        %v1654 = vpop.f32.mrb[0].mxu0
        %1655 = vmatprep.mubr.f32.mxu0 0.0
        %1656 = vmatmul.mubr.f32.gmra.mrb[0].mxu0 %v1459
        %v1657 = vpop.f32.mrb[0].mxu0
        %v1658 = vadd.f32 0.0, %v1657
        %v1659 = vpop.f32.mrb[0].mxu0
        %1660 = vmatprep.mubr.f32.mxu0 0.0
        %1661 = vmatmul.mubr.f32.gmra.mrb[0].mxu0 %v1462
        %v1662 = vpop.f32.mrb[0].mxu0
        %v1663 = vadd.f32 0.0, %v1662
        %v1664 = vpop.f32.mrb[0].mxu0
        %1665 = vmatprep.mubr.f32.mxu0 0.0
        %1666 = vmatmul.mubr.f32.gmra.mrb[0].mxu0 %v1465
        %v1667 = vpop.f32.mrb[0].mxu0
        %v1668 = vadd.f32 0.0, %v1667
        %v1669 = vpop.f32.mrb[0].mxu0
        %1670 = vmatprep.mubr.f32.mxu0 0.0
        %1671 = vmatmul.mubr.f32.gmra.mrb[0].mxu0 %v1468
        %v1672 = vpop.f32.mrb[0].mxu0
        %v1673 = vadd.f32 0.0, %v1672
        %v1674 = vpop.f32.mrb[0].mxu0
        %1675 = vmatprep.mubr.f32.mxu0 0.0
        %1676 = vmatmul.mubr.f32.gmra.mrb[0].mxu0 %v1471
        %v1677 = vpop.f32.mrb[0].mxu0
        %v1678 = vadd.f32 0.0, %v1677
        %v1679 = vpop.f32.mrb[0].mxu0
        %1680 = vmatprep.mubr.f32.mxu0 0.0
        %1681 = vmatmul.mubr.f32.gmra.mrb[0].mxu0 %v1474
        %v1682 = vpop.f32.mrb[0].mxu0
        %v1683 = vadd.f32 0.0, %v1682
        %v1684 = vpop.f32.mrb[0].mxu0
        %1685 = vmatprep.mubr.f32.mxu0 0.0
        %1686 = vmatmul.mubr.f32.gmra.mrb[0].mxu0 %v1477
        %v1687 = vpop.f32.mrb[0].mxu0
        %v1688 = vadd.f32 0.0, %v1687
        %v1689 = vpop.f32.mrb[0].mxu0
        %1690 = vmatprep.mubr.f32.mxu0 0.0
        %1691 = vmatmul.mubr.f32.gmra.mrb[0].mxu0 %v1480
        %v1692 = vpop.f32.mrb[0].mxu0
        %v1693 = vadd.f32 0.0, %v1692
        %v1694 = vpop.f32.mrb[0].mxu0
        %1695 = vmatprep.mubr.f32.mxu0 0.0
        %1696 = vmatmul.mubr.f32.gmra.mrb[0].mxu0 %v1483
        %v1697 = vpop.f32.mrb[0].mxu0
        %v1698 = vadd.f32 0.0, %v1697
        %v1699 = vpop.f32.mrb[0].mxu0
        %1700 = vmatprep.mubr.f32.mxu0 0.0
        %1701 = vmatmul.mubr.f32.gmra.mrb[0].mxu0 %v1486
        %v1702 = vpop.f32.mrb[0].mxu0
        %v1703 = vadd.f32 0.0, %v1702
        %v1704 = vpop.f32.mrb[0].mxu0
        %1705 = vmatprep.mubr.f32.mxu0 0.0
        %1706 = vmatmul.mubr.f32.gmra.mrb[0].mxu0 %v1489
        %v1707 = vpop.f32.mrb[0].mxu0
        %v1708 = vadd.f32 0.0, %v1707
        %v1709 = vpop.f32.mrb[0].mxu0
        %1710 = vmatprep.mubr.f32.mxu0 0.0
        %1711 = vmatmul.mubr.f32.gmra.mrb[0].mxu0 %v1492
        %v1712 = vpop.f32.mrb[0].mxu0
        %v1713 = vadd.f32 0.0, %v1712
        %v1714 = vpop.f32.mrb[0].mxu0
        %1715 = vmatprep.mubr.f32.mxu0 0.0
        %1716 = vmatmul.mubr.f32.gmra.mrb[0].mxu0 %v1495
        %v1717 = vpop.f32.mrb[0].mxu0
        %v1718 = vadd.f32 0.0, %v1717
        %v1719 = vpop.f32.mrb[0].mxu0
        %1720 = vmatprep.mubr.f32.mxu0 0.0
        %1721 = vmatmul.mubr.f32.gmra.mrb[0].mxu0 %v1498
        %v1722 = vpop.f32.mrb[0].mxu0
        %v1723 = vadd.f32 0.0, %v1722
        %v1724 = vpop.f32.mrb[0].mxu0
        %1725 = vmatprep.mubr.f32.mxu0 0.0
        %1726 = vmatmul.mubr.f32.gmra.mrb[0].mxu0 %v1501
        %v1727 = vpop.f32.mrb[0].mxu0
        %v1728 = vadd.f32 0.0, %v1727
        %v1729 = vpop.f32.mrb[0].mxu0
        %1730 = vmatprep.mubr.f32.mxu0 0.0
        %1731 = vmatmul.mubr.f32.gmra.mrb[0].mxu0 %v1504
        %v1732 = vpop.f32.mrb[0].mxu0
        %v1733 = vadd.f32 0.0, %v1732
        %v1734 = vpop.f32.mrb[0].mxu0
        %1735 = vmatprep.mubr.f32.mxu0 0.0
        %1736 = vmatmul.mubr.f32.gmra.mrb[0].mxu0 %v1507
        %v1737 = vpop.f32.mrb[0].mxu0
        %v1738 = vadd.f32 0.0, %v1737
        %v1739 = vpop.f32.mrb[0].mxu0
        %1740 = vmatprep.mubr.f32.mxu0 0.0
        %1741 = vmatmul.mubr.f32.gmra.mrb[0].mxu0 %v1510
        %v1742 = vpop.f32.mrb[0].mxu0
        %v1743 = vadd.f32 0.0, %v1742
        %v1744 = vpop.f32.mrb[0].mxu0
        %1745 = vmatprep.mubr.f32.mxu0 0.0
        %1746 = vmatmul.mubr.f32.gmra.mrb[0].mxu0 %v1513
        %v1747 = vpop.f32.mrb[0].mxu0
        %v1748 = vadd.f32 0.0, %v1747
        %v1749 = vpop.f32.mrb[0].mxu0
        %1750 = vmatprep.mubr.f32.mxu0 0.0
        %1751 = vmatmul.mubr.f32.gmra.mrb[0].mxu0 %v1516
        %v1752 = vpop.f32.mrb[0].mxu0
        %v1753 = vadd.f32 0.0, %v1752
        %v1754 = vpop.f32.mrb[0].mxu0
        %1755 = vmatprep.mubr.f32.mxu0 0.0
        %1756 = vmatmul.mubr.f32.gmra.mrb[0].mxu0 %v1519
        %v1757 = vpop.f32.mrb[0].mxu0
        %v1758 = vadd.f32 0.0, %v1757
        %v1759 = vpop.f32.mrb[0].mxu0
        %1760 = vmatprep.mubr.f32.mxu0 0.0
        %1761 = vmatmul.mubr.f32.gmra.mrb[0].mxu0 %v1522
        %v1762 = vpop.f32.mrb[0].mxu0
        %v1763 = vadd.f32 0.0, %v1762
        %v1764 = vpop.f32.mrb[0].mxu0
        %1765 = vmatprep.mubr.f32.mxu0 0.0
        %1766 = vmatmul.mubr.f32.gmra.mrb[0].mxu0 %v1525
        %v1767 = vpop.f32.mrb[0].mxu0
        %v1768 = vadd.f32 0.0, %v1767
        %v1769 = vpop.f32.mrb[0].mxu0
        %1770 = vmatprep.mubr.f32.mxu0 0.0
        %1771 = vmatmul.mubr.f32.gmra.mrb[0].mxu0 %v1528
        %v1772 = vpop.f32.mrb[0].mxu0
        %v1773 = vadd.f32 0.0, %v1772
        %v1774 = vpop.f32.mrb[0].mxu0
        %1775 = vmatprep.mubr.f32.mxu0 0.0
        %1776 = vmatmul.mubr.f32.gmra.mrb[0].mxu0 %v1531
        %v1777 = vpop.f32.mrb[0].mxu0
        %v1778 = vadd.f32 0.0, %v1777
        %v1779 = vpop.f32.mrb[0].mxu0
        %1780 = vdwg.mxu0
        %v1781 = vadd.f32 %v1351, %v1603
        %v1782 = vadd.f32 %v1352, %v1608
        %v1783 = vadd.f32 %v1353, %v1613
        %v1784 = vadd.f32 %v1354, %v1618
        %v1785 = vadd.f32 %v1355, %v1623
        %v1786 = vadd.f32 %v1356, %v1628
        %v1787 = vadd.f32 %v1357, %v1633
        %v1788 = vadd.f32 %v1358, %v1638
        %v1789 = vadd.f32 %v1359, %v1643
        %v1790 = vadd.f32 %v1360, %v1648
        %v1791 = vadd.f32 %v1361, %v1653
        %v1792 = vadd.f32 %v1362, %v1658
        %v1793 = vadd.f32 %v1363, %v1663
        %v1794 = vadd.f32 %v1364, %v1668
        %v1795 = vadd.f32 %v1365, %v1673
        %v1796 = vadd.f32 %v1366, %v1678
        %v1797 = vadd.f32 %v1367, %v1683
        %v1798 = vadd.f32 %v1368, %v1688
        %v1799 = vadd.f32 %v1369, %v1693
        %v1800 = vadd.f32 %v1370, %v1698
        %v1801 = vadd.f32 %v1371, %v1703
        %v1802 = vadd.f32 %v1372, %v1708
        %v1803 = vadd.f32 %v1373, %v1713
        %v1804 = vadd.f32 %v1374, %v1718
        %v1805 = vadd.f32 %v1375, %v1723
        %v1806 = vadd.f32 %v1376, %v1728
        %v1807 = vadd.f32 %v1377, %v1733
        %v1808 = vadd.f32 %v1378, %v1738
        %v1809 = vadd.f32 %v1379, %v1743
        %v1810 = vadd.f32 %v1380, %v1748
        %v1811 = vadd.f32 %v1381, %v1753
        %v1812 = vadd.f32 %v1382, %v1758
        %v1813 = vadd.f32 %v1383, %v1763
        %v1814 = vadd.f32 %v1384, %v1768
        %v1815 = vadd.f32 %v1385, %v1773
        %v1816 = vadd.f32 %v1386, %v1778
        %v1817 = vld [vmem:[%s167 + $0x13] sm:$0xff]
        %v1818 = vld [vmem:[%s167 + $0x1b] sm:$0xff]
        %v1819 = vld [vmem:[%s167 + $0x23] sm:$0xff]
        %v1820 = vld [vmem:[%s167 + $0x2b] sm:$0xff]
        %v1821 = vld [vmem:[%s167 + $0x33] sm:$0xff]
        %v1822 = vld [vmem:[%s167 + $0x3b] sm:$0xff]
        %v1823 = vld [vmem:[%s167 + $0x43] sm:$0xff]
        %v1824 = vld [vmem:[%s167 + $0x4b] sm:$0xff]
        %v1825 = vld [vmem:[%s167 + $0x53] sm:$0xff]
        %v1826 = vld [vmem:[%s167 + $0x5b] sm:$0xff]
        %v1827 = vld [vmem:[%s167 + $0x63] sm:$0xff]
        %v1828 = vld [vmem:[%s167 + $0x6b] sm:$0xff]
        %v1829 = vld [vmem:[%s167 + $0x73] sm:$0xff]
        %v1830 = vld [vmem:[%s167 + $0x7b] sm:$0xff]
        %v1831 = vld [vmem:[%s167 + $0x83] sm:$0xff]
        %v1832 = vld [vmem:[%s167 + $0x8b] sm:$0xff]
        %v1833 = vld [vmem:[%s167 + $0x93] sm:$0xff]
        %v1834 = vld [vmem:[%s167 + $0x9b] sm:$0xff]
        %v1835 = vld [vmem:[%s167 + $0xa3] sm:$0xff]
        %v1836 = vld [vmem:[%s167 + $0xab] sm:$0xff]
        %v1837 = vld [vmem:[%s167 + $0xb3] sm:$0xff]
        %v1838 = vld [vmem:[%s167 + $0xbb] sm:$0xff]
        %v1839 = vld [vmem:[%s167 + $0xc3] sm:$0xff]
        %v1840 = vld [vmem:[%s167 + $0xcb] sm:$0xff]
        %v1841 = vld [vmem:[%s167 + $0xd3] sm:$0xff]
        %v1842 = vld [vmem:[%s167 + $0xdb] sm:$0xff]
        %v1843 = vld [vmem:[%s167 + $0xe3] sm:$0xff]
        %v1844 = vld [vmem:[%s167 + $0xeb] sm:$0xff]
        %v1845 = vld [vmem:[%s167 + $0xf3] sm:$0xff]
        %v1846 = vld [vmem:[%s167 + $0xfb] sm:$0xff]
        %v1847 = vld [vmem:[%s167 + $0x103] sm:$0xff]
        %v1848 = vld [vmem:[%s167 + $0x10b] sm:$0xff]
        %v1849 = vld [vmem:[%s167 + $0x113] sm:$0xff]
        %v1850 = vld [vmem:[%s167 + $0x11b] sm:$0xff]
        %v1851 = vld [vmem:[%s167 + $0x123] sm:$0xff]
        %v1852 = vld [vmem:[%s167 + $0x12b] sm:$0x3f]
        %s1853 = scalar_lea.vmem %s1, 16
        %v1854 = vld [vmem:[%s1853] sm:$0x7]
        %v1856 = vsel %vm243, %v1817, 0
        %v1859 = vsel %vm243, %v1818, 0
        %v1862 = vsel %vm243, %v1819, 0
        %v1865 = vsel %vm243, %v1820, 0
        %v1868 = vsel %vm243, %v1821, 0
        %v1871 = vsel %vm243, %v1822, 0
        %v1874 = vsel %vm243, %v1823, 0
        %v1877 = vsel %vm243, %v1824, 0
        %v1880 = vsel %vm243, %v1825, 0
        %v1883 = vsel %vm243, %v1826, 0
        %v1886 = vsel %vm243, %v1827, 0
        %v1889 = vsel %vm243, %v1828, 0
        %v1892 = vsel %vm243, %v1829, 0
        %v1895 = vsel %vm243, %v1830, 0
        %v1898 = vsel %vm243, %v1831, 0
        %v1901 = vsel %vm243, %v1832, 0
        %v1904 = vsel %vm243, %v1833, 0
        %v1907 = vsel %vm243, %v1834, 0
        %v1910 = vsel %vm243, %v1835, 0
        %v1913 = vsel %vm243, %v1836, 0
        %v1916 = vsel %vm243, %v1837, 0
        %v1919 = vsel %vm243, %v1838, 0
        %v1922 = vsel %vm243, %v1839, 0
        %v1925 = vsel %vm243, %v1840, 0
        %v1928 = vsel %vm243, %v1841, 0
        %v1931 = vsel %vm243, %v1842, 0
        %v1934 = vsel %vm243, %v1843, 0
        %v1937 = vsel %vm243, %v1844, 0
        %v1940 = vsel %vm243, %v1845, 0
        %v1943 = vsel %vm243, %v1846, 0
        %v1946 = vsel %vm243, %v1847, 0
        %v1949 = vsel %vm243, %v1848, 0
        %v1952 = vsel %vm243, %v1849, 0
        %v1955 = vsel %vm243, %v1850, 0
        %v1958 = vsel %vm243, %v1851, 0
        %v1961 = vsel %vm243, %v1852, 0
        %v1964 = vsel %vm352, %v1854, 0
        %1966 = vmatprep.subr.mxu0 0.0
        %1967 = vmatpush1.msra.mxu0 %v1964
        %1968 = vmatprep.subr.mxu0 0.0
        %1969 = vmatpush1.msra.mxu0 0.0
        %1970 = vmatprep.subr.mxu0 0.0
        %1971 = vmatpush1.msra.mxu0 0.0
        %1972 = vmatprep.subr.mxu0 0.0
        %1973 = vmatpush1.msra.mxu0 0.0
        %1974 = vmatprep.subr.mxu0 0.0
        %1975 = vmatpush1.msra.mxu0 0.0
        %1976 = vmatprep.subr.mxu0 0.0
        %1977 = vmatpush1.msra.mxu0 0.0
        %1978 = vmatprep.subr.mxu0 0.0
        %1979 = vmatpush1.msra.mxu0 0.0
        %1980 = vmatprep.subr.mxu0 0.0
        %1981 = vmatpush1.msra.mxu0 0.0
        %1982 = vmatprep.subr.mxu0 0.0
        %1983 = vmatpush1.msra.mxu0 0.0
        %1984 = vmatprep.subr.mxu0 0.0
        %1985 = vmatpush1.msra.mxu0 0.0
        %1986 = vmatprep.subr.mxu0 0.0
        %1987 = vmatpush1.msra.mxu0 0.0
        %1988 = vmatprep.subr.mxu0 0.0
        %1989 = vmatpush1.msra.mxu0 0.0
        %1990 = vmatprep.subr.mxu0 0.0
        %1991 = vmatpush1.msra.mxu0 0.0
        %1992 = vmatprep.subr.mxu0 0.0
        %1993 = vmatpush1.msra.mxu0 0.0
        %1994 = vmatprep.subr.mxu0 0.0
        %1995 = vmatpush1.msra.mxu0 0.0
        %1996 = vmatprep.subr.mxu0 0.0
        %1997 = vmatpush1.msra.mxu0 0.0
        %1998 = vmatprep.subr.mxu0 0.0
        %1999 = vmatpush1.msra.mxu0 0.0
        %2000 = vmatprep.subr.mxu0 0.0
        %2001 = vmatpush1.msra.mxu0 0.0
        %2002 = vmatprep.subr.mxu0 0.0
        %2003 = vmatpush1.msra.mxu0 0.0
        %2004 = vmatprep.subr.mxu0 0.0
        %2005 = vmatpush1.msra.mxu0 0.0
        %2006 = vmatprep.subr.mxu0 0.0
        %2007 = vmatpush1.msra.mxu0 0.0
        %2008 = vmatprep.subr.mxu0 0.0
        %2009 = vmatpush1.msra.mxu0 0.0
        %2010 = vmatprep.subr.mxu0 0.0
        %2011 = vmatpush1.msra.mxu0 0.0
        %2012 = vmatprep.subr.mxu0 0.0
        %2013 = vmatpush1.msra.mxu0 0.0
        %2014 = vmatprep.subr.mxu0 0.0
        %2015 = vmatpush1.msra.mxu0 0.0
        %2016 = vmatprep.subr.mxu0 0.0
        %2017 = vmatpush1.msra.mxu0 0.0
        %2018 = vmatprep.subr.mxu0 0.0
        %2019 = vmatpush1.msra.mxu0 0.0
        %2020 = vmatprep.subr.mxu0 0.0
        %2021 = vmatpush1.msra.mxu0 0.0
        %2022 = vmatprep.subr.mxu0 0.0
        %2023 = vmatpush1.msra.mxu0 0.0
        %2024 = vmatprep.subr.mxu0 0.0
        %2025 = vmatpush1.msra.mxu0 0.0
        %2026 = vmatprep.subr.mxu0 0.0
        %2027 = vmatpush1.msra.mxu0 0.0
        %2028 = vmatprep.subr.mxu0 0.0
        %2029 = vmatpush1.msra.mxu0 0.0
        %2030 = vmatprep.mubr.f32.mxu0 0.0
        %2031 = vmatmul.mubr.f32.gmra.mrb[0].mxu0 %v1856
        %v2032 = vpop.f32.mrb[0].mxu0
        %v2033 = vadd.f32 0.0, %v2032
        %v2034 = vpop.f32.mrb[0].mxu0
        %2035 = vmatprep.mubr.f32.mxu0 0.0
        %2036 = vmatmul.mubr.f32.gmra.mrb[0].mxu0 %v1859
        %v2037 = vpop.f32.mrb[0].mxu0
        %v2038 = vadd.f32 0.0, %v2037
        %v2039 = vpop.f32.mrb[0].mxu0
        %2040 = vmatprep.mubr.f32.mxu0 0.0
        %2041 = vmatmul.mubr.f32.gmra.mrb[0].mxu0 %v1862
        %v2042 = vpop.f32.mrb[0].mxu0
        %v2043 = vadd.f32 0.0, %v2042
        %v2044 = vpop.f32.mrb[0].mxu0
        %2045 = vmatprep.mubr.f32.mxu0 0.0
        %2046 = vmatmul.mubr.f32.gmra.mrb[0].mxu0 %v1865
        %v2047 = vpop.f32.mrb[0].mxu0
        %v2048 = vadd.f32 0.0, %v2047
        %v2049 = vpop.f32.mrb[0].mxu0
        %2050 = vmatprep.mubr.f32.mxu0 0.0
        %2051 = vmatmul.mubr.f32.gmra.mrb[0].mxu0 %v1868
        %v2052 = vpop.f32.mrb[0].mxu0
        %v2053 = vadd.f32 0.0, %v2052
        %v2054 = vpop.f32.mrb[0].mxu0
        %2055 = vmatprep.mubr.f32.mxu0 0.0
        %2056 = vmatmul.mubr.f32.gmra.mrb[0].mxu0 %v1871
        %v2057 = vpop.f32.mrb[0].mxu0
        %v2058 = vadd.f32 0.0, %v2057
        %v2059 = vpop.f32.mrb[0].mxu0
        %2060 = vmatprep.mubr.f32.mxu0 0.0
        %2061 = vmatmul.mubr.f32.gmra.mrb[0].mxu0 %v1874
        %v2062 = vpop.f32.mrb[0].mxu0
        %v2063 = vadd.f32 0.0, %v2062
        %v2064 = vpop.f32.mrb[0].mxu0
        %2065 = vmatprep.mubr.f32.mxu0 0.0
        %2066 = vmatmul.mubr.f32.gmra.mrb[0].mxu0 %v1877
        %v2067 = vpop.f32.mrb[0].mxu0
        %v2068 = vadd.f32 0.0, %v2067
        %v2069 = vpop.f32.mrb[0].mxu0
        %2070 = vmatprep.mubr.f32.mxu0 0.0
        %2071 = vmatmul.mubr.f32.gmra.mrb[0].mxu0 %v1880
        %v2072 = vpop.f32.mrb[0].mxu0
        %v2073 = vadd.f32 0.0, %v2072
        %v2074 = vpop.f32.mrb[0].mxu0
        %2075 = vmatprep.mubr.f32.mxu0 0.0
        %2076 = vmatmul.mubr.f32.gmra.mrb[0].mxu0 %v1883
        %v2077 = vpop.f32.mrb[0].mxu0
        %v2078 = vadd.f32 0.0, %v2077
        %v2079 = vpop.f32.mrb[0].mxu0
        %2080 = vmatprep.mubr.f32.mxu0 0.0
        %2081 = vmatmul.mubr.f32.gmra.mrb[0].mxu0 %v1886
        %v2082 = vpop.f32.mrb[0].mxu0
        %v2083 = vadd.f32 0.0, %v2082
        %v2084 = vpop.f32.mrb[0].mxu0
        %2085 = vmatprep.mubr.f32.mxu0 0.0
        %2086 = vmatmul.mubr.f32.gmra.mrb[0].mxu0 %v1889
        %v2087 = vpop.f32.mrb[0].mxu0
        %v2088 = vadd.f32 0.0, %v2087
        %v2089 = vpop.f32.mrb[0].mxu0
        %2090 = vmatprep.mubr.f32.mxu0 0.0
        %2091 = vmatmul.mubr.f32.gmra.mrb[0].mxu0 %v1892
        %v2092 = vpop.f32.mrb[0].mxu0
        %v2093 = vadd.f32 0.0, %v2092
        %v2094 = vpop.f32.mrb[0].mxu0
        %2095 = vmatprep.mubr.f32.mxu0 0.0
        %2096 = vmatmul.mubr.f32.gmra.mrb[0].mxu0 %v1895
        %v2097 = vpop.f32.mrb[0].mxu0
        %v2098 = vadd.f32 0.0, %v2097
        %v2099 = vpop.f32.mrb[0].mxu0
        %2100 = vmatprep.mubr.f32.mxu0 0.0
        %2101 = vmatmul.mubr.f32.gmra.mrb[0].mxu0 %v1898
        %v2102 = vpop.f32.mrb[0].mxu0
        %v2103 = vadd.f32 0.0, %v2102
        %v2104 = vpop.f32.mrb[0].mxu0
        %2105 = vmatprep.mubr.f32.mxu0 0.0
        %2106 = vmatmul.mubr.f32.gmra.mrb[0].mxu0 %v1901
        %v2107 = vpop.f32.mrb[0].mxu0
        %v2108 = vadd.f32 0.0, %v2107
        %v2109 = vpop.f32.mrb[0].mxu0
        %2110 = vmatprep.mubr.f32.mxu0 0.0
        %2111 = vmatmul.mubr.f32.gmra.mrb[0].mxu0 %v1904
        %v2112 = vpop.f32.mrb[0].mxu0
        %v2113 = vadd.f32 0.0, %v2112
        %v2114 = vpop.f32.mrb[0].mxu0
        %2115 = vmatprep.mubr.f32.mxu0 0.0
        %2116 = vmatmul.mubr.f32.gmra.mrb[0].mxu0 %v1907
        %v2117 = vpop.f32.mrb[0].mxu0
        %v2118 = vadd.f32 0.0, %v2117
        %v2119 = vpop.f32.mrb[0].mxu0
        %2120 = vmatprep.mubr.f32.mxu0 0.0
        %2121 = vmatmul.mubr.f32.gmra.mrb[0].mxu0 %v1910
        %v2122 = vpop.f32.mrb[0].mxu0
        %v2123 = vadd.f32 0.0, %v2122
        %v2124 = vpop.f32.mrb[0].mxu0
        %2125 = vmatprep.mubr.f32.mxu0 0.0
        %2126 = vmatmul.mubr.f32.gmra.mrb[0].mxu0 %v1913
        %v2127 = vpop.f32.mrb[0].mxu0
        %v2128 = vadd.f32 0.0, %v2127
        %v2129 = vpop.f32.mrb[0].mxu0
        %2130 = vmatprep.mubr.f32.mxu0 0.0
        %2131 = vmatmul.mubr.f32.gmra.mrb[0].mxu0 %v1916
        %v2132 = vpop.f32.mrb[0].mxu0
        %v2133 = vadd.f32 0.0, %v2132
        %v2134 = vpop.f32.mrb[0].mxu0
        %2135 = vmatprep.mubr.f32.mxu0 0.0
        %2136 = vmatmul.mubr.f32.gmra.mrb[0].mxu0 %v1919
        %v2137 = vpop.f32.mrb[0].mxu0
        %v2138 = vadd.f32 0.0, %v2137
        %v2139 = vpop.f32.mrb[0].mxu0
        %2140 = vmatprep.mubr.f32.mxu0 0.0
        %2141 = vmatmul.mubr.f32.gmra.mrb[0].mxu0 %v1922
        %v2142 = vpop.f32.mrb[0].mxu0
        %v2143 = vadd.f32 0.0, %v2142
        %v2144 = vpop.f32.mrb[0].mxu0
        %2145 = vmatprep.mubr.f32.mxu0 0.0
        %2146 = vmatmul.mubr.f32.gmra.mrb[0].mxu0 %v1925
        %v2147 = vpop.f32.mrb[0].mxu0
        %v2148 = vadd.f32 0.0, %v2147
        %v2149 = vpop.f32.mrb[0].mxu0
        %2150 = vmatprep.mubr.f32.mxu0 0.0
        %2151 = vmatmul.mubr.f32.gmra.mrb[0].mxu0 %v1928
        %v2152 = vpop.f32.mrb[0].mxu0
        %v2153 = vadd.f32 0.0, %v2152
        %v2154 = vpop.f32.mrb[0].mxu0
        %2155 = vmatprep.mubr.f32.mxu0 0.0
        %2156 = vmatmul.mubr.f32.gmra.mrb[0].mxu0 %v1931
        %v2157 = vpop.f32.mrb[0].mxu0
        %v2158 = vadd.f32 0.0, %v2157
        %v2159 = vpop.f32.mrb[0].mxu0
        %2160 = vmatprep.mubr.f32.mxu0 0.0
        %2161 = vmatmul.mubr.f32.gmra.mrb[0].mxu0 %v1934
        %v2162 = vpop.f32.mrb[0].mxu0
        %v2163 = vadd.f32 0.0, %v2162
        %v2164 = vpop.f32.mrb[0].mxu0
        %2165 = vmatprep.mubr.f32.mxu0 0.0
        %2166 = vmatmul.mubr.f32.gmra.mrb[0].mxu0 %v1937
        %v2167 = vpop.f32.mrb[0].mxu0
        %v2168 = vadd.f32 0.0, %v2167
        %v2169 = vpop.f32.mrb[0].mxu0
        %2170 = vmatprep.mubr.f32.mxu0 0.0
        %2171 = vmatmul.mubr.f32.gmra.mrb[0].mxu0 %v1940
        %v2172 = vpop.f32.mrb[0].mxu0
        %v2173 = vadd.f32 0.0, %v2172
        %v2174 = vpop.f32.mrb[0].mxu0
        %2175 = vmatprep.mubr.f32.mxu0 0.0
        %2176 = vmatmul.mubr.f32.gmra.mrb[0].mxu0 %v1943
        %v2177 = vpop.f32.mrb[0].mxu0
        %v2178 = vadd.f32 0.0, %v2177
        %v2179 = vpop.f32.mrb[0].mxu0
        %2180 = vmatprep.mubr.f32.mxu0 0.0
        %2181 = vmatmul.mubr.f32.gmra.mrb[0].mxu0 %v1946
        %v2182 = vpop.f32.mrb[0].mxu0
        %v2183 = vadd.f32 0.0, %v2182
        %v2184 = vpop.f32.mrb[0].mxu0
        %2185 = vmatprep.mubr.f32.mxu0 0.0
        %2186 = vmatmul.mubr.f32.gmra.mrb[0].mxu0 %v1949
        %v2187 = vpop.f32.mrb[0].mxu0
        %v2188 = vadd.f32 0.0, %v2187
        %v2189 = vpop.f32.mrb[0].mxu0
        %2190 = vmatprep.mubr.f32.mxu0 0.0
        %2191 = vmatmul.mubr.f32.gmra.mrb[0].mxu0 %v1952
        %v2192 = vpop.f32.mrb[0].mxu0
        %v2193 = vadd.f32 0.0, %v2192
        %v2194 = vpop.f32.mrb[0].mxu0
        %2195 = vmatprep.mubr.f32.mxu0 0.0
        %2196 = vmatmul.mubr.f32.gmra.mrb[0].mxu0 %v1955
        %v2197 = vpop.f32.mrb[0].mxu0
        %v2198 = vadd.f32 0.0, %v2197
        %v2199 = vpop.f32.mrb[0].mxu0
        %2200 = vmatprep.mubr.f32.mxu0 0.0
        %2201 = vmatmul.mubr.f32.gmra.mrb[0].mxu0 %v1958
        %v2202 = vpop.f32.mrb[0].mxu0
        %v2203 = vadd.f32 0.0, %v2202
        %v2204 = vpop.f32.mrb[0].mxu0
        %2205 = vmatprep.mubr.f32.mxu0 0.0
        %2206 = vmatmul.mubr.f32.gmra.mrb[0].mxu0 %v1961
        %v2207 = vpop.f32.mrb[0].mxu0
        %v2208 = vadd.f32 0.0, %v2207
        %v2209 = vpop.f32.mrb[0].mxu0
        %2210 = vdwg.mxu0
        %v2211 = vadd.f32 %v1781, %v2033
        %v2212 = vadd.f32 %v1782, %v2038
        %v2213 = vadd.f32 %v1783, %v2043
        %v2214 = vadd.f32 %v1784, %v2048
        %v2215 = vadd.f32 %v1785, %v2053
        %v2216 = vadd.f32 %v1786, %v2058
        %v2217 = vadd.f32 %v1787, %v2063
        %v2218 = vadd.f32 %v1788, %v2068
        %v2219 = vadd.f32 %v1789, %v2073
        %v2220 = vadd.f32 %v1790, %v2078
        %v2221 = vadd.f32 %v1791, %v2083
        %v2222 = vadd.f32 %v1792, %v2088
        %v2223 = vadd.f32 %v1793, %v2093
        %v2224 = vadd.f32 %v1794, %v2098
        %v2225 = vadd.f32 %v1795, %v2103
        %v2226 = vadd.f32 %v1796, %v2108
        %v2227 = vadd.f32 %v1797, %v2113
        %v2228 = vadd.f32 %v1798, %v2118
        %v2229 = vadd.f32 %v1799, %v2123
        %v2230 = vadd.f32 %v1800, %v2128
        %v2231 = vadd.f32 %v1801, %v2133
        %v2232 = vadd.f32 %v1802, %v2138
        %v2233 = vadd.f32 %v1803, %v2143
        %v2234 = vadd.f32 %v1804, %v2148
        %v2235 = vadd.f32 %v1805, %v2153
        %v2236 = vadd.f32 %v1806, %v2158
        %v2237 = vadd.f32 %v1807, %v2163
        %v2238 = vadd.f32 %v1808, %v2168
        %v2239 = vadd.f32 %v1809, %v2173
        %v2240 = vadd.f32 %v1810, %v2178
        %v2241 = vadd.f32 %v1811, %v2183
        %v2242 = vadd.f32 %v1812, %v2188
        %v2243 = vadd.f32 %v1813, %v2193
        %v2244 = vadd.f32 %v1814, %v2198
        %v2245 = vadd.f32 %v1815, %v2203
        %v2246 = vadd.f32 %v1816, %v2208
        %v2247 = vld [vmem:[%s167 + $0x14] sm:$0xff]
        %v2248 = vld [vmem:[%s167 + $0x1c] sm:$0xff]
        %v2249 = vld [vmem:[%s167 + $0x24] sm:$0xff]
        %v2250 = vld [vmem:[%s167 + $0x2c] sm:$0xff]
        %v2251 = vld [vmem:[%s167 + $0x34] sm:$0xff]
        %v2252 = vld [vmem:[%s167 + $0x3c] sm:$0xff]
        %v2253 = vld [vmem:[%s167 + $0x44] sm:$0xff]
        %v2254 = vld [vmem:[%s167 + $0x4c] sm:$0xff]
        %v2255 = vld [vmem:[%s167 + $0x54] sm:$0xff]
        %v2256 = vld [vmem:[%s167 + $0x5c] sm:$0xff]
        %v2257 = vld [vmem:[%s167 + $0x64] sm:$0xff]
        %v2258 = vld [vmem:[%s167 + $0x6c] sm:$0xff]
        %v2259 = vld [vmem:[%s167 + $0x74] sm:$0xff]
        %v2260 = vld [vmem:[%s167 + $0x7c] sm:$0xff]
        %v2261 = vld [vmem:[%s167 + $0x84] sm:$0xff]
        %v2262 = vld [vmem:[%s167 + $0x8c] sm:$0xff]
        %v2263 = vld [vmem:[%s167 + $0x94] sm:$0xff]
        %v2264 = vld [vmem:[%s167 + $0x9c] sm:$0xff]
        %v2265 = vld [vmem:[%s167 + $0xa4] sm:$0xff]
        %v2266 = vld [vmem:[%s167 + $0xac] sm:$0xff]
        %v2267 = vld [vmem:[%s167 + $0xb4] sm:$0xff]
        %v2268 = vld [vmem:[%s167 + $0xbc] sm:$0xff]
        %v2269 = vld [vmem:[%s167 + $0xc4] sm:$0xff]
        %v2270 = vld [vmem:[%s167 + $0xcc] sm:$0xff]
        %v2271 = vld [vmem:[%s167 + $0xd4] sm:$0xff]
        %v2272 = vld [vmem:[%s167 + $0xdc] sm:$0xff]
        %v2273 = vld [vmem:[%s167 + $0xe4] sm:$0xff]
        %v2274 = vld [vmem:[%s167 + $0xec] sm:$0xff]
        %v2275 = vld [vmem:[%s167 + $0xf4] sm:$0xff]
        %v2276 = vld [vmem:[%s167 + $0xfc] sm:$0xff]
        %v2277 = vld [vmem:[%s167 + $0x104] sm:$0xff]
        %v2278 = vld [vmem:[%s167 + $0x10c] sm:$0xff]
        %v2279 = vld [vmem:[%s167 + $0x114] sm:$0xff]
        %v2280 = vld [vmem:[%s167 + $0x11c] sm:$0xff]
        %v2281 = vld [vmem:[%s167 + $0x124] sm:$0xff]
        %v2282 = vld [vmem:[%s167 + $0x12c] sm:$0x3f]
        %s2283 = scalar_lea.vmem %s1, 20
        %v2284 = vld [vmem:[%s2283] sm:$0x7]
        %v2286 = vsel %vm243, %v2247, 0
        %v2289 = vsel %vm243, %v2248, 0
        %v2292 = vsel %vm243, %v2249, 0
        %v2295 = vsel %vm243, %v2250, 0
        %v2298 = vsel %vm243, %v2251, 0
        %v2301 = vsel %vm243, %v2252, 0
        %v2304 = vsel %vm243, %v2253, 0
        %v2307 = vsel %vm243, %v2254, 0
        %v2310 = vsel %vm243, %v2255, 0
        %v2313 = vsel %vm243, %v2256, 0
        %v2316 = vsel %vm243, %v2257, 0
        %v2319 = vsel %vm243, %v2258, 0
        %v2322 = vsel %vm243, %v2259, 0
        %v2325 = vsel %vm243, %v2260, 0
        %v2328 = vsel %vm243, %v2261, 0
        %v2331 = vsel %vm243, %v2262, 0
        %v2334 = vsel %vm243, %v2263, 0
        %v2337 = vsel %vm243, %v2264, 0
        %v2340 = vsel %vm243, %v2265, 0
        %v2343 = vsel %vm243, %v2266, 0
        %v2346 = vsel %vm243, %v2267, 0
        %v2349 = vsel %vm243, %v2268, 0
        %v2352 = vsel %vm243, %v2269, 0
        %v2355 = vsel %vm243, %v2270, 0
        %v2358 = vsel %vm243, %v2271, 0
        %v2361 = vsel %vm243, %v2272, 0
        %v2364 = vsel %vm243, %v2273, 0
        %v2367 = vsel %vm243, %v2274, 0
        %v2370 = vsel %vm243, %v2275, 0
        %v2373 = vsel %vm243, %v2276, 0
        %v2376 = vsel %vm243, %v2277, 0
        %v2379 = vsel %vm243, %v2278, 0
        %v2382 = vsel %vm243, %v2279, 0
        %v2385 = vsel %vm243, %v2280, 0
        %v2388 = vsel %vm243, %v2281, 0
        %v2391 = vsel %vm243, %v2282, 0
        %v2394 = vsel %vm352, %v2284, 0
        %2396 = vmatprep.subr.mxu0 0.0
        %2397 = vmatpush1.msra.mxu0 %v2394
        %2398 = vmatprep.subr.mxu0 0.0
        %2399 = vmatpush1.msra.mxu0 0.0
        %2400 = vmatprep.subr.mxu0 0.0
        %2401 = vmatpush1.msra.mxu0 0.0
        %2402 = vmatprep.subr.mxu0 0.0
        %2403 = vmatpush1.msra.mxu0 0.0
        %2404 = vmatprep.subr.mxu0 0.0
        %2405 = vmatpush1.msra.mxu0 0.0
        %2406 = vmatprep.subr.mxu0 0.0
        %2407 = vmatpush1.msra.mxu0 0.0
        %2408 = vmatprep.subr.mxu0 0.0
        %2409 = vmatpush1.msra.mxu0 0.0
        %2410 = vmatprep.subr.mxu0 0.0
        %2411 = vmatpush1.msra.mxu0 0.0
        %2412 = vmatprep.subr.mxu0 0.0
        %2413 = vmatpush1.msra.mxu0 0.0
        %2414 = vmatprep.subr.mxu0 0.0
        %2415 = vmatpush1.msra.mxu0 0.0
        %2416 = vmatprep.subr.mxu0 0.0
        %2417 = vmatpush1.msra.mxu0 0.0
        %2418 = vmatprep.subr.mxu0 0.0
        %2419 = vmatpush1.msra.mxu0 0.0
        %2420 = vmatprep.subr.mxu0 0.0
        %2421 = vmatpush1.msra.mxu0 0.0
        %2422 = vmatprep.subr.mxu0 0.0
        %2423 = vmatpush1.msra.mxu0 0.0
        %2424 = vmatprep.subr.mxu0 0.0
        %2425 = vmatpush1.msra.mxu0 0.0
        %2426 = vmatprep.subr.mxu0 0.0
        %2427 = vmatpush1.msra.mxu0 0.0
        %2428 = vmatprep.subr.mxu0 0.0
        %2429 = vmatpush1.msra.mxu0 0.0
        %2430 = vmatprep.subr.mxu0 0.0
        %2431 = vmatpush1.msra.mxu0 0.0
        %2432 = vmatprep.subr.mxu0 0.0
        %2433 = vmatpush1.msra.mxu0 0.0
        %2434 = vmatprep.subr.mxu0 0.0
        %2435 = vmatpush1.msra.mxu0 0.0
        %2436 = vmatprep.subr.mxu0 0.0
        %2437 = vmatpush1.msra.mxu0 0.0
        %2438 = vmatprep.subr.mxu0 0.0
        %2439 = vmatpush1.msra.mxu0 0.0
        %2440 = vmatprep.subr.mxu0 0.0
        %2441 = vmatpush1.msra.mxu0 0.0
        %2442 = vmatprep.subr.mxu0 0.0
        %2443 = vmatpush1.msra.mxu0 0.0
        %2444 = vmatprep.subr.mxu0 0.0
        %2445 = vmatpush1.msra.mxu0 0.0
        %2446 = vmatprep.subr.mxu0 0.0
        %2447 = vmatpush1.msra.mxu0 0.0
        %2448 = vmatprep.subr.mxu0 0.0
        %2449 = vmatpush1.msra.mxu0 0.0
        %2450 = vmatprep.subr.mxu0 0.0
        %2451 = vmatpush1.msra.mxu0 0.0
        %2452 = vmatprep.subr.mxu0 0.0
        %2453 = vmatpush1.msra.mxu0 0.0
        %2454 = vmatprep.subr.mxu0 0.0
        %2455 = vmatpush1.msra.mxu0 0.0
        %2456 = vmatprep.subr.mxu0 0.0
        %2457 = vmatpush1.msra.mxu0 0.0
        %2458 = vmatprep.subr.mxu0 0.0
        %2459 = vmatpush1.msra.mxu0 0.0
        %2460 = vmatprep.mubr.f32.mxu0 0.0
        %2461 = vmatmul.mubr.f32.gmra.mrb[0].mxu0 %v2286
        %v2462 = vpop.f32.mrb[0].mxu0
        %v2463 = vadd.f32 0.0, %v2462
        %v2464 = vpop.f32.mrb[0].mxu0
        %2465 = vmatprep.mubr.f32.mxu0 0.0
        %2466 = vmatmul.mubr.f32.gmra.mrb[0].mxu0 %v2289
        %v2467 = vpop.f32.mrb[0].mxu0
        %v2468 = vadd.f32 0.0, %v2467
        %v2469 = vpop.f32.mrb[0].mxu0
        %2470 = vmatprep.mubr.f32.mxu0 0.0
        %2471 = vmatmul.mubr.f32.gmra.mrb[0].mxu0 %v2292
        %v2472 = vpop.f32.mrb[0].mxu0
        %v2473 = vadd.f32 0.0, %v2472
        %v2474 = vpop.f32.mrb[0].mxu0
        %2475 = vmatprep.mubr.f32.mxu0 0.0
        %2476 = vmatmul.mubr.f32.gmra.mrb[0].mxu0 %v2295
        %v2477 = vpop.f32.mrb[0].mxu0
        %v2478 = vadd.f32 0.0, %v2477
        %v2479 = vpop.f32.mrb[0].mxu0
        %2480 = vmatprep.mubr.f32.mxu0 0.0
        %2481 = vmatmul.mubr.f32.gmra.mrb[0].mxu0 %v2298
        %v2482 = vpop.f32.mrb[0].mxu0
        %v2483 = vadd.f32 0.0, %v2482
        %v2484 = vpop.f32.mrb[0].mxu0
        %2485 = vmatprep.mubr.f32.mxu0 0.0
        %2486 = vmatmul.mubr.f32.gmra.mrb[0].mxu0 %v2301
        %v2487 = vpop.f32.mrb[0].mxu0
        %v2488 = vadd.f32 0.0, %v2487
        %v2489 = vpop.f32.mrb[0].mxu0
        %2490 = vmatprep.mubr.f32.mxu0 0.0
        %2491 = vmatmul.mubr.f32.gmra.mrb[0].mxu0 %v2304
        %v2492 = vpop.f32.mrb[0].mxu0
        %v2493 = vadd.f32 0.0, %v2492
        %v2494 = vpop.f32.mrb[0].mxu0
        %2495 = vmatprep.mubr.f32.mxu0 0.0
        %2496 = vmatmul.mubr.f32.gmra.mrb[0].mxu0 %v2307
        %v2497 = vpop.f32.mrb[0].mxu0
        %v2498 = vadd.f32 0.0, %v2497
        %v2499 = vpop.f32.mrb[0].mxu0
        %2500 = vmatprep.mubr.f32.mxu0 0.0
        %2501 = vmatmul.mubr.f32.gmra.mrb[0].mxu0 %v2310
        %v2502 = vpop.f32.mrb[0].mxu0
        %v2503 = vadd.f32 0.0, %v2502
        %v2504 = vpop.f32.mrb[0].mxu0
        %2505 = vmatprep.mubr.f32.mxu0 0.0
        %2506 = vmatmul.mubr.f32.gmra.mrb[0].mxu0 %v2313
        %v2507 = vpop.f32.mrb[0].mxu0
        %v2508 = vadd.f32 0.0, %v2507
        %v2509 = vpop.f32.mrb[0].mxu0
        %2510 = vmatprep.mubr.f32.mxu0 0.0
        %2511 = vmatmul.mubr.f32.gmra.mrb[0].mxu0 %v2316
        %v2512 = vpop.f32.mrb[0].mxu0
        %v2513 = vadd.f32 0.0, %v2512
        %v2514 = vpop.f32.mrb[0].mxu0
        %2515 = vmatprep.mubr.f32.mxu0 0.0
        %2516 = vmatmul.mubr.f32.gmra.mrb[0].mxu0 %v2319
        %v2517 = vpop.f32.mrb[0].mxu0
        %v2518 = vadd.f32 0.0, %v2517
        %v2519 = vpop.f32.mrb[0].mxu0
        %2520 = vmatprep.mubr.f32.mxu0 0.0
        %2521 = vmatmul.mubr.f32.gmra.mrb[0].mxu0 %v2322
        %v2522 = vpop.f32.mrb[0].mxu0
        %v2523 = vadd.f32 0.0, %v2522
        %v2524 = vpop.f32.mrb[0].mxu0
        %2525 = vmatprep.mubr.f32.mxu0 0.0
        %2526 = vmatmul.mubr.f32.gmra.mrb[0].mxu0 %v2325
        %v2527 = vpop.f32.mrb[0].mxu0
        %v2528 = vadd.f32 0.0, %v2527
        %v2529 = vpop.f32.mrb[0].mxu0
        %2530 = vmatprep.mubr.f32.mxu0 0.0
        %2531 = vmatmul.mubr.f32.gmra.mrb[0].mxu0 %v2328
        %v2532 = vpop.f32.mrb[0].mxu0
        %v2533 = vadd.f32 0.0, %v2532
        %v2534 = vpop.f32.mrb[0].mxu0
        %2535 = vmatprep.mubr.f32.mxu0 0.0
        %2536 = vmatmul.mubr.f32.gmra.mrb[0].mxu0 %v2331
        %v2537 = vpop.f32.mrb[0].mxu0
        %v2538 = vadd.f32 0.0, %v2537
        %v2539 = vpop.f32.mrb[0].mxu0
        %2540 = vmatprep.mubr.f32.mxu0 0.0
        %2541 = vmatmul.mubr.f32.gmra.mrb[0].mxu0 %v2334
        %v2542 = vpop.f32.mrb[0].mxu0
        %v2543 = vadd.f32 0.0, %v2542
        %v2544 = vpop.f32.mrb[0].mxu0
        %2545 = vmatprep.mubr.f32.mxu0 0.0
        %2546 = vmatmul.mubr.f32.gmra.mrb[0].mxu0 %v2337
        %v2547 = vpop.f32.mrb[0].mxu0
        %v2548 = vadd.f32 0.0, %v2547
        %v2549 = vpop.f32.mrb[0].mxu0
        %2550 = vmatprep.mubr.f32.mxu0 0.0
        %2551 = vmatmul.mubr.f32.gmra.mrb[0].mxu0 %v2340
        %v2552 = vpop.f32.mrb[0].mxu0
        %v2553 = vadd.f32 0.0, %v2552
        %v2554 = vpop.f32.mrb[0].mxu0
        %2555 = vmatprep.mubr.f32.mxu0 0.0
        %2556 = vmatmul.mubr.f32.gmra.mrb[0].mxu0 %v2343
        %v2557 = vpop.f32.mrb[0].mxu0
        %v2558 = vadd.f32 0.0, %v2557
        %v2559 = vpop.f32.mrb[0].mxu0
        %2560 = vmatprep.mubr.f32.mxu0 0.0
        %2561 = vmatmul.mubr.f32.gmra.mrb[0].mxu0 %v2346
        %v2562 = vpop.f32.mrb[0].mxu0
        %v2563 = vadd.f32 0.0, %v2562
        %v2564 = vpop.f32.mrb[0].mxu0
        %2565 = vmatprep.mubr.f32.mxu0 0.0
        %2566 = vmatmul.mubr.f32.gmra.mrb[0].mxu0 %v2349
        %v2567 = vpop.f32.mrb[0].mxu0
        %v2568 = vadd.f32 0.0, %v2567
        %v2569 = vpop.f32.mrb[0].mxu0
        %2570 = vmatprep.mubr.f32.mxu0 0.0
        %2571 = vmatmul.mubr.f32.gmra.mrb[0].mxu0 %v2352
        %v2572 = vpop.f32.mrb[0].mxu0
        %v2573 = vadd.f32 0.0, %v2572
        %v2574 = vpop.f32.mrb[0].mxu0
        %2575 = vmatprep.mubr.f32.mxu0 0.0
        %2576 = vmatmul.mubr.f32.gmra.mrb[0].mxu0 %v2355
        %v2577 = vpop.f32.mrb[0].mxu0
        %v2578 = vadd.f32 0.0, %v2577
        %v2579 = vpop.f32.mrb[0].mxu0
        %2580 = vmatprep.mubr.f32.mxu0 0.0
        %2581 = vmatmul.mubr.f32.gmra.mrb[0].mxu0 %v2358
        %v2582 = vpop.f32.mrb[0].mxu0
        %v2583 = vadd.f32 0.0, %v2582
        %v2584 = vpop.f32.mrb[0].mxu0
        %2585 = vmatprep.mubr.f32.mxu0 0.0
        %2586 = vmatmul.mubr.f32.gmra.mrb[0].mxu0 %v2361
        %v2587 = vpop.f32.mrb[0].mxu0
        %v2588 = vadd.f32 0.0, %v2587
        %v2589 = vpop.f32.mrb[0].mxu0
        %2590 = vmatprep.mubr.f32.mxu0 0.0
        %2591 = vmatmul.mubr.f32.gmra.mrb[0].mxu0 %v2364
        %v2592 = vpop.f32.mrb[0].mxu0
        %v2593 = vadd.f32 0.0, %v2592
        %v2594 = vpop.f32.mrb[0].mxu0
        %2595 = vmatprep.mubr.f32.mxu0 0.0
        %2596 = vmatmul.mubr.f32.gmra.mrb[0].mxu0 %v2367
        %v2597 = vpop.f32.mrb[0].mxu0
        %v2598 = vadd.f32 0.0, %v2597
        %v2599 = vpop.f32.mrb[0].mxu0
        %2600 = vmatprep.mubr.f32.mxu0 0.0
        %2601 = vmatmul.mubr.f32.gmra.mrb[0].mxu0 %v2370
        %v2602 = vpop.f32.mrb[0].mxu0
        %v2603 = vadd.f32 0.0, %v2602
        %v2604 = vpop.f32.mrb[0].mxu0
        %2605 = vmatprep.mubr.f32.mxu0 0.0
        %2606 = vmatmul.mubr.f32.gmra.mrb[0].mxu0 %v2373
        %v2607 = vpop.f32.mrb[0].mxu0
        %v2608 = vadd.f32 0.0, %v2607
        %v2609 = vpop.f32.mrb[0].mxu0
        %2610 = vmatprep.mubr.f32.mxu0 0.0
        %2611 = vmatmul.mubr.f32.gmra.mrb[0].mxu0 %v2376
        %v2612 = vpop.f32.mrb[0].mxu0
        %v2613 = vadd.f32 0.0, %v2612
        %v2614 = vpop.f32.mrb[0].mxu0
        %2615 = vmatprep.mubr.f32.mxu0 0.0
        %2616 = vmatmul.mubr.f32.gmra.mrb[0].mxu0 %v2379
        %v2617 = vpop.f32.mrb[0].mxu0
        %v2618 = vadd.f32 0.0, %v2617
        %v2619 = vpop.f32.mrb[0].mxu0
        %2620 = vmatprep.mubr.f32.mxu0 0.0
        %2621 = vmatmul.mubr.f32.gmra.mrb[0].mxu0 %v2382
        %v2622 = vpop.f32.mrb[0].mxu0
        %v2623 = vadd.f32 0.0, %v2622
        %v2624 = vpop.f32.mrb[0].mxu0
        %2625 = vmatprep.mubr.f32.mxu0 0.0
        %2626 = vmatmul.mubr.f32.gmra.mrb[0].mxu0 %v2385
        %v2627 = vpop.f32.mrb[0].mxu0
        %v2628 = vadd.f32 0.0, %v2627
        %v2629 = vpop.f32.mrb[0].mxu0
        %2630 = vmatprep.mubr.f32.mxu0 0.0
        %2631 = vmatmul.mubr.f32.gmra.mrb[0].mxu0 %v2388
        %v2632 = vpop.f32.mrb[0].mxu0
        %v2633 = vadd.f32 0.0, %v2632
        %v2634 = vpop.f32.mrb[0].mxu0
        %2635 = vmatprep.mubr.f32.mxu0 0.0
        %2636 = vmatmul.mubr.f32.gmra.mrb[0].mxu0 %v2391
        %v2637 = vpop.f32.mrb[0].mxu0
        %v2638 = vadd.f32 0.0, %v2637
        %v2639 = vpop.f32.mrb[0].mxu0
        %2640 = vdwg.mxu0
        %v2641 = vadd.f32 %v2211, %v2463
        %v2642 = vadd.f32 %v2212, %v2468
        %v2643 = vadd.f32 %v2213, %v2473
        %v2644 = vadd.f32 %v2214, %v2478
        %v2645 = vadd.f32 %v2215, %v2483
        %v2646 = vadd.f32 %v2216, %v2488
        %v2647 = vadd.f32 %v2217, %v2493
        %v2648 = vadd.f32 %v2218, %v2498
        %v2649 = vadd.f32 %v2219, %v2503
        %v2650 = vadd.f32 %v2220, %v2508
        %v2651 = vadd.f32 %v2221, %v2513
        %v2652 = vadd.f32 %v2222, %v2518
        %v2653 = vadd.f32 %v2223, %v2523
        %v2654 = vadd.f32 %v2224, %v2528
        %v2655 = vadd.f32 %v2225, %v2533
        %v2656 = vadd.f32 %v2226, %v2538
        %v2657 = vadd.f32 %v2227, %v2543
        %v2658 = vadd.f32 %v2228, %v2548
        %v2659 = vadd.f32 %v2229, %v2553
        %v2660 = vadd.f32 %v2230, %v2558
        %v2661 = vadd.f32 %v2231, %v2563
        %v2662 = vadd.f32 %v2232, %v2568
        %v2663 = vadd.f32 %v2233, %v2573
        %v2664 = vadd.f32 %v2234, %v2578
        %v2665 = vadd.f32 %v2235, %v2583
        %v2666 = vadd.f32 %v2236, %v2588
        %v2667 = vadd.f32 %v2237, %v2593
        %v2668 = vadd.f32 %v2238, %v2598
        %v2669 = vadd.f32 %v2239, %v2603
        %v2670 = vadd.f32 %v2240, %v2608
        %v2671 = vadd.f32 %v2241, %v2613
        %v2672 = vadd.f32 %v2242, %v2618
        %v2673 = vadd.f32 %v2243, %v2623
        %v2674 = vadd.f32 %v2244, %v2628
        %v2675 = vadd.f32 %v2245, %v2633
        %v2676 = vadd.f32 %v2246, %v2638
        %v2677 = vld [vmem:[%s167 + $0x24] sm:$0xff]
        %v2678 = vld [vmem:[%s167 + $0x2c] sm:$0xff]
        %v2679 = vld [vmem:[%s167 + $0x34] sm:$0xff]
        %v2680 = vld [vmem:[%s167 + $0x3c] sm:$0xff]
        %v2681 = vld [vmem:[%s167 + $0x44] sm:$0xff]
        %v2682 = vld [vmem:[%s167 + $0x4c] sm:$0xff]
        %v2683 = vld [vmem:[%s167 + $0x54] sm:$0xff]
        %v2684 = vld [vmem:[%s167 + $0x5c] sm:$0xff]
        %v2685 = vld [vmem:[%s167 + $0x64] sm:$0xff]
        %v2686 = vld [vmem:[%s167 + $0x6c] sm:$0xff]
        %v2687 = vld [vmem:[%s167 + $0x74] sm:$0xff]
        %v2688 = vld [vmem:[%s167 + $0x7c] sm:$0xff]
        %v2689 = vld [vmem:[%s167 + $0x84] sm:$0xff]
        %v2690 = vld [vmem:[%s167 + $0x8c] sm:$0xff]
        %v2691 = vld [vmem:[%s167 + $0x94] sm:$0xff]
        %v2692 = vld [vmem:[%s167 + $0x9c] sm:$0xff]
        %v2693 = vld [vmem:[%s167 + $0xa4] sm:$0xff]
        %v2694 = vld [vmem:[%s167 + $0xac] sm:$0xff]
        %v2695 = vld [vmem:[%s167 + $0xb4] sm:$0xff]
        %v2696 = vld [vmem:[%s167 + $0xbc] sm:$0xff]
        %v2697 = vld [vmem:[%s167 + $0xc4] sm:$0xff]
        %v2698 = vld [vmem:[%s167 + $0xcc] sm:$0xff]
        %v2699 = vld [vmem:[%s167 + $0xd4] sm:$0xff]
        %v2700 = vld [vmem:[%s167 + $0xdc] sm:$0xff]
        %v2701 = vld [vmem:[%s167 + $0xe4] sm:$0xff]
        %v2702 = vld [vmem:[%s167 + $0xec] sm:$0xff]
        %v2703 = vld [vmem:[%s167 + $0xf4] sm:$0xff]
        %v2704 = vld [vmem:[%s167 + $0xfc] sm:$0xff]
        %v2705 = vld [vmem:[%s167 + $0x104] sm:$0xff]
        %v2706 = vld [vmem:[%s167 + $0x10c] sm:$0xff]
        %v2707 = vld [vmem:[%s167 + $0x114] sm:$0xff]
        %v2708 = vld [vmem:[%s167 + $0x11c] sm:$0xff]
        %v2709 = vld [vmem:[%s167 + $0x124] sm:$0xff]
        %v2710 = vld [vmem:[%s167 + $0x12c] sm:$0xff]
        %v2711 = vld [vmem:[%s167 + $0x134] sm:$0xff]
        %v2712 = vld [vmem:[%s167 + $0x13c] sm:$0x3f]
        %s2713 = scalar_lea.vmem %s1, 24
        %v2714 = vld [vmem:[%s2713] sm:$0x7]
        %v2716 = vsel %vm243, %v2677, 0
        %v2719 = vsel %vm243, %v2678, 0
        %v2722 = vsel %vm243, %v2679, 0
        %v2725 = vsel %vm243, %v2680, 0
        %v2728 = vsel %vm243, %v2681, 0
        %v2731 = vsel %vm243, %v2682, 0
        %v2734 = vsel %vm243, %v2683, 0
        %v2737 = vsel %vm243, %v2684, 0
        %v2740 = vsel %vm243, %v2685, 0
        %v2743 = vsel %vm243, %v2686, 0
        %v2746 = vsel %vm243, %v2687, 0
        %v2749 = vsel %vm243, %v2688, 0
        %v2752 = vsel %vm243, %v2689, 0
        %v2755 = vsel %vm243, %v2690, 0
        %v2758 = vsel %vm243, %v2691, 0
        %v2761 = vsel %vm243, %v2692, 0
        %v2764 = vsel %vm243, %v2693, 0
        %v2767 = vsel %vm243, %v2694, 0
        %v2770 = vsel %vm243, %v2695, 0
        %v2773 = vsel %vm243, %v2696, 0
        %v2776 = vsel %vm243, %v2697, 0
        %v2779 = vsel %vm243, %v2698, 0
        %v2782 = vsel %vm243, %v2699, 0
        %v2785 = vsel %vm243, %v2700, 0
        %v2788 = vsel %vm243, %v2701, 0
        %v2791 = vsel %vm243, %v2702, 0
        %v2794 = vsel %vm243, %v2703, 0
        %v2797 = vsel %vm243, %v2704, 0
        %v2800 = vsel %vm243, %v2705, 0
        %v2803 = vsel %vm243, %v2706, 0
        %v2806 = vsel %vm243, %v2707, 0
        %v2809 = vsel %vm243, %v2708, 0
        %v2812 = vsel %vm243, %v2709, 0
        %v2815 = vsel %vm243, %v2710, 0
        %v2818 = vsel %vm243, %v2711, 0
        %v2821 = vsel %vm243, %v2712, 0
        %v2824 = vsel %vm352, %v2714, 0
        %2826 = vmatprep.subr.mxu0 0.0
        %2827 = vmatpush1.msra.mxu0 %v2824
        %2828 = vmatprep.subr.mxu0 0.0
        %2829 = vmatpush1.msra.mxu0 0.0
        %2830 = vmatprep.subr.mxu0 0.0
        %2831 = vmatpush1.msra.mxu0 0.0
        %2832 = vmatprep.subr.mxu0 0.0
        %2833 = vmatpush1.msra.mxu0 0.0
        %2834 = vmatprep.subr.mxu0 0.0
        %2835 = vmatpush1.msra.mxu0 0.0
        %2836 = vmatprep.subr.mxu0 0.0
        %2837 = vmatpush1.msra.mxu0 0.0
        %2838 = vmatprep.subr.mxu0 0.0
        %2839 = vmatpush1.msra.mxu0 0.0
        %2840 = vmatprep.subr.mxu0 0.0
        %2841 = vmatpush1.msra.mxu0 0.0
        %2842 = vmatprep.subr.mxu0 0.0
        %2843 = vmatpush1.msra.mxu0 0.0
        %2844 = vmatprep.subr.mxu0 0.0
        %2845 = vmatpush1.msra.mxu0 0.0
        %2846 = vmatprep.subr.mxu0 0.0
        %2847 = vmatpush1.msra.mxu0 0.0
        %2848 = vmatprep.subr.mxu0 0.0
        %2849 = vmatpush1.msra.mxu0 0.0
        %2850 = vmatprep.subr.mxu0 0.0
        %2851 = vmatpush1.msra.mxu0 0.0
        %2852 = vmatprep.subr.mxu0 0.0
        %2853 = vmatpush1.msra.mxu0 0.0
        %2854 = vmatprep.subr.mxu0 0.0
        %2855 = vmatpush1.msra.mxu0 0.0
        %2856 = vmatprep.subr.mxu0 0.0
        %2857 = vmatpush1.msra.mxu0 0.0
        %2858 = vmatprep.subr.mxu0 0.0
        %2859 = vmatpush1.msra.mxu0 0.0
        %2860 = vmatprep.subr.mxu0 0.0
        %2861 = vmatpush1.msra.mxu0 0.0
        %2862 = vmatprep.subr.mxu0 0.0
        %2863 = vmatpush1.msra.mxu0 0.0
        %2864 = vmatprep.subr.mxu0 0.0
        %2865 = vmatpush1.msra.mxu0 0.0
        %2866 = vmatprep.subr.mxu0 0.0
        %2867 = vmatpush1.msra.mxu0 0.0
        %2868 = vmatprep.subr.mxu0 0.0
        %2869 = vmatpush1.msra.mxu0 0.0
        %2870 = vmatprep.subr.mxu0 0.0
        %2871 = vmatpush1.msra.mxu0 0.0
        %2872 = vmatprep.subr.mxu0 0.0
        %2873 = vmatpush1.msra.mxu0 0.0
        %2874 = vmatprep.subr.mxu0 0.0
        %2875 = vmatpush1.msra.mxu0 0.0
        %2876 = vmatprep.subr.mxu0 0.0
        %2877 = vmatpush1.msra.mxu0 0.0
        %2878 = vmatprep.subr.mxu0 0.0
        %2879 = vmatpush1.msra.mxu0 0.0
        %2880 = vmatprep.subr.mxu0 0.0
        %2881 = vmatpush1.msra.mxu0 0.0
        %2882 = vmatprep.subr.mxu0 0.0
        %2883 = vmatpush1.msra.mxu0 0.0
        %2884 = vmatprep.subr.mxu0 0.0
        %2885 = vmatpush1.msra.mxu0 0.0
        %2886 = vmatprep.subr.mxu0 0.0
        %2887 = vmatpush1.msra.mxu0 0.0
        %2888 = vmatprep.subr.mxu0 0.0
        %2889 = vmatpush1.msra.mxu0 0.0
        %2890 = vmatprep.mubr.f32.mxu0 0.0
        %2891 = vmatmul.mubr.f32.gmra.mrb[0].mxu0 %v2716
        %v2892 = vpop.f32.mrb[0].mxu0
        %v2893 = vadd.f32 0.0, %v2892
        %v2894 = vpop.f32.mrb[0].mxu0
        %2895 = vmatprep.mubr.f32.mxu0 0.0
        %2896 = vmatmul.mubr.f32.gmra.mrb[0].mxu0 %v2719
        %v2897 = vpop.f32.mrb[0].mxu0
        %v2898 = vadd.f32 0.0, %v2897
        %v2899 = vpop.f32.mrb[0].mxu0
        %2900 = vmatprep.mubr.f32.mxu0 0.0
        %2901 = vmatmul.mubr.f32.gmra.mrb[0].mxu0 %v2722
        %v2902 = vpop.f32.mrb[0].mxu0
        %v2903 = vadd.f32 0.0, %v2902
        %v2904 = vpop.f32.mrb[0].mxu0
        %2905 = vmatprep.mubr.f32.mxu0 0.0
        %2906 = vmatmul.mubr.f32.gmra.mrb[0].mxu0 %v2725
        %v2907 = vpop.f32.mrb[0].mxu0
        %v2908 = vadd.f32 0.0, %v2907
        %v2909 = vpop.f32.mrb[0].mxu0
        %2910 = vmatprep.mubr.f32.mxu0 0.0
        %2911 = vmatmul.mubr.f32.gmra.mrb[0].mxu0 %v2728
        %v2912 = vpop.f32.mrb[0].mxu0
        %v2913 = vadd.f32 0.0, %v2912
        %v2914 = vpop.f32.mrb[0].mxu0
        %2915 = vmatprep.mubr.f32.mxu0 0.0
        %2916 = vmatmul.mubr.f32.gmra.mrb[0].mxu0 %v2731
        %v2917 = vpop.f32.mrb[0].mxu0
        %v2918 = vadd.f32 0.0, %v2917
        %v2919 = vpop.f32.mrb[0].mxu0
        %2920 = vmatprep.mubr.f32.mxu0 0.0
        %2921 = vmatmul.mubr.f32.gmra.mrb[0].mxu0 %v2734
        %v2922 = vpop.f32.mrb[0].mxu0
        %v2923 = vadd.f32 0.0, %v2922
        %v2924 = vpop.f32.mrb[0].mxu0
        %2925 = vmatprep.mubr.f32.mxu0 0.0
        %2926 = vmatmul.mubr.f32.gmra.mrb[0].mxu0 %v2737
        %v2927 = vpop.f32.mrb[0].mxu0
        %v2928 = vadd.f32 0.0, %v2927
        %v2929 = vpop.f32.mrb[0].mxu0
        %2930 = vmatprep.mubr.f32.mxu0 0.0
        %2931 = vmatmul.mubr.f32.gmra.mrb[0].mxu0 %v2740
        %v2932 = vpop.f32.mrb[0].mxu0
        %v2933 = vadd.f32 0.0, %v2932
        %v2934 = vpop.f32.mrb[0].mxu0
        %2935 = vmatprep.mubr.f32.mxu0 0.0
        %2936 = vmatmul.mubr.f32.gmra.mrb[0].mxu0 %v2743
        %v2937 = vpop.f32.mrb[0].mxu0
        %v2938 = vadd.f32 0.0, %v2937
        %v2939 = vpop.f32.mrb[0].mxu0
        %2940 = vmatprep.mubr.f32.mxu0 0.0
        %2941 = vmatmul.mubr.f32.gmra.mrb[0].mxu0 %v2746
        %v2942 = vpop.f32.mrb[0].mxu0
        %v2943 = vadd.f32 0.0, %v2942
        %v2944 = vpop.f32.mrb[0].mxu0
        %2945 = vmatprep.mubr.f32.mxu0 0.0
        %2946 = vmatmul.mubr.f32.gmra.mrb[0].mxu0 %v2749
        %v2947 = vpop.f32.mrb[0].mxu0
        %v2948 = vadd.f32 0.0, %v2947
        %v2949 = vpop.f32.mrb[0].mxu0
        %2950 = vmatprep.mubr.f32.mxu0 0.0
        %2951 = vmatmul.mubr.f32.gmra.mrb[0].mxu0 %v2752
        %v2952 = vpop.f32.mrb[0].mxu0
        %v2953 = vadd.f32 0.0, %v2952
        %v2954 = vpop.f32.mrb[0].mxu0
        %2955 = vmatprep.mubr.f32.mxu0 0.0
        %2956 = vmatmul.mubr.f32.gmra.mrb[0].mxu0 %v2755
        %v2957 = vpop.f32.mrb[0].mxu0
        %v2958 = vadd.f32 0.0, %v2957
        %v2959 = vpop.f32.mrb[0].mxu0
        %2960 = vmatprep.mubr.f32.mxu0 0.0
        %2961 = vmatmul.mubr.f32.gmra.mrb[0].mxu0 %v2758
        %v2962 = vpop.f32.mrb[0].mxu0
        %v2963 = vadd.f32 0.0, %v2962
        %v2964 = vpop.f32.mrb[0].mxu0
        %2965 = vmatprep.mubr.f32.mxu0 0.0
        %2966 = vmatmul.mubr.f32.gmra.mrb[0].mxu0 %v2761
        %v2967 = vpop.f32.mrb[0].mxu0
        %v2968 = vadd.f32 0.0, %v2967
        %v2969 = vpop.f32.mrb[0].mxu0
        %2970 = vmatprep.mubr.f32.mxu0 0.0
        %2971 = vmatmul.mubr.f32.gmra.mrb[0].mxu0 %v2764
        %v2972 = vpop.f32.mrb[0].mxu0
        %v2973 = vadd.f32 0.0, %v2972
        %v2974 = vpop.f32.mrb[0].mxu0
        %2975 = vmatprep.mubr.f32.mxu0 0.0
        %2976 = vmatmul.mubr.f32.gmra.mrb[0].mxu0 %v2767
        %v2977 = vpop.f32.mrb[0].mxu0
        %v2978 = vadd.f32 0.0, %v2977
        %v2979 = vpop.f32.mrb[0].mxu0
        %2980 = vmatprep.mubr.f32.mxu0 0.0
        %2981 = vmatmul.mubr.f32.gmra.mrb[0].mxu0 %v2770
        %v2982 = vpop.f32.mrb[0].mxu0
        %v2983 = vadd.f32 0.0, %v2982
        %v2984 = vpop.f32.mrb[0].mxu0
        %2985 = vmatprep.mubr.f32.mxu0 0.0
        %2986 = vmatmul.mubr.f32.gmra.mrb[0].mxu0 %v2773
        %v2987 = vpop.f32.mrb[0].mxu0
        %v2988 = vadd.f32 0.0, %v2987
        %v2989 = vpop.f32.mrb[0].mxu0
        %2990 = vmatprep.mubr.f32.mxu0 0.0
        %2991 = vmatmul.mubr.f32.gmra.mrb[0].mxu0 %v2776
        %v2992 = vpop.f32.mrb[0].mxu0
        %v2993 = vadd.f32 0.0, %v2992
        %v2994 = vpop.f32.mrb[0].mxu0
        %2995 = vmatprep.mubr.f32.mxu0 0.0
        %2996 = vmatmul.mubr.f32.gmra.mrb[0].mxu0 %v2779
        %v2997 = vpop.f32.mrb[0].mxu0
        %v2998 = vadd.f32 0.0, %v2997
        %v2999 = vpop.f32.mrb[0].mxu0
        %3000 = vmatprep.mubr.f32.mxu0 0.0
        %3001 = vmatmul.mubr.f32.gmra.mrb[0].mxu0 %v2782
        %v3002 = vpop.f32.mrb[0].mxu0
        %v3003 = vadd.f32 0.0, %v3002
        %v3004 = vpop.f32.mrb[0].mxu0
        %3005 = vmatprep.mubr.f32.mxu0 0.0
        %3006 = vmatmul.mubr.f32.gmra.mrb[0].mxu0 %v2785
        %v3007 = vpop.f32.mrb[0].mxu0
        %v3008 = vadd.f32 0.0, %v3007
        %v3009 = vpop.f32.mrb[0].mxu0
        %3010 = vmatprep.mubr.f32.mxu0 0.0
        %3011 = vmatmul.mubr.f32.gmra.mrb[0].mxu0 %v2788
        %v3012 = vpop.f32.mrb[0].mxu0
        %v3013 = vadd.f32 0.0, %v3012
        %v3014 = vpop.f32.mrb[0].mxu0
        %3015 = vmatprep.mubr.f32.mxu0 0.0
        %3016 = vmatmul.mubr.f32.gmra.mrb[0].mxu0 %v2791
        %v3017 = vpop.f32.mrb[0].mxu0
        %v3018 = vadd.f32 0.0, %v3017
        %v3019 = vpop.f32.mrb[0].mxu0
        %3020 = vmatprep.mubr.f32.mxu0 0.0
        %3021 = vmatmul.mubr.f32.gmra.mrb[0].mxu0 %v2794
        %v3022 = vpop.f32.mrb[0].mxu0
        %v3023 = vadd.f32 0.0, %v3022
        %v3024 = vpop.f32.mrb[0].mxu0
        %3025 = vmatprep.mubr.f32.mxu0 0.0
        %3026 = vmatmul.mubr.f32.gmra.mrb[0].mxu0 %v2797
        %v3027 = vpop.f32.mrb[0].mxu0
        %v3028 = vadd.f32 0.0, %v3027
        %v3029 = vpop.f32.mrb[0].mxu0
        %3030 = vmatprep.mubr.f32.mxu0 0.0
        %3031 = vmatmul.mubr.f32.gmra.mrb[0].mxu0 %v2800
        %v3032 = vpop.f32.mrb[0].mxu0
        %v3033 = vadd.f32 0.0, %v3032
        %v3034 = vpop.f32.mrb[0].mxu0
        %3035 = vmatprep.mubr.f32.mxu0 0.0
        %3036 = vmatmul.mubr.f32.gmra.mrb[0].mxu0 %v2803
        %v3037 = vpop.f32.mrb[0].mxu0
        %v3038 = vadd.f32 0.0, %v3037
        %v3039 = vpop.f32.mrb[0].mxu0
        %3040 = vmatprep.mubr.f32.mxu0 0.0
        %3041 = vmatmul.mubr.f32.gmra.mrb[0].mxu0 %v2806
        %v3042 = vpop.f32.mrb[0].mxu0
        %v3043 = vadd.f32 0.0, %v3042
        %v3044 = vpop.f32.mrb[0].mxu0
        %3045 = vmatprep.mubr.f32.mxu0 0.0
        %3046 = vmatmul.mubr.f32.gmra.mrb[0].mxu0 %v2809
        %v3047 = vpop.f32.mrb[0].mxu0
        %v3048 = vadd.f32 0.0, %v3047
        %v3049 = vpop.f32.mrb[0].mxu0
        %3050 = vmatprep.mubr.f32.mxu0 0.0
        %3051 = vmatmul.mubr.f32.gmra.mrb[0].mxu0 %v2812
        %v3052 = vpop.f32.mrb[0].mxu0
        %v3053 = vadd.f32 0.0, %v3052
        %v3054 = vpop.f32.mrb[0].mxu0
        %3055 = vmatprep.mubr.f32.mxu0 0.0
        %3056 = vmatmul.mubr.f32.gmra.mrb[0].mxu0 %v2815
        %v3057 = vpop.f32.mrb[0].mxu0
        %v3058 = vadd.f32 0.0, %v3057
        %v3059 = vpop.f32.mrb[0].mxu0
        %3060 = vmatprep.mubr.f32.mxu0 0.0
        %3061 = vmatmul.mubr.f32.gmra.mrb[0].mxu0 %v2818
        %v3062 = vpop.f32.mrb[0].mxu0
        %v3063 = vadd.f32 0.0, %v3062
        %v3064 = vpop.f32.mrb[0].mxu0
        %3065 = vmatprep.mubr.f32.mxu0 0.0
        %3066 = vmatmul.mubr.f32.gmra.mrb[0].mxu0 %v2821
        %v3067 = vpop.f32.mrb[0].mxu0
        %v3068 = vadd.f32 0.0, %v3067
        %v3069 = vpop.f32.mrb[0].mxu0
        %3070 = vdwg.mxu0
        %v3071 = vadd.f32 %v2641, %v2893
        %v3072 = vadd.f32 %v2642, %v2898
        %v3073 = vadd.f32 %v2643, %v2903
        %v3074 = vadd.f32 %v2644, %v2908
        %v3075 = vadd.f32 %v2645, %v2913
        %v3076 = vadd.f32 %v2646, %v2918
        %v3077 = vadd.f32 %v2647, %v2923
        %v3078 = vadd.f32 %v2648, %v2928
        %v3079 = vadd.f32 %v2649, %v2933
        %v3080 = vadd.f32 %v2650, %v2938
        %v3081 = vadd.f32 %v2651, %v2943
        %v3082 = vadd.f32 %v2652, %v2948
        %v3083 = vadd.f32 %v2653, %v2953
        %v3084 = vadd.f32 %v2654, %v2958
        %v3085 = vadd.f32 %v2655, %v2963
        %v3086 = vadd.f32 %v2656, %v2968
        %v3087 = vadd.f32 %v2657, %v2973
        %v3088 = vadd.f32 %v2658, %v2978
        %v3089 = vadd.f32 %v2659, %v2983
        %v3090 = vadd.f32 %v2660, %v2988
        %v3091 = vadd.f32 %v2661, %v2993
        %v3092 = vadd.f32 %v2662, %v2998
        %v3093 = vadd.f32 %v2663, %v3003
        %v3094 = vadd.f32 %v2664, %v3008
        %v3095 = vadd.f32 %v2665, %v3013
        %v3096 = vadd.f32 %v2666, %v3018
        %v3097 = vadd.f32 %v2667, %v3023
        %v3098 = vadd.f32 %v2668, %v3028
        %v3099 = vadd.f32 %v2669, %v3033
        %v3100 = vadd.f32 %v2670, %v3038
        %v3101 = vadd.f32 %v2671, %v3043
        %v3102 = vadd.f32 %v2672, %v3048
        %v3103 = vadd.f32 %v2673, %v3053
        %v3104 = vadd.f32 %v2674, %v3058
        %v3105 = vadd.f32 %v2675, %v3063
        %v3106 = vadd.f32 %v2676, %v3068
        %v3107 = vld [vmem:[%s167 + $0x25] sm:$0xff]
        %v3108 = vld [vmem:[%s167 + $0x2d] sm:$0xff]
        %v3109 = vld [vmem:[%s167 + $0x35] sm:$0xff]
        %v3110 = vld [vmem:[%s167 + $0x3d] sm:$0xff]
        %v3111 = vld [vmem:[%s167 + $0x45] sm:$0xff]
        %v3112 = vld [vmem:[%s167 + $0x4d] sm:$0xff]
        %v3113 = vld [vmem:[%s167 + $0x55] sm:$0xff]
        %v3114 = vld [vmem:[%s167 + $0x5d] sm:$0xff]
        %v3115 = vld [vmem:[%s167 + $0x65] sm:$0xff]
        %v3116 = vld [vmem:[%s167 + $0x6d] sm:$0xff]
        %v3117 = vld [vmem:[%s167 + $0x75] sm:$0xff]
        %v3118 = vld [vmem:[%s167 + $0x7d] sm:$0xff]
        %v3119 = vld [vmem:[%s167 + $0x85] sm:$0xff]
        %v3120 = vld [vmem:[%s167 + $0x8d] sm:$0xff]
        %v3121 = vld [vmem:[%s167 + $0x95] sm:$0xff]
        %v3122 = vld [vmem:[%s167 + $0x9d] sm:$0xff]
        %v3123 = vld [vmem:[%s167 + $0xa5] sm:$0xff]
        %v3124 = vld [vmem:[%s167 + $0xad] sm:$0xff]
        %v3125 = vld [vmem:[%s167 + $0xb5] sm:$0xff]
        %v3126 = vld [vmem:[%s167 + $0xbd] sm:$0xff]
        %v3127 = vld [vmem:[%s167 + $0xc5] sm:$0xff]
        %v3128 = vld [vmem:[%s167 + $0xcd] sm:$0xff]
        %v3129 = vld [vmem:[%s167 + $0xd5] sm:$0xff]
        %v3130 = vld [vmem:[%s167 + $0xdd] sm:$0xff]
        %v3131 = vld [vmem:[%s167 + $0xe5] sm:$0xff]
        %v3132 = vld [vmem:[%s167 + $0xed] sm:$0xff]
        %v3133 = vld [vmem:[%s167 + $0xf5] sm:$0xff]
        %v3134 = vld [vmem:[%s167 + $0xfd] sm:$0xff]
        %v3135 = vld [vmem:[%s167 + $0x105] sm:$0xff]
        %v3136 = vld [vmem:[%s167 + $0x10d] sm:$0xff]
        %v3137 = vld [vmem:[%s167 + $0x115] sm:$0xff]
        %v3138 = vld [vmem:[%s167 + $0x11d] sm:$0xff]
        %v3139 = vld [vmem:[%s167 + $0x125] sm:$0xff]
        %v3140 = vld [vmem:[%s167 + $0x12d] sm:$0xff]
        %v3141 = vld [vmem:[%s167 + $0x135] sm:$0xff]
        %v3142 = vld [vmem:[%s167 + $0x13d] sm:$0x3f]
        %s3143 = scalar_lea.vmem %s1, 28
        %v3144 = vld [vmem:[%s3143] sm:$0x7]
        %v3146 = vsel %vm243, %v3107, 0
        %v3149 = vsel %vm243, %v3108, 0
        %v3152 = vsel %vm243, %v3109, 0
        %v3155 = vsel %vm243, %v3110, 0
        %v3158 = vsel %vm243, %v3111, 0
        %v3161 = vsel %vm243, %v3112, 0
        %v3164 = vsel %vm243, %v3113, 0
        %v3167 = vsel %vm243, %v3114, 0
        %v3170 = vsel %vm243, %v3115, 0
        %v3173 = vsel %vm243, %v3116, 0
        %v3176 = vsel %vm243, %v3117, 0
        %v3179 = vsel %vm243, %v3118, 0
        %v3182 = vsel %vm243, %v3119, 0
        %v3185 = vsel %vm243, %v3120, 0
        %v3188 = vsel %vm243, %v3121, 0
        %v3191 = vsel %vm243, %v3122, 0
        %v3194 = vsel %vm243, %v3123, 0
        %v3197 = vsel %vm243, %v3124, 0
        %v3200 = vsel %vm243, %v3125, 0
        %v3203 = vsel %vm243, %v3126, 0
        %v3206 = vsel %vm243, %v3127, 0
        %v3209 = vsel %vm243, %v3128, 0
        %v3212 = vsel %vm243, %v3129, 0
        %v3215 = vsel %vm243, %v3130, 0
        %v3218 = vsel %vm243, %v3131, 0
        %v3221 = vsel %vm243, %v3132, 0
        %v3224 = vsel %vm243, %v3133, 0
        %v3227 = vsel %vm243, %v3134, 0
        %v3230 = vsel %vm243, %v3135, 0
        %v3233 = vsel %vm243, %v3136, 0
        %v3236 = vsel %vm243, %v3137, 0
        %v3239 = vsel %vm243, %v3138, 0
        %v3242 = vsel %vm243, %v3139, 0
        %v3245 = vsel %vm243, %v3140, 0
        %v3248 = vsel %vm243, %v3141, 0
        %v3251 = vsel %vm243, %v3142, 0
        %v3254 = vsel %vm352, %v3144, 0
        %3256 = vmatprep.subr.mxu0 0.0
        %3257 = vmatpush1.msra.mxu0 %v3254
        %3258 = vmatprep.subr.mxu0 0.0
        %3259 = vmatpush1.msra.mxu0 0.0
        %3260 = vmatprep.subr.mxu0 0.0
        %3261 = vmatpush1.msra.mxu0 0.0
        %3262 = vmatprep.subr.mxu0 0.0
        %3263 = vmatpush1.msra.mxu0 0.0
        %3264 = vmatprep.subr.mxu0 0.0
        %3265 = vmatpush1.msra.mxu0 0.0
        %3266 = vmatprep.subr.mxu0 0.0
        %3267 = vmatpush1.msra.mxu0 0.0
        %3268 = vmatprep.subr.mxu0 0.0
        %3269 = vmatpush1.msra.mxu0 0.0
        %3270 = vmatprep.subr.mxu0 0.0
        %3271 = vmatpush1.msra.mxu0 0.0
        %3272 = vmatprep.subr.mxu0 0.0
        %3273 = vmatpush1.msra.mxu0 0.0
        %3274 = vmatprep.subr.mxu0 0.0
        %3275 = vmatpush1.msra.mxu0 0.0
        %3276 = vmatprep.subr.mxu0 0.0
        %3277 = vmatpush1.msra.mxu0 0.0
        %3278 = vmatprep.subr.mxu0 0.0
        %3279 = vmatpush1.msra.mxu0 0.0
        %3280 = vmatprep.subr.mxu0 0.0
        %3281 = vmatpush1.msra.mxu0 0.0
        %3282 = vmatprep.subr.mxu0 0.0
        %3283 = vmatpush1.msra.mxu0 0.0
        %3284 = vmatprep.subr.mxu0 0.0
        %3285 = vmatpush1.msra.mxu0 0.0
        %3286 = vmatprep.subr.mxu0 0.0
        %3287 = vmatpush1.msra.mxu0 0.0
        %3288 = vmatprep.subr.mxu0 0.0
        %3289 = vmatpush1.msra.mxu0 0.0
        %3290 = vmatprep.subr.mxu0 0.0
        %3291 = vmatpush1.msra.mxu0 0.0
        %3292 = vmatprep.subr.mxu0 0.0
        %3293 = vmatpush1.msra.mxu0 0.0
        %3294 = vmatprep.subr.mxu0 0.0
        %3295 = vmatpush1.msra.mxu0 0.0
        %3296 = vmatprep.subr.mxu0 0.0
        %3297 = vmatpush1.msra.mxu0 0.0
        %3298 = vmatprep.subr.mxu0 0.0
        %3299 = vmatpush1.msra.mxu0 0.0
        %3300 = vmatprep.subr.mxu0 0.0
        %3301 = vmatpush1.msra.mxu0 0.0
        %3302 = vmatprep.subr.mxu0 0.0
        %3303 = vmatpush1.msra.mxu0 0.0
        %3304 = vmatprep.subr.mxu0 0.0
        %3305 = vmatpush1.msra.mxu0 0.0
        %3306 = vmatprep.subr.mxu0 0.0
        %3307 = vmatpush1.msra.mxu0 0.0
        %3308 = vmatprep.subr.mxu0 0.0
        %3309 = vmatpush1.msra.mxu0 0.0
        %3310 = vmatprep.subr.mxu0 0.0
        %3311 = vmatpush1.msra.mxu0 0.0
        %3312 = vmatprep.subr.mxu0 0.0
        %3313 = vmatpush1.msra.mxu0 0.0
        %3314 = vmatprep.subr.mxu0 0.0
        %3315 = vmatpush1.msra.mxu0 0.0
        %3316 = vmatprep.subr.mxu0 0.0
        %3317 = vmatpush1.msra.mxu0 0.0
        %3318 = vmatprep.subr.mxu0 0.0
        %3319 = vmatpush1.msra.mxu0 0.0
        %3320 = vmatprep.mubr.f32.mxu0 0.0
        %3321 = vmatmul.mubr.f32.gmra.mrb[0].mxu0 %v3146
        %v3322 = vpop.f32.mrb[0].mxu0
        %v3323 = vadd.f32 0.0, %v3322
        %v3324 = vpop.f32.mrb[0].mxu0
        %3325 = vmatprep.mubr.f32.mxu0 0.0
        %3326 = vmatmul.mubr.f32.gmra.mrb[0].mxu0 %v3149
        %v3327 = vpop.f32.mrb[0].mxu0
        %v3328 = vadd.f32 0.0, %v3327
        %v3329 = vpop.f32.mrb[0].mxu0
        %3330 = vmatprep.mubr.f32.mxu0 0.0
        %3331 = vmatmul.mubr.f32.gmra.mrb[0].mxu0 %v3152
        %v3332 = vpop.f32.mrb[0].mxu0
        %v3333 = vadd.f32 0.0, %v3332
        %v3334 = vpop.f32.mrb[0].mxu0
        %3335 = vmatprep.mubr.f32.mxu0 0.0
        %3336 = vmatmul.mubr.f32.gmra.mrb[0].mxu0 %v3155
        %v3337 = vpop.f32.mrb[0].mxu0
        %v3338 = vadd.f32 0.0, %v3337
        %v3339 = vpop.f32.mrb[0].mxu0
        %3340 = vmatprep.mubr.f32.mxu0 0.0
        %3341 = vmatmul.mubr.f32.gmra.mrb[0].mxu0 %v3158
        %v3342 = vpop.f32.mrb[0].mxu0
        %v3343 = vadd.f32 0.0, %v3342
        %v3344 = vpop.f32.mrb[0].mxu0
        %3345 = vmatprep.mubr.f32.mxu0 0.0
        %3346 = vmatmul.mubr.f32.gmra.mrb[0].mxu0 %v3161
        %v3347 = vpop.f32.mrb[0].mxu0
        %v3348 = vadd.f32 0.0, %v3347
        %v3349 = vpop.f32.mrb[0].mxu0
        %3350 = vmatprep.mubr.f32.mxu0 0.0
        %3351 = vmatmul.mubr.f32.gmra.mrb[0].mxu0 %v3164
        %v3352 = vpop.f32.mrb[0].mxu0
        %v3353 = vadd.f32 0.0, %v3352
        %v3354 = vpop.f32.mrb[0].mxu0
        %3355 = vmatprep.mubr.f32.mxu0 0.0
        %3356 = vmatmul.mubr.f32.gmra.mrb[0].mxu0 %v3167
        %v3357 = vpop.f32.mrb[0].mxu0
        %v3358 = vadd.f32 0.0, %v3357
        %v3359 = vpop.f32.mrb[0].mxu0
        %3360 = vmatprep.mubr.f32.mxu0 0.0
        %3361 = vmatmul.mubr.f32.gmra.mrb[0].mxu0 %v3170
        %v3362 = vpop.f32.mrb[0].mxu0
        %v3363 = vadd.f32 0.0, %v3362
        %v3364 = vpop.f32.mrb[0].mxu0
        %3365 = vmatprep.mubr.f32.mxu0 0.0
        %3366 = vmatmul.mubr.f32.gmra.mrb[0].mxu0 %v3173
        %v3367 = vpop.f32.mrb[0].mxu0
        %v3368 = vadd.f32 0.0, %v3367
        %v3369 = vpop.f32.mrb[0].mxu0
        %3370 = vmatprep.mubr.f32.mxu0 0.0
        %3371 = vmatmul.mubr.f32.gmra.mrb[0].mxu0 %v3176
        %v3372 = vpop.f32.mrb[0].mxu0
        %v3373 = vadd.f32 0.0, %v3372
        %v3374 = vpop.f32.mrb[0].mxu0
        %3375 = vmatprep.mubr.f32.mxu0 0.0
        %3376 = vmatmul.mubr.f32.gmra.mrb[0].mxu0 %v3179
        %v3377 = vpop.f32.mrb[0].mxu0
        %v3378 = vadd.f32 0.0, %v3377
        %v3379 = vpop.f32.mrb[0].mxu0
        %3380 = vmatprep.mubr.f32.mxu0 0.0
        %3381 = vmatmul.mubr.f32.gmra.mrb[0].mxu0 %v3182
        %v3382 = vpop.f32.mrb[0].mxu0
        %v3383 = vadd.f32 0.0, %v3382
        %v3384 = vpop.f32.mrb[0].mxu0
        %3385 = vmatprep.mubr.f32.mxu0 0.0
        %3386 = vmatmul.mubr.f32.gmra.mrb[0].mxu0 %v3185
        %v3387 = vpop.f32.mrb[0].mxu0
        %v3388 = vadd.f32 0.0, %v3387
        %v3389 = vpop.f32.mrb[0].mxu0
        %3390 = vmatprep.mubr.f32.mxu0 0.0
        %3391 = vmatmul.mubr.f32.gmra.mrb[0].mxu0 %v3188
        %v3392 = vpop.f32.mrb[0].mxu0
        %v3393 = vadd.f32 0.0, %v3392
        %v3394 = vpop.f32.mrb[0].mxu0
        %3395 = vmatprep.mubr.f32.mxu0 0.0
        %3396 = vmatmul.mubr.f32.gmra.mrb[0].mxu0 %v3191
        %v3397 = vpop.f32.mrb[0].mxu0
        %v3398 = vadd.f32 0.0, %v3397
        %v3399 = vpop.f32.mrb[0].mxu0
        %3400 = vmatprep.mubr.f32.mxu0 0.0
        %3401 = vmatmul.mubr.f32.gmra.mrb[0].mxu0 %v3194
        %v3402 = vpop.f32.mrb[0].mxu0
        %v3403 = vadd.f32 0.0, %v3402
        %v3404 = vpop.f32.mrb[0].mxu0
        %3405 = vmatprep.mubr.f32.mxu0 0.0
        %3406 = vmatmul.mubr.f32.gmra.mrb[0].mxu0 %v3197
        %v3407 = vpop.f32.mrb[0].mxu0
        %v3408 = vadd.f32 0.0, %v3407
        %v3409 = vpop.f32.mrb[0].mxu0
        %3410 = vmatprep.mubr.f32.mxu0 0.0
        %3411 = vmatmul.mubr.f32.gmra.mrb[0].mxu0 %v3200
        %v3412 = vpop.f32.mrb[0].mxu0
        %v3413 = vadd.f32 0.0, %v3412
        %v3414 = vpop.f32.mrb[0].mxu0
        %3415 = vmatprep.mubr.f32.mxu0 0.0
        %3416 = vmatmul.mubr.f32.gmra.mrb[0].mxu0 %v3203
        %v3417 = vpop.f32.mrb[0].mxu0
        %v3418 = vadd.f32 0.0, %v3417
        %v3419 = vpop.f32.mrb[0].mxu0
        %3420 = vmatprep.mubr.f32.mxu0 0.0
        %3421 = vmatmul.mubr.f32.gmra.mrb[0].mxu0 %v3206
        %v3422 = vpop.f32.mrb[0].mxu0
        %v3423 = vadd.f32 0.0, %v3422
        %v3424 = vpop.f32.mrb[0].mxu0
        %3425 = vmatprep.mubr.f32.mxu0 0.0
        %3426 = vmatmul.mubr.f32.gmra.mrb[0].mxu0 %v3209
        %v3427 = vpop.f32.mrb[0].mxu0
        %v3428 = vadd.f32 0.0, %v3427
        %v3429 = vpop.f32.mrb[0].mxu0
        %3430 = vmatprep.mubr.f32.mxu0 0.0
        %3431 = vmatmul.mubr.f32.gmra.mrb[0].mxu0 %v3212
        %v3432 = vpop.f32.mrb[0].mxu0
        %v3433 = vadd.f32 0.0, %v3432
        %v3434 = vpop.f32.mrb[0].mxu0
        %3435 = vmatprep.mubr.f32.mxu0 0.0
        %3436 = vmatmul.mubr.f32.gmra.mrb[0].mxu0 %v3215
        %v3437 = vpop.f32.mrb[0].mxu0
        %v3438 = vadd.f32 0.0, %v3437
        %v3439 = vpop.f32.mrb[0].mxu0
        %3440 = vmatprep.mubr.f32.mxu0 0.0
        %3441 = vmatmul.mubr.f32.gmra.mrb[0].mxu0 %v3218
        %v3442 = vpop.f32.mrb[0].mxu0
        %v3443 = vadd.f32 0.0, %v3442
        %v3444 = vpop.f32.mrb[0].mxu0
        %3445 = vmatprep.mubr.f32.mxu0 0.0
        %3446 = vmatmul.mubr.f32.gmra.mrb[0].mxu0 %v3221
        %v3447 = vpop.f32.mrb[0].mxu0
        %v3448 = vadd.f32 0.0, %v3447
        %v3449 = vpop.f32.mrb[0].mxu0
        %3450 = vmatprep.mubr.f32.mxu0 0.0
        %3451 = vmatmul.mubr.f32.gmra.mrb[0].mxu0 %v3224
        %v3452 = vpop.f32.mrb[0].mxu0
        %v3453 = vadd.f32 0.0, %v3452
        %v3454 = vpop.f32.mrb[0].mxu0
        %3455 = vmatprep.mubr.f32.mxu0 0.0
        %3456 = vmatmul.mubr.f32.gmra.mrb[0].mxu0 %v3227
        %v3457 = vpop.f32.mrb[0].mxu0
        %v3458 = vadd.f32 0.0, %v3457
        %v3459 = vpop.f32.mrb[0].mxu0
        %3460 = vmatprep.mubr.f32.mxu0 0.0
        %3461 = vmatmul.mubr.f32.gmra.mrb[0].mxu0 %v3230
        %v3462 = vpop.f32.mrb[0].mxu0
        %v3463 = vadd.f32 0.0, %v3462
        %v3464 = vpop.f32.mrb[0].mxu0
        %3465 = vmatprep.mubr.f32.mxu0 0.0
        %3466 = vmatmul.mubr.f32.gmra.mrb[0].mxu0 %v3233
        %v3467 = vpop.f32.mrb[0].mxu0
        %v3468 = vadd.f32 0.0, %v3467
        %v3469 = vpop.f32.mrb[0].mxu0
        %3470 = vmatprep.mubr.f32.mxu0 0.0
        %3471 = vmatmul.mubr.f32.gmra.mrb[0].mxu0 %v3236
        %v3472 = vpop.f32.mrb[0].mxu0
        %v3473 = vadd.f32 0.0, %v3472
        %v3474 = vpop.f32.mrb[0].mxu0
        %3475 = vmatprep.mubr.f32.mxu0 0.0
        %3476 = vmatmul.mubr.f32.gmra.mrb[0].mxu0 %v3239
        %v3477 = vpop.f32.mrb[0].mxu0
        %v3478 = vadd.f32 0.0, %v3477
        %v3479 = vpop.f32.mrb[0].mxu0
        %3480 = vmatprep.mubr.f32.mxu0 0.0
        %3481 = vmatmul.mubr.f32.gmra.mrb[0].mxu0 %v3242
        %v3482 = vpop.f32.mrb[0].mxu0
        %v3483 = vadd.f32 0.0, %v3482
        %v3484 = vpop.f32.mrb[0].mxu0
        %3485 = vmatprep.mubr.f32.mxu0 0.0
        %3486 = vmatmul.mubr.f32.gmra.mrb[0].mxu0 %v3245
        %v3487 = vpop.f32.mrb[0].mxu0
        %v3488 = vadd.f32 0.0, %v3487
        %v3489 = vpop.f32.mrb[0].mxu0
        %3490 = vmatprep.mubr.f32.mxu0 0.0
        %3491 = vmatmul.mubr.f32.gmra.mrb[0].mxu0 %v3248
        %v3492 = vpop.f32.mrb[0].mxu0
        %v3493 = vadd.f32 0.0, %v3492
        %v3494 = vpop.f32.mrb[0].mxu0
        %3495 = vmatprep.mubr.f32.mxu0 0.0
        %3496 = vmatmul.mubr.f32.gmra.mrb[0].mxu0 %v3251
        %v3497 = vpop.f32.mrb[0].mxu0
        %v3498 = vadd.f32 0.0, %v3497
        %v3499 = vpop.f32.mrb[0].mxu0
        %3500 = vdwg.mxu0
        %v3501 = vadd.f32 %v3071, %v3323
        %v3502 = vadd.f32 %v3072, %v3328
        %v3503 = vadd.f32 %v3073, %v3333
        %v3504 = vadd.f32 %v3074, %v3338
        %v3505 = vadd.f32 %v3075, %v3343
        %v3506 = vadd.f32 %v3076, %v3348
        %v3507 = vadd.f32 %v3077, %v3353
        %v3508 = vadd.f32 %v3078, %v3358
        %v3509 = vadd.f32 %v3079, %v3363
        %v3510 = vadd.f32 %v3080, %v3368
        %v3511 = vadd.f32 %v3081, %v3373
        %v3512 = vadd.f32 %v3082, %v3378
        %v3513 = vadd.f32 %v3083, %v3383
        %v3514 = vadd.f32 %v3084, %v3388
        %v3515 = vadd.f32 %v3085, %v3393
        %v3516 = vadd.f32 %v3086, %v3398
        %v3517 = vadd.f32 %v3087, %v3403
        %v3518 = vadd.f32 %v3088, %v3408
        %v3519 = vadd.f32 %v3089, %v3413
        %v3520 = vadd.f32 %v3090, %v3418
        %v3521 = vadd.f32 %v3091, %v3423
        %v3522 = vadd.f32 %v3092, %v3428
        %v3523 = vadd.f32 %v3093, %v3433
        %v3524 = vadd.f32 %v3094, %v3438
        %v3525 = vadd.f32 %v3095, %v3443
        %v3526 = vadd.f32 %v3096, %v3448
        %v3527 = vadd.f32 %v3097, %v3453
        %v3528 = vadd.f32 %v3098, %v3458
        %v3529 = vadd.f32 %v3099, %v3463
        %v3530 = vadd.f32 %v3100, %v3468
        %v3531 = vadd.f32 %v3101, %v3473
        %v3532 = vadd.f32 %v3102, %v3478
        %v3533 = vadd.f32 %v3103, %v3483
        %v3534 = vadd.f32 %v3104, %v3488
        %v3535 = vadd.f32 %v3105, %v3493
        %v3536 = vadd.f32 %v3106, %v3498
        %v3537 = vld [vmem:[%s167 + $0x26] sm:$0xff]
        %v3538 = vld [vmem:[%s167 + $0x2e] sm:$0xff]
        %v3539 = vld [vmem:[%s167 + $0x36] sm:$0xff]
        %v3540 = vld [vmem:[%s167 + $0x3e] sm:$0xff]
        %v3541 = vld [vmem:[%s167 + $0x46] sm:$0xff]
        %v3542 = vld [vmem:[%s167 + $0x4e] sm:$0xff]
        %v3543 = vld [vmem:[%s167 + $0x56] sm:$0xff]
        %v3544 = vld [vmem:[%s167 + $0x5e] sm:$0xff]
        %v3545 = vld [vmem:[%s167 + $0x66] sm:$0xff]
        %v3546 = vld [vmem:[%s167 + $0x6e] sm:$0xff]
        %v3547 = vld [vmem:[%s167 + $0x76] sm:$0xff]
        %v3548 = vld [vmem:[%s167 + $0x7e] sm:$0xff]
        %v3549 = vld [vmem:[%s167 + $0x86] sm:$0xff]
        %v3550 = vld [vmem:[%s167 + $0x8e] sm:$0xff]
        %v3551 = vld [vmem:[%s167 + $0x96] sm:$0xff]
        %v3552 = vld [vmem:[%s167 + $0x9e] sm:$0xff]
        %v3553 = vld [vmem:[%s167 + $0xa6] sm:$0xff]
        %v3554 = vld [vmem:[%s167 + $0xae] sm:$0xff]
        %v3555 = vld [vmem:[%s167 + $0xb6] sm:$0xff]
        %v3556 = vld [vmem:[%s167 + $0xbe] sm:$0xff]
        %v3557 = vld [vmem:[%s167 + $0xc6] sm:$0xff]
        %v3558 = vld [vmem:[%s167 + $0xce] sm:$0xff]
        %v3559 = vld [vmem:[%s167 + $0xd6] sm:$0xff]
        %v3560 = vld [vmem:[%s167 + $0xde] sm:$0xff]
        %v3561 = vld [vmem:[%s167 + $0xe6] sm:$0xff]
        %v3562 = vld [vmem:[%s167 + $0xee] sm:$0xff]
        %v3563 = vld [vmem:[%s167 + $0xf6] sm:$0xff]
        %v3564 = vld [vmem:[%s167 + $0xfe] sm:$0xff]
        %v3565 = vld [vmem:[%s167 + $0x106] sm:$0xff]
        %v3566 = vld [vmem:[%s167 + $0x10e] sm:$0xff]
        %v3567 = vld [vmem:[%s167 + $0x116] sm:$0xff]
        %v3568 = vld [vmem:[%s167 + $0x11e] sm:$0xff]
        %v3569 = vld [vmem:[%s167 + $0x126] sm:$0xff]
        %v3570 = vld [vmem:[%s167 + $0x12e] sm:$0xff]
        %v3571 = vld [vmem:[%s167 + $0x136] sm:$0xff]
        %v3572 = vld [vmem:[%s167 + $0x13e] sm:$0x3f]
        %s3573 = scalar_lea.vmem %s1, 32
        %v3574 = vld [vmem:[%s3573] sm:$0x7]
        %v3576 = vsel %vm243, %v3537, 0
        %v3579 = vsel %vm243, %v3538, 0
        %v3582 = vsel %vm243, %v3539, 0
        %v3585 = vsel %vm243, %v3540, 0
        %v3588 = vsel %vm243, %v3541, 0
        %v3591 = vsel %vm243, %v3542, 0
        %v3594 = vsel %vm243, %v3543, 0
        %v3597 = vsel %vm243, %v3544, 0
        %v3600 = vsel %vm243, %v3545, 0
        %v3603 = vsel %vm243, %v3546, 0
        %v3606 = vsel %vm243, %v3547, 0
        %v3609 = vsel %vm243, %v3548, 0
        %v3612 = vsel %vm243, %v3549, 0
        %v3615 = vsel %vm243, %v3550, 0
        %v3618 = vsel %vm243, %v3551, 0
        %v3621 = vsel %vm243, %v3552, 0
        %v3624 = vsel %vm243, %v3553, 0
        %v3627 = vsel %vm243, %v3554, 0
        %v3630 = vsel %vm243, %v3555, 0
        %v3633 = vsel %vm243, %v3556, 0
        %v3636 = vsel %vm243, %v3557, 0
        %v3639 = vsel %vm243, %v3558, 0
        %v3642 = vsel %vm243, %v3559, 0
        %v3645 = vsel %vm243, %v3560, 0
        %v3648 = vsel %vm243, %v3561, 0
        %v3651 = vsel %vm243, %v3562, 0
        %v3654 = vsel %vm243, %v3563, 0
        %v3657 = vsel %vm243, %v3564, 0
        %v3660 = vsel %vm243, %v3565, 0
        %v3663 = vsel %vm243, %v3566, 0
        %v3666 = vsel %vm243, %v3567, 0
        %v3669 = vsel %vm243, %v3568, 0
        %v3672 = vsel %vm243, %v3569, 0
        %v3675 = vsel %vm243, %v3570, 0
        %v3678 = vsel %vm243, %v3571, 0
        %v3681 = vsel %vm243, %v3572, 0
        %v3684 = vsel %vm352, %v3574, 0
        %3686 = vmatprep.subr.mxu0 0.0
        %3687 = vmatpush1.msra.mxu0 %v3684
        %3688 = vmatprep.subr.mxu0 0.0
        %3689 = vmatpush1.msra.mxu0 0.0
        %3690 = vmatprep.subr.mxu0 0.0
        %3691 = vmatpush1.msra.mxu0 0.0
        %3692 = vmatprep.subr.mxu0 0.0
        %3693 = vmatpush1.msra.mxu0 0.0
        %3694 = vmatprep.subr.mxu0 0.0
        %3695 = vmatpush1.msra.mxu0 0.0
        %3696 = vmatprep.subr.mxu0 0.0
        %3697 = vmatpush1.msra.mxu0 0.0
        %3698 = vmatprep.subr.mxu0 0.0
        %3699 = vmatpush1.msra.mxu0 0.0
        %3700 = vmatprep.subr.mxu0 0.0
        %3701 = vmatpush1.msra.mxu0 0.0
        %3702 = vmatprep.subr.mxu0 0.0
        %3703 = vmatpush1.msra.mxu0 0.0
        %3704 = vmatprep.subr.mxu0 0.0
        %3705 = vmatpush1.msra.mxu0 0.0
        %3706 = vmatprep.subr.mxu0 0.0
        %3707 = vmatpush1.msra.mxu0 0.0
        %3708 = vmatprep.subr.mxu0 0.0
        %3709 = vmatpush1.msra.mxu0 0.0
        %3710 = vmatprep.subr.mxu0 0.0
        %3711 = vmatpush1.msra.mxu0 0.0
        %3712 = vmatprep.subr.mxu0 0.0
        %3713 = vmatpush1.msra.mxu0 0.0
        %3714 = vmatprep.subr.mxu0 0.0
        %3715 = vmatpush1.msra.mxu0 0.0
        %3716 = vmatprep.subr.mxu0 0.0
        %3717 = vmatpush1.msra.mxu0 0.0
        %3718 = vmatprep.subr.mxu0 0.0
        %3719 = vmatpush1.msra.mxu0 0.0
        %3720 = vmatprep.subr.mxu0 0.0
        %3721 = vmatpush1.msra.mxu0 0.0
        %3722 = vmatprep.subr.mxu0 0.0
        %3723 = vmatpush1.msra.mxu0 0.0
        %3724 = vmatprep.subr.mxu0 0.0
        %3725 = vmatpush1.msra.mxu0 0.0
        %3726 = vmatprep.subr.mxu0 0.0
        %3727 = vmatpush1.msra.mxu0 0.0
        %3728 = vmatprep.subr.mxu0 0.0
        %3729 = vmatpush1.msra.mxu0 0.0
        %3730 = vmatprep.subr.mxu0 0.0
        %3731 = vmatpush1.msra.mxu0 0.0
        %3732 = vmatprep.subr.mxu0 0.0
        %3733 = vmatpush1.msra.mxu0 0.0
        %3734 = vmatprep.subr.mxu0 0.0
        %3735 = vmatpush1.msra.mxu0 0.0
        %3736 = vmatprep.subr.mxu0 0.0
        %3737 = vmatpush1.msra.mxu0 0.0
        %3738 = vmatprep.subr.mxu0 0.0
        %3739 = vmatpush1.msra.mxu0 0.0
        %3740 = vmatprep.subr.mxu0 0.0
        %3741 = vmatpush1.msra.mxu0 0.0
        %3742 = vmatprep.subr.mxu0 0.0
        %3743 = vmatpush1.msra.mxu0 0.0
        %3744 = vmatprep.subr.mxu0 0.0
        %3745 = vmatpush1.msra.mxu0 0.0
        %3746 = vmatprep.subr.mxu0 0.0
        %3747 = vmatpush1.msra.mxu0 0.0
        %3748 = vmatprep.subr.mxu0 0.0
        %3749 = vmatpush1.msra.mxu0 0.0
        %3750 = vmatprep.mubr.f32.mxu0 0.0
        %3751 = vmatmul.mubr.f32.gmra.mrb[0].mxu0 %v3576
        %v3752 = vpop.f32.mrb[0].mxu0
        %v3753 = vadd.f32 0.0, %v3752
        %v3754 = vpop.f32.mrb[0].mxu0
        %3755 = vmatprep.mubr.f32.mxu0 0.0
        %3756 = vmatmul.mubr.f32.gmra.mrb[0].mxu0 %v3579
        %v3757 = vpop.f32.mrb[0].mxu0
        %v3758 = vadd.f32 0.0, %v3757
        %v3759 = vpop.f32.mrb[0].mxu0
        %3760 = vmatprep.mubr.f32.mxu0 0.0
        %3761 = vmatmul.mubr.f32.gmra.mrb[0].mxu0 %v3582
        %v3762 = vpop.f32.mrb[0].mxu0
        %v3763 = vadd.f32 0.0, %v3762
        %v3764 = vpop.f32.mrb[0].mxu0
        %3765 = vmatprep.mubr.f32.mxu0 0.0
        %3766 = vmatmul.mubr.f32.gmra.mrb[0].mxu0 %v3585
        %v3767 = vpop.f32.mrb[0].mxu0
        %v3768 = vadd.f32 0.0, %v3767
        %v3769 = vpop.f32.mrb[0].mxu0
        %3770 = vmatprep.mubr.f32.mxu0 0.0
        %3771 = vmatmul.mubr.f32.gmra.mrb[0].mxu0 %v3588
        %v3772 = vpop.f32.mrb[0].mxu0
        %v3773 = vadd.f32 0.0, %v3772
        %v3774 = vpop.f32.mrb[0].mxu0
        %3775 = vmatprep.mubr.f32.mxu0 0.0
        %3776 = vmatmul.mubr.f32.gmra.mrb[0].mxu0 %v3591
        %v3777 = vpop.f32.mrb[0].mxu0
        %v3778 = vadd.f32 0.0, %v3777
        %v3779 = vpop.f32.mrb[0].mxu0
        %3780 = vmatprep.mubr.f32.mxu0 0.0
        %3781 = vmatmul.mubr.f32.gmra.mrb[0].mxu0 %v3594
        %v3782 = vpop.f32.mrb[0].mxu0
        %v3783 = vadd.f32 0.0, %v3782
        %v3784 = vpop.f32.mrb[0].mxu0
        %3785 = vmatprep.mubr.f32.mxu0 0.0
        %3786 = vmatmul.mubr.f32.gmra.mrb[0].mxu0 %v3597
        %v3787 = vpop.f32.mrb[0].mxu0
        %v3788 = vadd.f32 0.0, %v3787
        %v3789 = vpop.f32.mrb[0].mxu0
        %3790 = vmatprep.mubr.f32.mxu0 0.0
        %3791 = vmatmul.mubr.f32.gmra.mrb[0].mxu0 %v3600
        %v3792 = vpop.f32.mrb[0].mxu0
        %v3793 = vadd.f32 0.0, %v3792
        %v3794 = vpop.f32.mrb[0].mxu0
        %3795 = vmatprep.mubr.f32.mxu0 0.0
        %3796 = vmatmul.mubr.f32.gmra.mrb[0].mxu0 %v3603
        %v3797 = vpop.f32.mrb[0].mxu0
        %v3798 = vadd.f32 0.0, %v3797
        %v3799 = vpop.f32.mrb[0].mxu0
        %3800 = vmatprep.mubr.f32.mxu0 0.0
        %3801 = vmatmul.mubr.f32.gmra.mrb[0].mxu0 %v3606
        %v3802 = vpop.f32.mrb[0].mxu0
        %v3803 = vadd.f32 0.0, %v3802
        %v3804 = vpop.f32.mrb[0].mxu0
        %3805 = vmatprep.mubr.f32.mxu0 0.0
        %3806 = vmatmul.mubr.f32.gmra.mrb[0].mxu0 %v3609
        %v3807 = vpop.f32.mrb[0].mxu0
        %v3808 = vadd.f32 0.0, %v3807
        %v3809 = vpop.f32.mrb[0].mxu0
        %3810 = vmatprep.mubr.f32.mxu0 0.0
        %3811 = vmatmul.mubr.f32.gmra.mrb[0].mxu0 %v3612
        %v3812 = vpop.f32.mrb[0].mxu0
        %v3813 = vadd.f32 0.0, %v3812
        %v3814 = vpop.f32.mrb[0].mxu0
        %3815 = vmatprep.mubr.f32.mxu0 0.0
        %3816 = vmatmul.mubr.f32.gmra.mrb[0].mxu0 %v3615
        %v3817 = vpop.f32.mrb[0].mxu0
        %v3818 = vadd.f32 0.0, %v3817
        %v3819 = vpop.f32.mrb[0].mxu0
        %3820 = vmatprep.mubr.f32.mxu0 0.0
        %3821 = vmatmul.mubr.f32.gmra.mrb[0].mxu0 %v3618
        %v3822 = vpop.f32.mrb[0].mxu0
        %v3823 = vadd.f32 0.0, %v3822
        %v3824 = vpop.f32.mrb[0].mxu0
        %3825 = vmatprep.mubr.f32.mxu0 0.0
        %3826 = vmatmul.mubr.f32.gmra.mrb[0].mxu0 %v3621
        %v3827 = vpop.f32.mrb[0].mxu0
        %v3828 = vadd.f32 0.0, %v3827
        %v3829 = vpop.f32.mrb[0].mxu0
        %3830 = vmatprep.mubr.f32.mxu0 0.0
        %3831 = vmatmul.mubr.f32.gmra.mrb[0].mxu0 %v3624
        %v3832 = vpop.f32.mrb[0].mxu0
        %v3833 = vadd.f32 0.0, %v3832
        %v3834 = vpop.f32.mrb[0].mxu0
        %3835 = vmatprep.mubr.f32.mxu0 0.0
        %3836 = vmatmul.mubr.f32.gmra.mrb[0].mxu0 %v3627
        %v3837 = vpop.f32.mrb[0].mxu0
        %v3838 = vadd.f32 0.0, %v3837
        %v3839 = vpop.f32.mrb[0].mxu0
        %3840 = vmatprep.mubr.f32.mxu0 0.0
        %3841 = vmatmul.mubr.f32.gmra.mrb[0].mxu0 %v3630
        %v3842 = vpop.f32.mrb[0].mxu0
        %v3843 = vadd.f32 0.0, %v3842
        %v3844 = vpop.f32.mrb[0].mxu0
        %3845 = vmatprep.mubr.f32.mxu0 0.0
        %3846 = vmatmul.mubr.f32.gmra.mrb[0].mxu0 %v3633
        %v3847 = vpop.f32.mrb[0].mxu0
        %v3848 = vadd.f32 0.0, %v3847
        %v3849 = vpop.f32.mrb[0].mxu0
        %3850 = vmatprep.mubr.f32.mxu0 0.0
        %3851 = vmatmul.mubr.f32.gmra.mrb[0].mxu0 %v3636
        %v3852 = vpop.f32.mrb[0].mxu0
        %v3853 = vadd.f32 0.0, %v3852
        %v3854 = vpop.f32.mrb[0].mxu0
        %3855 = vmatprep.mubr.f32.mxu0 0.0
        %3856 = vmatmul.mubr.f32.gmra.mrb[0].mxu0 %v3639
        %v3857 = vpop.f32.mrb[0].mxu0
        %v3858 = vadd.f32 0.0, %v3857
        %v3859 = vpop.f32.mrb[0].mxu0
        %3860 = vmatprep.mubr.f32.mxu0 0.0
        %3861 = vmatmul.mubr.f32.gmra.mrb[0].mxu0 %v3642
        %v3862 = vpop.f32.mrb[0].mxu0
        %v3863 = vadd.f32 0.0, %v3862
        %v3864 = vpop.f32.mrb[0].mxu0
        %3865 = vmatprep.mubr.f32.mxu0 0.0
        %3866 = vmatmul.mubr.f32.gmra.mrb[0].mxu0 %v3645
        %v3867 = vpop.f32.mrb[0].mxu0
        %v3868 = vadd.f32 0.0, %v3867
        %v3869 = vpop.f32.mrb[0].mxu0
        %3870 = vmatprep.mubr.f32.mxu0 0.0
        %3871 = vmatmul.mubr.f32.gmra.mrb[0].mxu0 %v3648
        %v3872 = vpop.f32.mrb[0].mxu0
        %v3873 = vadd.f32 0.0, %v3872
        %v3874 = vpop.f32.mrb[0].mxu0
        %3875 = vmatprep.mubr.f32.mxu0 0.0
        %3876 = vmatmul.mubr.f32.gmra.mrb[0].mxu0 %v3651
        %v3877 = vpop.f32.mrb[0].mxu0
        %v3878 = vadd.f32 0.0, %v3877
        %v3879 = vpop.f32.mrb[0].mxu0
        %3880 = vmatprep.mubr.f32.mxu0 0.0
        %3881 = vmatmul.mubr.f32.gmra.mrb[0].mxu0 %v3654
        %v3882 = vpop.f32.mrb[0].mxu0
        %v3883 = vadd.f32 0.0, %v3882
        %v3884 = vpop.f32.mrb[0].mxu0
        %3885 = vmatprep.mubr.f32.mxu0 0.0
        %3886 = vmatmul.mubr.f32.gmra.mrb[0].mxu0 %v3657
        %v3887 = vpop.f32.mrb[0].mxu0
        %v3888 = vadd.f32 0.0, %v3887
        %v3889 = vpop.f32.mrb[0].mxu0
        %3890 = vmatprep.mubr.f32.mxu0 0.0
        %3891 = vmatmul.mubr.f32.gmra.mrb[0].mxu0 %v3660
        %v3892 = vpop.f32.mrb[0].mxu0
        %v3893 = vadd.f32 0.0, %v3892
        %v3894 = vpop.f32.mrb[0].mxu0
        %3895 = vmatprep.mubr.f32.mxu0 0.0
        %3896 = vmatmul.mubr.f32.gmra.mrb[0].mxu0 %v3663
        %v3897 = vpop.f32.mrb[0].mxu0
        %v3898 = vadd.f32 0.0, %v3897
        %v3899 = vpop.f32.mrb[0].mxu0
        %3900 = vmatprep.mubr.f32.mxu0 0.0
        %3901 = vmatmul.mubr.f32.gmra.mrb[0].mxu0 %v3666
        %v3902 = vpop.f32.mrb[0].mxu0
        %v3903 = vadd.f32 0.0, %v3902
        %v3904 = vpop.f32.mrb[0].mxu0
        %3905 = vmatprep.mubr.f32.mxu0 0.0
        %3906 = vmatmul.mubr.f32.gmra.mrb[0].mxu0 %v3669
        %v3907 = vpop.f32.mrb[0].mxu0
        %v3908 = vadd.f32 0.0, %v3907
        %v3909 = vpop.f32.mrb[0].mxu0
        %3910 = vmatprep.mubr.f32.mxu0 0.0
        %3911 = vmatmul.mubr.f32.gmra.mrb[0].mxu0 %v3672
        %v3912 = vpop.f32.mrb[0].mxu0
        %v3913 = vadd.f32 0.0, %v3912
        %v3914 = vpop.f32.mrb[0].mxu0
        %3915 = vmatprep.mubr.f32.mxu0 0.0
        %3916 = vmatmul.mubr.f32.gmra.mrb[0].mxu0 %v3675
        %v3917 = vpop.f32.mrb[0].mxu0
        %v3918 = vadd.f32 0.0, %v3917
        %v3919 = vpop.f32.mrb[0].mxu0
        %3920 = vmatprep.mubr.f32.mxu0 0.0
        %3921 = vmatmul.mubr.f32.gmra.mrb[0].mxu0 %v3678
        %v3922 = vpop.f32.mrb[0].mxu0
        %v3923 = vadd.f32 0.0, %v3922
        %v3924 = vpop.f32.mrb[0].mxu0
        %3925 = vmatprep.mubr.f32.mxu0 0.0
        %3926 = vmatmul.mubr.f32.gmra.mrb[0].mxu0 %v3681
        %v3927 = vpop.f32.mrb[0].mxu0
        %v3928 = vadd.f32 0.0, %v3927
        %v3929 = vpop.f32.mrb[0].mxu0
        %3930 = vdwg.mxu0
        %v3931 = vadd.f32 %v3501, %v3753
        %v3932 = vadd.f32 %v3502, %v3758
        %v3933 = vadd.f32 %v3503, %v3763
        %v3934 = vadd.f32 %v3504, %v3768
        %v3935 = vadd.f32 %v3505, %v3773
        %v3936 = vadd.f32 %v3506, %v3778
        %v3937 = vadd.f32 %v3507, %v3783
        %v3938 = vadd.f32 %v3508, %v3788
        %v3939 = vadd.f32 %v3509, %v3793
        %v3940 = vadd.f32 %v3510, %v3798
        %v3941 = vadd.f32 %v3511, %v3803
        %v3942 = vadd.f32 %v3512, %v3808
        %v3943 = vadd.f32 %v3513, %v3813
        %v3944 = vadd.f32 %v3514, %v3818
        %v3945 = vadd.f32 %v3515, %v3823
        %v3946 = vadd.f32 %v3516, %v3828
        %v3947 = vadd.f32 %v3517, %v3833
        %v3948 = vadd.f32 %v3518, %v3838
        %v3949 = vadd.f32 %v3519, %v3843
        %v3950 = vadd.f32 %v3520, %v3848
        %v3951 = vadd.f32 %v3521, %v3853
        %v3952 = vadd.f32 %v3522, %v3858
        %v3953 = vadd.f32 %v3523, %v3863
        %v3954 = vadd.f32 %v3524, %v3868
        %v3955 = vadd.f32 %v3525, %v3873
        %v3956 = vadd.f32 %v3526, %v3878
        %v3957 = vadd.f32 %v3527, %v3883
        %v3958 = vadd.f32 %v3528, %v3888
        %v3959 = vadd.f32 %v3529, %v3893
        %v3960 = vadd.f32 %v3530, %v3898
        %v3961 = vadd.f32 %v3531, %v3903
        %v3962 = vadd.f32 %v3532, %v3908
        %v3963 = vadd.f32 %v3533, %v3913
        %v3964 = vadd.f32 %v3534, %v3918
        %v3965 = vadd.f32 %v3535, %v3923
        %v3966 = vadd.f32 %v3536, %v3928
        %v3967 = vmax.f32 %v3931, 0.0
        %v3968 = vmax.f32 %v3932, 0.0
        %v3969 = vmax.f32 %v3933, 0.0
        %v3970 = vmax.f32 %v3934, 0.0
        %v3971 = vmax.f32 %v3935, 0.0
        %v3972 = vmax.f32 %v3936, 0.0
        %v3973 = vmax.f32 %v3937, 0.0
        %v3974 = vmax.f32 %v3938, 0.0
        %v3975 = vmax.f32 %v3939, 0.0
        %v3976 = vmax.f32 %v3940, 0.0
        %v3977 = vmax.f32 %v3941, 0.0
        %v3978 = vmax.f32 %v3942, 0.0
        %v3979 = vmax.f32 %v3943, 0.0
        %v3980 = vmax.f32 %v3944, 0.0
        %v3981 = vmax.f32 %v3945, 0.0
        %v3982 = vmax.f32 %v3946, 0.0
        %v3983 = vmax.f32 %v3947, 0.0
        %v3984 = vmax.f32 %v3948, 0.0
        %v3985 = vmax.f32 %v3949, 0.0
        %v3986 = vmax.f32 %v3950, 0.0
        %v3987 = vmax.f32 %v3951, 0.0
        %v3988 = vmax.f32 %v3952, 0.0
        %v3989 = vmax.f32 %v3953, 0.0
        %v3990 = vmax.f32 %v3954, 0.0
        %v3991 = vmax.f32 %v3955, 0.0
        %v3992 = vmax.f32 %v3956, 0.0
        %v3993 = vmax.f32 %v3957, 0.0
        %v3994 = vmax.f32 %v3958, 0.0
        %v3995 = vmax.f32 %v3959, 0.0
        %v3996 = vmax.f32 %v3960, 0.0
        %v3997 = vmax.f32 %v3961, 0.0
        %v3998 = vmax.f32 %v3962, 0.0
        %v3999 = vmax.f32 %v3963, 0.0
        %v4000 = vmax.f32 %v3964, 0.0
        %v4001 = vmax.f32 %v3965, 0.0
        %v4002 = vmax.f32 %v3966, 0.0
        %v4003 = vld [vmem:[%s2] sm:$0xff]
        %v4004 = vld [vmem:[%s2 + $0x8] sm:$0xff]
        %v4005 = vld [vmem:[%s2 + $0x10] sm:$0xff]
        %v4006 = vld [vmem:[%s2 + $0x18] sm:$0xff]
        %v4007 = vld [vmem:[%s2 + $0x20] sm:$0xff]
        %v4008 = vld [vmem:[%s2 + $0x28] sm:$0xff]
        %v4009 = vld [vmem:[%s2 + $0x30] sm:$0xff]
        %v4010 = vld [vmem:[%s2 + $0x38] sm:$0xff]
        %v4011 = vld [vmem:[%s2 + $0x40] sm:$0xff]
        %v4012 = vld [vmem:[%s2 + $0x48] sm:$0xff]
        %v4013 = vld [vmem:[%s2 + $0x50] sm:$0xff]
        %v4014 = vld [vmem:[%s2 + $0x58] sm:$0xff]
        %v4015 = vld [vmem:[%s2 + $0x60] sm:$0xff]
        %v4016 = vld [vmem:[%s2 + $0x68] sm:$0xff]
        %v4017 = vld [vmem:[%s2 + $0x70] sm:$0xff]
        %v4018 = vld [vmem:[%s2 + $0x78] sm:$0xff]
        %v4019 = vld [vmem:[%s2 + $0x80] sm:$0xff]
        %v4020 = vld [vmem:[%s2 + $0x88] sm:$0xff]
        %v4021 = vld [vmem:[%s2 + $0x90] sm:$0xff]
        %v4022 = vld [vmem:[%s2 + $0x98] sm:$0xff]
        %v4023 = vld [vmem:[%s2 + $0xa0] sm:$0xff]
        %v4024 = vld [vmem:[%s2 + $0xa8] sm:$0xff]
        %v4025 = vld [vmem:[%s2 + $0xb0] sm:$0xff]
        %v4026 = vld [vmem:[%s2 + $0xb8] sm:$0xff]
        %v4027 = vld [vmem:[%s2 + $0xc0] sm:$0xff]
        %v4028 = vld [vmem:[%s2 + $0xc8] sm:$0xff]
        %v4029 = vld [vmem:[%s2 + $0xd0] sm:$0xff]
        %v4030 = vld [vmem:[%s2 + $0xd8] sm:$0xff]
        %v4031 = vld [vmem:[%s2 + $0xe0] sm:$0xff]
        %v4032 = vld [vmem:[%s2 + $0xe8] sm:$0xff]
        %v4033 = vld [vmem:[%s2 + $0xf0] sm:$0xff]
        %v4034 = vld [vmem:[%s2 + $0xf8] sm:$0xff]
        %v4035 = vld [vmem:[%s2 + $0x100] sm:$0xff]
        %v4036 = vld [vmem:[%s2 + $0x108] sm:$0xff]
        %v4037 = vld [vmem:[%s2 + $0x110] sm:$0xff]
        %v4038 = vld [vmem:[%s2 + $0x118] sm:$0x3f]
        %4040 = vset.pattern.permute.xlu0 0
        %4041 = vperm.xlu0 %4040, %v4003
        %v4042 = vpop.permute.xlu0 %4041
        %4045 = vset.pattern.permute.xlu0 0
        %4046 = vperm.xlu0 %4045, %v4004
        %v4047 = vpop.permute.xlu0 %4046
        %4050 = vset.pattern.permute.xlu0 0
        %4051 = vperm.xlu0 %4050, %v4005
        %v4052 = vpop.permute.xlu0 %4051
        %4055 = vset.pattern.permute.xlu0 0
        %4056 = vperm.xlu0 %4055, %v4006
        %v4057 = vpop.permute.xlu0 %4056
        %4060 = vset.pattern.permute.xlu0 0
        %4061 = vperm.xlu0 %4060, %v4007
        %v4062 = vpop.permute.xlu0 %4061
        %4065 = vset.pattern.permute.xlu0 0
        %4066 = vperm.xlu0 %4065, %v4008
        %v4067 = vpop.permute.xlu0 %4066
        %4070 = vset.pattern.permute.xlu0 0
        %4071 = vperm.xlu0 %4070, %v4009
        %v4072 = vpop.permute.xlu0 %4071
        %4075 = vset.pattern.permute.xlu0 0
        %4076 = vperm.xlu0 %4075, %v4010
        %v4077 = vpop.permute.xlu0 %4076
        %4080 = vset.pattern.permute.xlu0 0
        %4081 = vperm.xlu0 %4080, %v4011
        %v4082 = vpop.permute.xlu0 %4081
        %4085 = vset.pattern.permute.xlu0 0
        %4086 = vperm.xlu0 %4085, %v4012
        %v4087 = vpop.permute.xlu0 %4086
        %4090 = vset.pattern.permute.xlu0 0
        %4091 = vperm.xlu0 %4090, %v4013
        %v4092 = vpop.permute.xlu0 %4091
        %4095 = vset.pattern.permute.xlu0 0
        %4096 = vperm.xlu0 %4095, %v4014
        %v4097 = vpop.permute.xlu0 %4096
        %4100 = vset.pattern.permute.xlu0 0
        %4101 = vperm.xlu0 %4100, %v4015
        %v4102 = vpop.permute.xlu0 %4101
        %4105 = vset.pattern.permute.xlu0 0
        %4106 = vperm.xlu0 %4105, %v4016
        %v4107 = vpop.permute.xlu0 %4106
        %4110 = vset.pattern.permute.xlu0 0
        %4111 = vperm.xlu0 %4110, %v4017
        %v4112 = vpop.permute.xlu0 %4111
        %4115 = vset.pattern.permute.xlu0 0
        %4116 = vperm.xlu0 %4115, %v4018
        %v4117 = vpop.permute.xlu0 %4116
        %4120 = vset.pattern.permute.xlu0 0
        %4121 = vperm.xlu0 %4120, %v4019
        %v4122 = vpop.permute.xlu0 %4121
        %4125 = vset.pattern.permute.xlu0 0
        %4126 = vperm.xlu0 %4125, %v4020
        %v4127 = vpop.permute.xlu0 %4126
        %4130 = vset.pattern.permute.xlu0 0
        %4131 = vperm.xlu0 %4130, %v4021
        %v4132 = vpop.permute.xlu0 %4131
        %4135 = vset.pattern.permute.xlu0 0
        %4136 = vperm.xlu0 %4135, %v4022
        %v4137 = vpop.permute.xlu0 %4136
        %4140 = vset.pattern.permute.xlu0 0
        %4141 = vperm.xlu0 %4140, %v4023
        %v4142 = vpop.permute.xlu0 %4141
        %4145 = vset.pattern.permute.xlu0 0
        %4146 = vperm.xlu0 %4145, %v4024
        %v4147 = vpop.permute.xlu0 %4146
        %4150 = vset.pattern.permute.xlu0 0
        %4151 = vperm.xlu0 %4150, %v4025
        %v4152 = vpop.permute.xlu0 %4151
        %4155 = vset.pattern.permute.xlu0 0
        %4156 = vperm.xlu0 %4155, %v4026
        %v4157 = vpop.permute.xlu0 %4156
        %4160 = vset.pattern.permute.xlu0 0
        %4161 = vperm.xlu0 %4160, %v4027
        %v4162 = vpop.permute.xlu0 %4161
        %4165 = vset.pattern.permute.xlu0 0
        %4166 = vperm.xlu0 %4165, %v4028
        %v4167 = vpop.permute.xlu0 %4166
        %4170 = vset.pattern.permute.xlu0 0
        %4171 = vperm.xlu0 %4170, %v4029
        %v4172 = vpop.permute.xlu0 %4171
        %4175 = vset.pattern.permute.xlu0 0
        %4176 = vperm.xlu0 %4175, %v4030
        %v4177 = vpop.permute.xlu0 %4176
        %4180 = vset.pattern.permute.xlu0 0
        %4181 = vperm.xlu0 %4180, %v4031
        %v4182 = vpop.permute.xlu0 %4181
        %4185 = vset.pattern.permute.xlu0 0
        %4186 = vperm.xlu0 %4185, %v4032
        %v4187 = vpop.permute.xlu0 %4186
        %4190 = vset.pattern.permute.xlu0 0
        %4191 = vperm.xlu0 %4190, %v4033
        %v4192 = vpop.permute.xlu0 %4191
        %4195 = vset.pattern.permute.xlu0 0
        %4196 = vperm.xlu0 %4195, %v4034
        %v4197 = vpop.permute.xlu0 %4196
        %4200 = vset.pattern.permute.xlu0 0
        %4201 = vperm.xlu0 %4200, %v4035
        %v4202 = vpop.permute.xlu0 %4201
        %4205 = vset.pattern.permute.xlu0 0
        %4206 = vperm.xlu0 %4205, %v4036
        %v4207 = vpop.permute.xlu0 %4206
        %4210 = vset.pattern.permute.xlu0 0
        %4211 = vperm.xlu0 %4210, %v4037
        %v4212 = vpop.permute.xlu0 %4211
        %4215 = vset.pattern.permute.xlu0 0
        %4216 = vperm.xlu0 %4215, %v4038
        %v4217 = vpop.permute.xlu0 %4216
        %v4219 = vmul.f32 %v3967, %v4042
        %v4220 = vmul.f32 %v3968, %v4047
        %v4221 = vmul.f32 %v3969, %v4052
        %v4222 = vmul.f32 %v3970, %v4057
        %v4223 = vmul.f32 %v3971, %v4062
        %v4224 = vmul.f32 %v3972, %v4067
        %v4225 = vmul.f32 %v3973, %v4072
        %v4226 = vmul.f32 %v3974, %v4077
        %v4227 = vmul.f32 %v3975, %v4082
        %v4228 = vmul.f32 %v3976, %v4087
        %v4229 = vmul.f32 %v3977, %v4092
        %v4230 = vmul.f32 %v3978, %v4097
        %v4231 = vmul.f32 %v3979, %v4102
        %v4232 = vmul.f32 %v3980, %v4107
        %v4233 = vmul.f32 %v3981, %v4112
        %v4234 = vmul.f32 %v3982, %v4117
        %v4235 = vmul.f32 %v3983, %v4122
        %v4236 = vmul.f32 %v3984, %v4127
        %v4237 = vmul.f32 %v3985, %v4132
        %v4238 = vmul.f32 %v3986, %v4137
        %v4239 = vmul.f32 %v3987, %v4142
        %v4240 = vmul.f32 %v3988, %v4147
        %v4241 = vmul.f32 %v3989, %v4152
        %v4242 = vmul.f32 %v3990, %v4157
        %v4243 = vmul.f32 %v3991, %v4162
        %v4244 = vmul.f32 %v3992, %v4167
        %v4245 = vmul.f32 %v3993, %v4172
        %v4246 = vmul.f32 %v3994, %v4177
        %v4247 = vmul.f32 %v3995, %v4182
        %v4248 = vmul.f32 %v3996, %v4187
        %v4249 = vmul.f32 %v3997, %v4192
        %v4250 = vmul.f32 %v3998, %v4197
        %v4251 = vmul.f32 %v3999, %v4202
        %v4252 = vmul.f32 %v4000, %v4207
        %v4253 = vmul.f32 %v4001, %v4212
        %v4254 = vmul.f32 %v4002, %v4217
        %v4255 = vadd.f32 %v4219, %v4220
        %v4256 = vadd.f32 %v4255, %v4221
        %v4257 = vadd.f32 %v4256, %v4222
        %v4258 = vadd.f32 %v4257, %v4223
        %v4259 = vadd.f32 %v4258, %v4224
        %v4260 = vadd.f32 %v4259, %v4225
        %v4261 = vadd.f32 %v4260, %v4226
        %v4262 = vadd.f32 %v4261, %v4227
        %v4263 = vadd.f32 %v4262, %v4228
        %v4264 = vadd.f32 %v4263, %v4229
        %v4265 = vadd.f32 %v4264, %v4230
        %v4266 = vadd.f32 %v4265, %v4231
        %v4267 = vadd.f32 %v4266, %v4232
        %v4268 = vadd.f32 %v4267, %v4233
        %v4269 = vadd.f32 %v4268, %v4234
        %v4270 = vadd.f32 %v4269, %v4235
        %v4271 = vadd.f32 %v4270, %v4236
        %v4272 = vadd.f32 %v4271, %v4237
        %v4273 = vadd.f32 %v4272, %v4238
        %v4274 = vadd.f32 %v4273, %v4239
        %v4275 = vadd.f32 %v4274, %v4240
        %v4276 = vadd.f32 %v4275, %v4241
        %v4277 = vadd.f32 %v4276, %v4242
        %v4278 = vadd.f32 %v4277, %v4243
        %v4279 = vadd.f32 %v4278, %v4244
        %v4280 = vadd.f32 %v4279, %v4245
        %v4281 = vadd.f32 %v4280, %v4246
        %v4282 = vadd.f32 %v4281, %v4247
        %v4283 = vadd.f32 %v4282, %v4248
        %v4284 = vadd.f32 %v4283, %v4249
        %v4285 = vadd.f32 %v4284, %v4250
        %v4286 = vadd.f32 %v4285, %v4251
        %v4287 = vadd.f32 %v4286, %v4252
        %v4288 = vadd.f32 %v4287, %v4253
        %vm4289 = vcmask 1045504
        %v4290 = vsel %vm4289, %v4254, 0.0
        %v4291 = vadd.f32 %v4288, %v4290
        %v4292 = vrot.slane %v4291, 4
        %v4293 = vadd.f32 %v4291, %v4292
        %v4294 = vrot.slane %v4293, 2
        %v4295 = vadd.f32 %v4293, %v4294
        %v4296 = vrot.slane %v4295, 1
        %v4297 = vadd.f32 %v4295, %v4296
        %v4298 = vmul.f32 %v4297, 0.00390625
        %4299 = vst [vmem:[%s162] sm:$0x1] %v4298
        %s4300 = sand.u32 %s93, 1
        %s4301 = scalar_lea.sflag [#allocation3], %s4300
        %s4302 = sand.u32 %s93, 1
        %s4303 = scalar_lea.vmem [#allocation2], %s4302
        // Predicated region
        $region33: #{tpu_custom_call.1} parent=31 // pred_check
          %p4304 = pneg %p103
        $region34: #{tpu_custom_call.1} parent=31 // pred_check_branch
          %4306 = sbr.rel (%p4304) target = $region36
        $region35: #{tpu_custom_call.1} parent=31 // pred_region
          %s4308 = ssub.s32 16, 16
          %4309 = vsyncadd %s4301, %s4308
          %s4310 = smul.addr %s17, 16
          %s4311 = scalar_lea.hbm %s3, %s4310
          %s4313 = sshll.u32 %s4303, 4
          %s4314 = int_to_ptr.vmem [resolvable:$true] %s4313
          %4316 = dma.vmem_to_hbm [thread:$0]  %s4314, 16, %s4311, %s4301
        $region36: #{tpu_custom_call.1} parent=31 // pred_fallthru
          _
      $region32: #{tpu_custom_call.1} parent=5 // pred_fallthru
        _
      %p4317 = scmp.le.s32.totalorder 2, %s12
      // Predicated region
      $region37: #{tpu_custom_call.1} parent=5 // pred_check
        %p4318 = pneg %p4317
      $region38: #{tpu_custom_call.1} parent=5 // pred_check_branch
        %4320 = sbr.rel (%p4318) target = $region40
      $region39: #{tpu_custom_call.1} parent=5 // pred_region
        %s4321 = ssub.s32 %s12, 2
        // Predicated region
        $region41: #{tpu_custom_call.1} parent=39 // pred_check
          %p4322 = pneg %p109
        $region42: #{tpu_custom_call.1} parent=39 // pred_check_branch
          %4324 = sbr.rel (%p4322) target = $region44
        $region43: #{tpu_custom_call.1} parent=39 // pred_region
          %s4325 = sand.u32 %s94, 1
          %s4326 = scalar_lea.sflag [#allocation3], %s4325
          %s4327 = sand.u32 %s94, 1
          %s4328 = scalar_lea.vmem [#allocation2], %s4327
          %4329 = dma.done %s4326, 16
        $region44: #{tpu_custom_call.1} parent=39 // pred_fallthru
          _
      $region40: #{tpu_custom_call.1} parent=5 // pred_fallthru
        _
    $region6: #{tpu_custom_call.1} parent=1 // loop_footer
      %s16 = sadd.s32 1, %s12
    $region7: #{tpu_custom_call.1} parent=1 // loop_footer_branch
      %11 = sbr.rel target = $region3
    $region8: #{tpu_custom_call.1} parent=1 // loop_exit
      _
    %4330 = vsyncpa [#allocation3], 1
    %s4331 = scalar_lea.sflag [#allocation3], 1
    %4332 = vsyncpa %s4331, 1

</llo_original>
